<compile_context>
chip_gen: v5e
topology: v5e:2x2
jax: 0.10.0
libtpu: 0.0.40
codegen_flags: <defaults>
</compile_context>

<pallas_src>
import functools

import jax
import jax.numpy as jnp
from jax.experimental import pallas as pl
from jax.experimental.pallas import tpu as pltpu

CONV_KERNEL_SIZE = 3
CONV_STRIDE = 2
CONV_PADDING = 1


# ----------------------------- in-kernel helpers ----------------------------


def _unflatten_hwc(v, h0, w0, c0):
    """(Bl, h0*w0*c0) flat in (h, w, c) order -> (Bl, h0, w0, c0) value."""
    bl = v.shape[0]
    rows = []
    for h in range(h0):
        cells = []
        for w in range(w0):
            s = (h * w0 + w) * c0
            cells.append(v[:, s:s + c0].reshape(bl, 1, 1, c0))
        rows.append(jnp.concatenate(cells, axis=2))
    return jnp.concatenate(rows, axis=1)


def _dilate2_pad(x):
    """Zero-dilate by 2 and pad for ConvTranspose2d(k=3, s=2, p=1, op=1).

    (Bl, H, W, C) -> (Bl, 2H+2, 2W+2, C) with x[i, j] at (1+2i, 1+2j).
    Built only from static slices + concatenates (no scatter, no pad op).
    """
    bl, h, w, c = x.shape
    zc = jnp.zeros((bl, h, 1, c), x.dtype)
    cols = []
    for j in range(w):
        cols.append(zc)
        cols.append(x[:, :, j:j + 1, :])
    cols.append(zc)
    cols.append(zc)
    xw = jnp.concatenate(cols, axis=2)                    # (bl, h, 2w+2, c)
    zr = jnp.zeros((bl, 1, 2 * w + 2, c), x.dtype)
    rows = []
    for i in range(h):
        rows.append(zr)
        rows.append(xw[:, i:i + 1, :, :])
    rows.append(zr)
    rows.append(zr)
    return jnp.concatenate(rows, axis=1)                  # (bl, 2h+2, 2w+2, c)


def _pad1(x):
    """Pad 1 on each spatial side (ConvTranspose2d k=3, s=1, p=1 case)."""
    bl, h, w, c = x.shape
    zc = jnp.zeros((bl, h, 1, c), x.dtype)
    xw = jnp.concatenate([zc, x, zc], axis=2)
    zr = jnp.zeros((bl, 1, w + 2, c), x.dtype)
    return jnp.concatenate([zr, xw, zr], axis=1)


def _conv3x3_valid(up, w_mat, b_row, activation):
    """VALID 3x3 conv: 9 shifted 2-D matmuls, batch*spatial folded into M.

    up:    (Bl, Hp, Wp, Ci)  dilated/padded input (kernel value)
    w_mat: (9*Ci, Co)        pre-flipped kernel, rows ordered (kh, kw, ci)
    b_row: (1, Co)
    """
    bl, hp, wp, ci = up.shape
    co = w_mat.shape[1]
    k = CONV_KERNEL_SIZE
    ho, wo = hp - k + 1, wp - k + 1
    n = bl * ho * wo
    acc = jnp.zeros((n, co), jnp.float32)
    for kh in range(k):
        for kw in range(k):
            tap = kh * k + kw
            patch = up[:, kh:kh + ho, kw:kw + wo, :].reshape(n, ci)
            acc = acc + jnp.dot(patch, w_mat[tap * ci:(tap + 1) * ci, :],
                                preferred_element_type=jnp.float32)
    acc = acc + b_row
    if activation == "relu":
        acc = jnp.maximum(acc, 0.0)
    elif activation == "sigmoid":
        acc = jax.nn.sigmoid(acc)
    return acc.reshape(bl, ho, wo, co)


# ----------------------------- fused decoder kernel -------------------------


def _decoder_kernel(x_ref, lw_ref, lb_ref, *rest, n_up, h0, w0, c0):
    # rest = (w_0, b_0, ..., w_{n_up}, b_{n_up}, o_ref)
    o_ref = rest[-1]
    conv_refs = rest[:-1]

    b = pl.program_id(0)                                  # one batch element / step
    xb = x_ref[pl.ds(b, 1), :]                            # (1, L)

    # Linear (weights pre-permuted so the flat output is already HWC-ordered).
    lin = jnp.dot(xb, lw_ref[...], preferred_element_type=jnp.float32) + lb_ref[...]
    h = _unflatten_hwc(lin, h0, w0, c0)                   # (1, h0, w0, c0)

    # Upsampling ConvTranspose2d(k3, s2, p1, op1) + ReLU layers.
    for i in range(n_up):
        w_m = conv_refs[2 * i][...]
        b_r = conv_refs[2 * i + 1][...]
        h = _conv3x3_valid(_dilate2_pad(h), w_m, b_r, "relu")

    # Final ConvTranspose2d(k3, s1, p1) + Sigmoid.
    w_m = conv_refs[2 * n_up][...]
    b_r = conv_refs[2 * n_up + 1][...]
    h = _conv3x3_valid(_pad1(h), w_m, b_r, "sigmoid")

    o_ref[...] = h                                        # (1, H, W, C_out) NHWC


# ----------------------------- wrapper ---------------------------------------


def prepare_decoder_params(params, out_shape):
    """One-time weight preprocessing (outside the hot path)."""
    c0, h0, w0 = out_shape
    lin_w = params["lin_w"]
    lin_b = params["lin_b"]
    latent, flat = lin_w.shape
    # Permute Linear columns so the matmul output is directly (h, w, c)-flattened.
    lin_w_hwc = lin_w.reshape(latent, c0, h0, w0).transpose(0, 2, 3, 1).reshape(latent, flat)
    lin_b_hwc = lin_b.reshape(c0, h0, w0).transpose(1, 2, 0).reshape(1, flat)
    convs = []
    for w_pt, bb in params["convs"]:
        ci, co, k, _ = w_pt.shape
        # flip spatially, reorder to (kh, kw, ci, co), flatten taps for 2-D dots
        w_conv = jnp.flip(w_pt, axis=(2, 3)).transpose(2, 3, 0, 1)
        convs.append((w_conv.reshape(k * k * ci, co), bb.reshape(1, co)))
    return {"lin_w": lin_w_hwc, "lin_b": lin_b_hwc, "convs": convs}


def decoder_forward(prep, x, out_shape, filters):
    c0, h0, w0 = out_shape
    B, L = x.shape
    n_up = len(filters)
    H = h0 * (2 ** n_up)
    W = w0 * (2 ** n_up)
    c_out = prep["convs"][-1][0].shape[1]
    F = prep["lin_w"].shape[1]

    inputs = [x, prep["lin_w"], prep["lin_b"]]
    in_specs = [
        pl.BlockSpec((B, L), lambda b: (0, 0)),
        pl.BlockSpec((L, F), lambda b: (0, 0)),
        pl.BlockSpec((1, F), lambda b: (0, 0)),
    ]
    for w_m, b_r in prep["convs"]:
        inputs += [w_m, b_r]
        in_specs += [pl.BlockSpec(w_m.shape, lambda b: (0, 0)),
                     pl.BlockSpec(b_r.shape, lambda b: (0, 0))]

    kernel = functools.partial(_decoder_kernel, n_up=n_up, h0=h0, w0=w0, c0=c0)
    out_nhwc = pl.pallas_call(
        kernel,
        out_shape=jax.ShapeDtypeStruct((B, H, W, c_out), jnp.float32),
        grid=(B,),
        in_specs=in_specs,
        out_specs=pl.BlockSpec((1, H, W, c_out), lambda b: (b, 0, 0, 0)),
        compiler_params=pltpu.CompilerParams(
            dimension_semantics=("parallel",),
            vmem_limit_bytes=16 * 1024 * 1024),
    )(*inputs)
    # Single tiny layout permute to PyTorch NCHW (fused under jit).
    return out_nhwc.transpose(0, 3, 1, 2)


# ----------------------------- parameter init --------------------------------


def init_decoder_params(key, latent_dim, in_channels, filters, out_shape):
    c0, h0, w0 = out_shape
    flat = c0 * h0 * w0
    n_convs = len(filters) + 1
    keys = jax.random.split(key, 2 + 2 * n_convs)
    params = {
        "lin_w": jax.random.normal(keys[0], (latent_dim, flat), jnp.float32) * 0.05,
        "lin_b": jax.random.normal(keys[1], (flat,), jnp.float32) * 0.05,
        "convs": [],
    }
    c_in = c0
    ki = 2
    for c_out in reversed(filters):
        w = jax.random.normal(
            keys[ki], (c_in, c_out, CONV_KERNEL_SIZE, CONV_KERNEL_SIZE),
            jnp.float32) * 0.05
        bb = jax.random.normal(keys[ki + 1], (c_out,), jnp.float32) * 0.05
        params["convs"].append((w, bb))
        ki += 2
        c_in = c_out
    w = jax.random.normal(
        keys[ki], (c_in, in_channels, CONV_KERNEL_SIZE, CONV_KERNEL_SIZE),
        jnp.float32) * 0.05
    bb = jax.random.normal(keys[ki + 1], (in_channels,), jnp.float32) * 0.05
    params["convs"].append((w, bb))
    return params


# ----------------------------- pure-JAX reference ----------------------------


def _ref_conv_transpose(x_nchw, w_pt, b, stride, padding, output_padding):
    K = w_pt.shape[2]
    rhs = jnp.flip(w_pt, axis=(2, 3)).transpose(1, 0, 2, 3)    # (Co, Ci, K, K)
    pad = K - 1 - padding
    y = jax.lax.conv_general_dilated(
        x_nchw, rhs, window_strides=(1, 1),
        padding=((pad, pad + output_padding), (pad, pad + output_padding)),
        lhs_dilation=(stride, stride),
        dimension_numbers=("NCHW", "OIHW", "NCHW"))
    return y + b.reshape(1, -1, 1, 1)


def decoder_forward_ref(params, x, out_shape, filters):
    c0, h0, w0 = out_shape
    B = x.shape[0]
    h = x @ params["lin_w"] + params["lin_b"]
    h = h.reshape(B, c0, h0, w0)
    for i in range(len(filters)):
        w, b = params["convs"][i]
        h = jax.nn.relu(_ref_conv_transpose(h, w, b, CONV_STRIDE, CONV_PADDING, 1))
    w, b = params["convs"][len(filters)]
    h = jax.nn.sigmoid(_ref_conv_transpose(h, w, b, 1, CONV_PADDING, 0))
    return h


# ----------------------------- main ------------------------------------------


if __name__ == "__main__":
    latent_dim = 32
    in_channels = 4
    filters = [8, 16]          # encoder filters; decoder upsamples through reversed order
    out_shape = (16, 4, 4)     # (channels, height, width) from the encoder

    key = jax.random.PRNGKey(0)
    pkey, xkey = jax.random.split(key)
    params = init_decoder_params(pkey, latent_dim, in_channels, filters, out_shape)
    prep = prepare_decoder_params(params, out_shape)

    B = 2
    x = jax.random.normal(xkey, (B, latent_dim), jnp.float32)

    fwd = jax.jit(functools.partial(decoder_forward, out_shape=out_shape, filters=filters))
    out = jax.block_until_ready(fwd(prep, x))

    # spatial: 4 -> 8 -> 16 -> 16 ; channels end at in_channels
    assert out.shape == (B, in_channels, 16, 16), out.shape

    ref = jax.block_until_ready(decoder_forward_ref(params, x, out_shape, filters))
    assert jnp.allclose(out, ref, atol=2e-5, rtol=1e-4), float(jnp.max(jnp.abs(out - ref)))

    print("KERNEL_OK")
</pallas_src>

<mosaic_0001>
module attributes {stable_mosaic.version = 11 : i64} {
  func.func @_decoder_kernel(%arg0: i32, %arg1: memref<2x32xf32, #tpu.memory_space<vmem>>, %arg2: memref<32x256xf32, #tpu.memory_space<vmem>>, %arg3: memref<1x256xf32, #tpu.memory_space<vmem>>, %arg4: memref<144x16xf32, #tpu.memory_space<vmem>>, %arg5: memref<1x16xf32, #tpu.memory_space<vmem>>, %arg6: memref<144x8xf32, #tpu.memory_space<vmem>>, %arg7: memref<1x8xf32, #tpu.memory_space<vmem>>, %arg8: memref<72x4xf32, #tpu.memory_space<vmem>>, %arg9: memref<1x4xf32, #tpu.memory_space<vmem>>, %arg10: memref<1x16x16x4xf32, #tpu.memory_space<vmem>>) attributes {dimension_semantics = [#tpu.dimension_semantics<parallel>], iteration_bounds = array<i64: 2>, scalar_prefetch = 0 : i64, scratch_operands = 0 : i64, tpu.core_type = #tpu.core_type<tc>, window_params = [{pipeline_mode = #tpu.pipeline_mode<synchronous>, transform_indices = @transform_0, window_bounds = array<i64: 2, 32>}, {pipeline_mode = #tpu.pipeline_mode<synchronous>, transform_indices = @transform_1, window_bounds = array<i64: 32, 256>}, {pipeline_mode = #tpu.pipeline_mode<synchronous>, transform_indices = @transform_2, window_bounds = array<i64: 1, 256>}, {pipeline_mode = #tpu.pipeline_mode<synchronous>, transform_indices = @transform_3, window_bounds = array<i64: 144, 16>}, {pipeline_mode = #tpu.pipeline_mode<synchronous>, transform_indices = @transform_4, window_bounds = array<i64: 1, 16>}, {pipeline_mode = #tpu.pipeline_mode<synchronous>, transform_indices = @transform_5, window_bounds = array<i64: 144, 8>}, {pipeline_mode = #tpu.pipeline_mode<synchronous>, transform_indices = @transform_6, window_bounds = array<i64: 1, 8>}, {pipeline_mode = #tpu.pipeline_mode<synchronous>, transform_indices = @transform_7, window_bounds = array<i64: 72, 4>}, {pipeline_mode = #tpu.pipeline_mode<synchronous>, transform_indices = @transform_8, window_bounds = array<i64: 1, 4>}, {transform_indices = @transform_9, window_bounds = array<i64: 1, 16, 16, 4>}]} {
    %0 = arith.index_cast %arg0 : i32 to index
    %c0 = arith.constant 0 : index
    %1 = vector.load %arg1[%0, %c0] : memref<2x32xf32, #tpu.memory_space<vmem>>, vector<1x32xf32>
    %c0_0 = arith.constant 0 : index
    %c0_1 = arith.constant 0 : index
    %2 = vector.load %arg2[%c0_0, %c0_1] : memref<32x256xf32, #tpu.memory_space<vmem>>, vector<32x256xf32>
    %cst = arith.constant dense<0.000000e+00> : vector<1x256xf32>
    %3 = tpu.matmul %1, %2, %cst {dimension_numbers = #tpu.dot_dimension_numbers<[1], [0], [0], [1], [0, 0, 1, 1], [], []>} : vector<1x32xf32>, vector<32x256xf32>, vector<1x256xf32> -> vector<1x256xf32>
    %c0_2 = arith.constant 0 : index
    %c0_3 = arith.constant 0 : index
    %4 = vector.load %arg3[%c0_2, %c0_3] : memref<1x256xf32, #tpu.memory_space<vmem>>, vector<1x256xf32>
    %5 = arith.addf %3, %4 : vector<1x256xf32>
    %6 = vector.extract_strided_slice %5 {offsets = [0, 0], sizes = [1, 16], strides = [1, 1]} : vector<1x256xf32> to vector<1x16xf32>
    %7 = vector.shape_cast %6 : vector<1x16xf32> to vector<1x1x1x16xf32>
    %8 = vector.extract_strided_slice %5 {offsets = [0, 16], sizes = [1, 16], strides = [1, 1]} : vector<1x256xf32> to vector<1x16xf32>
    %9 = vector.shape_cast %8 : vector<1x16xf32> to vector<1x1x1x16xf32>
    %10 = vector.extract_strided_slice %5 {offsets = [0, 32], sizes = [1, 16], strides = [1, 1]} : vector<1x256xf32> to vector<1x16xf32>
    %11 = vector.shape_cast %10 : vector<1x16xf32> to vector<1x1x1x16xf32>
    %12 = vector.extract_strided_slice %5 {offsets = [0, 48], sizes = [1, 16], strides = [1, 1]} : vector<1x256xf32> to vector<1x16xf32>
    %13 = vector.shape_cast %12 : vector<1x16xf32> to vector<1x1x1x16xf32>
    %14 = tpu.concatenate %7, %9, %11, %13 in 2 : vector<1x1x1x16xf32>, vector<1x1x1x16xf32>, vector<1x1x1x16xf32>, vector<1x1x1x16xf32> -> vector<1x1x4x16xf32>
    %15 = vector.extract_strided_slice %5 {offsets = [0, 64], sizes = [1, 16], strides = [1, 1]} : vector<1x256xf32> to vector<1x16xf32>
    %16 = vector.shape_cast %15 : vector<1x16xf32> to vector<1x1x1x16xf32>
    %17 = vector.extract_strided_slice %5 {offsets = [0, 80], sizes = [1, 16], strides = [1, 1]} : vector<1x256xf32> to vector<1x16xf32>
    %18 = vector.shape_cast %17 : vector<1x16xf32> to vector<1x1x1x16xf32>
    %19 = vector.extract_strided_slice %5 {offsets = [0, 96], sizes = [1, 16], strides = [1, 1]} : vector<1x256xf32> to vector<1x16xf32>
    %20 = vector.shape_cast %19 : vector<1x16xf32> to vector<1x1x1x16xf32>
    %21 = vector.extract_strided_slice %5 {offsets = [0, 112], sizes = [1, 16], strides = [1, 1]} : vector<1x256xf32> to vector<1x16xf32>
    %22 = vector.shape_cast %21 : vector<1x16xf32> to vector<1x1x1x16xf32>
    %23 = tpu.concatenate %16, %18, %20, %22 in 2 : vector<1x1x1x16xf32>, vector<1x1x1x16xf32>, vector<1x1x1x16xf32>, vector<1x1x1x16xf32> -> vector<1x1x4x16xf32>
    %24 = vector.extract_strided_slice %5 {offsets = [0, 128], sizes = [1, 16], strides = [1, 1]} : vector<1x256xf32> to vector<1x16xf32>
    %25 = vector.shape_cast %24 : vector<1x16xf32> to vector<1x1x1x16xf32>
    %26 = vector.extract_strided_slice %5 {offsets = [0, 144], sizes = [1, 16], strides = [1, 1]} : vector<1x256xf32> to vector<1x16xf32>
    %27 = vector.shape_cast %26 : vector<1x16xf32> to vector<1x1x1x16xf32>
    %28 = vector.extract_strided_slice %5 {offsets = [0, 160], sizes = [1, 16], strides = [1, 1]} : vector<1x256xf32> to vector<1x16xf32>
    %29 = vector.shape_cast %28 : vector<1x16xf32> to vector<1x1x1x16xf32>
    %30 = vector.extract_strided_slice %5 {offsets = [0, 176], sizes = [1, 16], strides = [1, 1]} : vector<1x256xf32> to vector<1x16xf32>
    %31 = vector.shape_cast %30 : vector<1x16xf32> to vector<1x1x1x16xf32>
    %32 = tpu.concatenate %25, %27, %29, %31 in 2 : vector<1x1x1x16xf32>, vector<1x1x1x16xf32>, vector<1x1x1x16xf32>, vector<1x1x1x16xf32> -> vector<1x1x4x16xf32>
    %33 = vector.extract_strided_slice %5 {offsets = [0, 192], sizes = [1, 16], strides = [1, 1]} : vector<1x256xf32> to vector<1x16xf32>
    %34 = vector.shape_cast %33 : vector<1x16xf32> to vector<1x1x1x16xf32>
    %35 = vector.extract_strided_slice %5 {offsets = [0, 208], sizes = [1, 16], strides = [1, 1]} : vector<1x256xf32> to vector<1x16xf32>
    %36 = vector.shape_cast %35 : vector<1x16xf32> to vector<1x1x1x16xf32>
    %37 = vector.extract_strided_slice %5 {offsets = [0, 224], sizes = [1, 16], strides = [1, 1]} : vector<1x256xf32> to vector<1x16xf32>
    %38 = vector.shape_cast %37 : vector<1x16xf32> to vector<1x1x1x16xf32>
    %39 = vector.extract_strided_slice %5 {offsets = [0, 240], sizes = [1, 16], strides = [1, 1]} : vector<1x256xf32> to vector<1x16xf32>
    %40 = vector.shape_cast %39 : vector<1x16xf32> to vector<1x1x1x16xf32>
    %41 = tpu.concatenate %34, %36, %38, %40 in 2 : vector<1x1x1x16xf32>, vector<1x1x1x16xf32>, vector<1x1x1x16xf32>, vector<1x1x1x16xf32> -> vector<1x1x4x16xf32>
    %42 = tpu.concatenate %14, %23, %32, %41 in 1 : vector<1x1x4x16xf32>, vector<1x1x4x16xf32>, vector<1x1x4x16xf32>, vector<1x1x4x16xf32> -> vector<1x4x4x16xf32>
    %c0_4 = arith.constant 0 : index
    %c0_5 = arith.constant 0 : index
    %43 = vector.load %arg4[%c0_4, %c0_5] : memref<144x16xf32, #tpu.memory_space<vmem>>, vector<144x16xf32>
    %c0_6 = arith.constant 0 : index
    %c0_7 = arith.constant 0 : index
    %44 = vector.load %arg5[%c0_6, %c0_7] : memref<1x16xf32, #tpu.memory_space<vmem>>, vector<1x16xf32>
    %cst_8 = arith.constant 0.000000e+00 : f32
    %45 = vector.broadcast %cst_8 : f32 to vector<1x4x1x16xf32>
    %46 = vector.extract_strided_slice %42 {offsets = [0, 0, 0, 0], sizes = [1, 4, 1, 16], strides = [1, 1, 1, 1]} : vector<1x4x4x16xf32> to vector<1x4x1x16xf32>
    %47 = vector.extract_strided_slice %42 {offsets = [0, 0, 1, 0], sizes = [1, 4, 1, 16], strides = [1, 1, 1, 1]} : vector<1x4x4x16xf32> to vector<1x4x1x16xf32>
    %48 = vector.extract_strided_slice %42 {offsets = [0, 0, 2, 0], sizes = [1, 4, 1, 16], strides = [1, 1, 1, 1]} : vector<1x4x4x16xf32> to vector<1x4x1x16xf32>
    %49 = vector.extract_strided_slice %42 {offsets = [0, 0, 3, 0], sizes = [1, 4, 1, 16], strides = [1, 1, 1, 1]} : vector<1x4x4x16xf32> to vector<1x4x1x16xf32>
    %50 = tpu.concatenate %45, %46, %45, %47, %45, %48, %45, %49, %45, %45 in 2 : vector<1x4x1x16xf32>, vector<1x4x1x16xf32>, vector<1x4x1x16xf32>, vector<1x4x1x16xf32>, vector<1x4x1x16xf32>, vector<1x4x1x16xf32>, vector<1x4x1x16xf32>, vector<1x4x1x16xf32>, vector<1x4x1x16xf32>, vector<1x4x1x16xf32> -> vector<1x4x10x16xf32>
    %cst_9 = arith.constant 0.000000e+00 : f32
    %51 = vector.broadcast %cst_9 : f32 to vector<1x1x10x16xf32>
    %52 = vector.extract_strided_slice %50 {offsets = [0, 0, 0, 0], sizes = [1, 1, 10, 16], strides = [1, 1, 1, 1]} : vector<1x4x10x16xf32> to vector<1x1x10x16xf32>
    %53 = vector.extract_strided_slice %50 {offsets = [0, 1, 0, 0], sizes = [1, 1, 10, 16], strides = [1, 1, 1, 1]} : vector<1x4x10x16xf32> to vector<1x1x10x16xf32>
    %54 = vector.extract_strided_slice %50 {offsets = [0, 2, 0, 0], sizes = [1, 1, 10, 16], strides = [1, 1, 1, 1]} : vector<1x4x10x16xf32> to vector<1x1x10x16xf32>
    %55 = vector.extract_strided_slice %50 {offsets = [0, 3, 0, 0], sizes = [1, 1, 10, 16], strides = [1, 1, 1, 1]} : vector<1x4x10x16xf32> to vector<1x1x10x16xf32>
    %56 = tpu.concatenate %51, %52, %51, %53, %51, %54, %51, %55, %51, %51 in 1 : vector<1x1x10x16xf32>, vector<1x1x10x16xf32>, vector<1x1x10x16xf32>, vector<1x1x10x16xf32>, vector<1x1x10x16xf32>, vector<1x1x10x16xf32>, vector<1x1x10x16xf32>, vector<1x1x10x16xf32>, vector<1x1x10x16xf32>, vector<1x1x10x16xf32> -> vector<1x10x10x16xf32>
    %cst_10 = arith.constant 0.000000e+00 : f32
    %57 = vector.broadcast %cst_10 : f32 to vector<64x16xf32>
    %58 = vector.extract_strided_slice %56 {offsets = [0, 0, 0, 0], sizes = [1, 8, 8, 16], strides = [1, 1, 1, 1]} : vector<1x10x10x16xf32> to vector<1x8x8x16xf32>
    %59 = vector.shape_cast %58 : vector<1x8x8x16xf32> to vector<64x16xf32>
    %60 = vector.extract_strided_slice %43 {offsets = [0, 0], sizes = [16, 16], strides = [1, 1]} : vector<144x16xf32> to vector<16x16xf32>
    %cst_11 = arith.constant dense<0.000000e+00> : vector<64x16xf32>
    %61 = tpu.matmul %59, %60, %cst_11 {dimension_numbers = #tpu.dot_dimension_numbers<[1], [0], [0], [1], [0, 0, 1, 1], [], []>} : vector<64x16xf32>, vector<16x16xf32>, vector<64x16xf32> -> vector<64x16xf32>
    %62 = arith.addf %57, %61 : vector<64x16xf32>
    %63 = vector.extract_strided_slice %56 {offsets = [0, 0, 1, 0], sizes = [1, 8, 8, 16], strides = [1, 1, 1, 1]} : vector<1x10x10x16xf32> to vector<1x8x8x16xf32>
    %64 = vector.shape_cast %63 : vector<1x8x8x16xf32> to vector<64x16xf32>
    %65 = vector.extract_strided_slice %43 {offsets = [16, 0], sizes = [16, 16], strides = [1, 1]} : vector<144x16xf32> to vector<16x16xf32>
    %cst_12 = arith.constant dense<0.000000e+00> : vector<64x16xf32>
    %66 = tpu.matmul %64, %65, %cst_12 {dimension_numbers = #tpu.dot_dimension_numbers<[1], [0], [0], [1], [0, 0, 1, 1], [], []>} : vector<64x16xf32>, vector<16x16xf32>, vector<64x16xf32> -> vector<64x16xf32>
    %67 = arith.addf %62, %66 : vector<64x16xf32>
    %68 = vector.extract_strided_slice %56 {offsets = [0, 0, 2, 0], sizes = [1, 8, 8, 16], strides = [1, 1, 1, 1]} : vector<1x10x10x16xf32> to vector<1x8x8x16xf32>
    %69 = vector.shape_cast %68 : vector<1x8x8x16xf32> to vector<64x16xf32>
    %70 = vector.extract_strided_slice %43 {offsets = [32, 0], sizes = [16, 16], strides = [1, 1]} : vector<144x16xf32> to vector<16x16xf32>
    %cst_13 = arith.constant dense<0.000000e+00> : vector<64x16xf32>
    %71 = tpu.matmul %69, %70, %cst_13 {dimension_numbers = #tpu.dot_dimension_numbers<[1], [0], [0], [1], [0, 0, 1, 1], [], []>} : vector<64x16xf32>, vector<16x16xf32>, vector<64x16xf32> -> vector<64x16xf32>
    %72 = arith.addf %67, %71 : vector<64x16xf32>
    %73 = vector.extract_strided_slice %56 {offsets = [0, 1, 0, 0], sizes = [1, 8, 8, 16], strides = [1, 1, 1, 1]} : vector<1x10x10x16xf32> to vector<1x8x8x16xf32>
    %74 = vector.shape_cast %73 : vector<1x8x8x16xf32> to vector<64x16xf32>
    %75 = vector.extract_strided_slice %43 {offsets = [48, 0], sizes = [16, 16], strides = [1, 1]} : vector<144x16xf32> to vector<16x16xf32>
    %cst_14 = arith.constant dense<0.000000e+00> : vector<64x16xf32>
    %76 = tpu.matmul %74, %75, %cst_14 {dimension_numbers = #tpu.dot_dimension_numbers<[1], [0], [0], [1], [0, 0, 1, 1], [], []>} : vector<64x16xf32>, vector<16x16xf32>, vector<64x16xf32> -> vector<64x16xf32>
    %77 = arith.addf %72, %76 : vector<64x16xf32>
    %78 = vector.extract_strided_slice %56 {offsets = [0, 1, 1, 0], sizes = [1, 8, 8, 16], strides = [1, 1, 1, 1]} : vector<1x10x10x16xf32> to vector<1x8x8x16xf32>
    %79 = vector.shape_cast %78 : vector<1x8x8x16xf32> to vector<64x16xf32>
    %80 = vector.extract_strided_slice %43 {offsets = [64, 0], sizes = [16, 16], strides = [1, 1]} : vector<144x16xf32> to vector<16x16xf32>
    %cst_15 = arith.constant dense<0.000000e+00> : vector<64x16xf32>
    %81 = tpu.matmul %79, %80, %cst_15 {dimension_numbers = #tpu.dot_dimension_numbers<[1], [0], [0], [1], [0, 0, 1, 1], [], []>} : vector<64x16xf32>, vector<16x16xf32>, vector<64x16xf32> -> vector<64x16xf32>
    %82 = arith.addf %77, %81 : vector<64x16xf32>
    %83 = vector.extract_strided_slice %56 {offsets = [0, 1, 2, 0], sizes = [1, 8, 8, 16], strides = [1, 1, 1, 1]} : vector<1x10x10x16xf32> to vector<1x8x8x16xf32>
    %84 = vector.shape_cast %83 : vector<1x8x8x16xf32> to vector<64x16xf32>
    %85 = vector.extract_strided_slice %43 {offsets = [80, 0], sizes = [16, 16], strides = [1, 1]} : vector<144x16xf32> to vector<16x16xf32>
    %cst_16 = arith.constant dense<0.000000e+00> : vector<64x16xf32>
    %86 = tpu.matmul %84, %85, %cst_16 {dimension_numbers = #tpu.dot_dimension_numbers<[1], [0], [0], [1], [0, 0, 1, 1], [], []>} : vector<64x16xf32>, vector<16x16xf32>, vector<64x16xf32> -> vector<64x16xf32>
    %87 = arith.addf %82, %86 : vector<64x16xf32>
    %88 = vector.extract_strided_slice %56 {offsets = [0, 2, 0, 0], sizes = [1, 8, 8, 16], strides = [1, 1, 1, 1]} : vector<1x10x10x16xf32> to vector<1x8x8x16xf32>
    %89 = vector.shape_cast %88 : vector<1x8x8x16xf32> to vector<64x16xf32>
    %90 = vector.extract_strided_slice %43 {offsets = [96, 0], sizes = [16, 16], strides = [1, 1]} : vector<144x16xf32> to vector<16x16xf32>
    %cst_17 = arith.constant dense<0.000000e+00> : vector<64x16xf32>
    %91 = tpu.matmul %89, %90, %cst_17 {dimension_numbers = #tpu.dot_dimension_numbers<[1], [0], [0], [1], [0, 0, 1, 1], [], []>} : vector<64x16xf32>, vector<16x16xf32>, vector<64x16xf32> -> vector<64x16xf32>
    %92 = arith.addf %87, %91 : vector<64x16xf32>
    %93 = vector.extract_strided_slice %56 {offsets = [0, 2, 1, 0], sizes = [1, 8, 8, 16], strides = [1, 1, 1, 1]} : vector<1x10x10x16xf32> to vector<1x8x8x16xf32>
    %94 = vector.shape_cast %93 : vector<1x8x8x16xf32> to vector<64x16xf32>
    %95 = vector.extract_strided_slice %43 {offsets = [112, 0], sizes = [16, 16], strides = [1, 1]} : vector<144x16xf32> to vector<16x16xf32>
    %cst_18 = arith.constant dense<0.000000e+00> : vector<64x16xf32>
    %96 = tpu.matmul %94, %95, %cst_18 {dimension_numbers = #tpu.dot_dimension_numbers<[1], [0], [0], [1], [0, 0, 1, 1], [], []>} : vector<64x16xf32>, vector<16x16xf32>, vector<64x16xf32> -> vector<64x16xf32>
    %97 = arith.addf %92, %96 : vector<64x16xf32>
    %98 = vector.extract_strided_slice %56 {offsets = [0, 2, 2, 0], sizes = [1, 8, 8, 16], strides = [1, 1, 1, 1]} : vector<1x10x10x16xf32> to vector<1x8x8x16xf32>
    %99 = vector.shape_cast %98 : vector<1x8x8x16xf32> to vector<64x16xf32>
    %100 = vector.extract_strided_slice %43 {offsets = [128, 0], sizes = [16, 16], strides = [1, 1]} : vector<144x16xf32> to vector<16x16xf32>
    %cst_19 = arith.constant dense<0.000000e+00> : vector<64x16xf32>
    %101 = tpu.matmul %99, %100, %cst_19 {dimension_numbers = #tpu.dot_dimension_numbers<[1], [0], [0], [1], [0, 0, 1, 1], [], []>} : vector<64x16xf32>, vector<16x16xf32>, vector<64x16xf32> -> vector<64x16xf32>
    %102 = arith.addf %97, %101 : vector<64x16xf32>
    %103 = vector.broadcast %44 : vector<1x16xf32> to vector<64x16xf32>
    %104 = arith.addf %102, %103 : vector<64x16xf32>
    %cst_20 = arith.constant 0.000000e+00 : f32
    %105 = vector.broadcast %cst_20 : f32 to vector<64x16xf32>
    %106 = arith.maximumf %104, %105 : vector<64x16xf32>
    %107 = vector.shape_cast %106 : vector<64x16xf32> to vector<1x8x8x16xf32>
    %c0_21 = arith.constant 0 : index
    %c0_22 = arith.constant 0 : index
    %108 = vector.load %arg6[%c0_21, %c0_22] : memref<144x8xf32, #tpu.memory_space<vmem>>, vector<144x8xf32>
    %c0_23 = arith.constant 0 : index
    %c0_24 = arith.constant 0 : index
    %109 = vector.load %arg7[%c0_23, %c0_24] : memref<1x8xf32, #tpu.memory_space<vmem>>, vector<1x8xf32>
    %cst_25 = arith.constant 0.000000e+00 : f32
    %110 = vector.broadcast %cst_25 : f32 to vector<1x8x1x16xf32>
    %111 = vector.extract_strided_slice %107 {offsets = [0, 0, 0, 0], sizes = [1, 8, 1, 16], strides = [1, 1, 1, 1]} : vector<1x8x8x16xf32> to vector<1x8x1x16xf32>
    %112 = vector.extract_strided_slice %107 {offsets = [0, 0, 1, 0], sizes = [1, 8, 1, 16], strides = [1, 1, 1, 1]} : vector<1x8x8x16xf32> to vector<1x8x1x16xf32>
    %113 = vector.extract_strided_slice %107 {offsets = [0, 0, 2, 0], sizes = [1, 8, 1, 16], strides = [1, 1, 1, 1]} : vector<1x8x8x16xf32> to vector<1x8x1x16xf32>
    %114 = vector.extract_strided_slice %107 {offsets = [0, 0, 3, 0], sizes = [1, 8, 1, 16], strides = [1, 1, 1, 1]} : vector<1x8x8x16xf32> to vector<1x8x1x16xf32>
    %115 = vector.extract_strided_slice %107 {offsets = [0, 0, 4, 0], sizes = [1, 8, 1, 16], strides = [1, 1, 1, 1]} : vector<1x8x8x16xf32> to vector<1x8x1x16xf32>
    %116 = vector.extract_strided_slice %107 {offsets = [0, 0, 5, 0], sizes = [1, 8, 1, 16], strides = [1, 1, 1, 1]} : vector<1x8x8x16xf32> to vector<1x8x1x16xf32>
    %117 = vector.extract_strided_slice %107 {offsets = [0, 0, 6, 0], sizes = [1, 8, 1, 16], strides = [1, 1, 1, 1]} : vector<1x8x8x16xf32> to vector<1x8x1x16xf32>
    %118 = vector.extract_strided_slice %107 {offsets = [0, 0, 7, 0], sizes = [1, 8, 1, 16], strides = [1, 1, 1, 1]} : vector<1x8x8x16xf32> to vector<1x8x1x16xf32>
    %119 = tpu.concatenate %110, %111, %110, %112, %110, %113, %110, %114, %110, %115, %110, %116, %110, %117, %110, %118 in 2 : vector<1x8x1x16xf32>, vector<1x8x1x16xf32>, vector<1x8x1x16xf32>, vector<1x8x1x16xf32>, vector<1x8x1x16xf32>, vector<1x8x1x16xf32>, vector<1x8x1x16xf32>, vector<1x8x1x16xf32>, vector<1x8x1x16xf32>, vector<1x8x1x16xf32>, vector<1x8x1x16xf32>, vector<1x8x1x16xf32>, vector<1x8x1x16xf32>, vector<1x8x1x16xf32>, vector<1x8x1x16xf32>, vector<1x8x1x16xf32> -> vector<1x8x16x16xf32>
    %120 = tpu.concatenate %110, %110 in 2 : vector<1x8x1x16xf32>, vector<1x8x1x16xf32> -> vector<1x8x2x16xf32>
    %121 = tpu.concatenate %119, %120 in 2 : vector<1x8x16x16xf32>, vector<1x8x2x16xf32> -> vector<1x8x18x16xf32>
    %cst_26 = arith.constant 0.000000e+00 : f32
    %122 = vector.broadcast %cst_26 : f32 to vector<1x1x18x16xf32>
    %123 = vector.extract_strided_slice %121 {offsets = [0, 0, 0, 0], sizes = [1, 1, 18, 16], strides = [1, 1, 1, 1]} : vector<1x8x18x16xf32> to vector<1x1x18x16xf32>
    %124 = vector.extract_strided_slice %121 {offsets = [0, 1, 0, 0], sizes = [1, 1, 18, 16], strides = [1, 1, 1, 1]} : vector<1x8x18x16xf32> to vector<1x1x18x16xf32>
    %125 = vector.extract_strided_slice %121 {offsets = [0, 2, 0, 0], sizes = [1, 1, 18, 16], strides = [1, 1, 1, 1]} : vector<1x8x18x16xf32> to vector<1x1x18x16xf32>
    %126 = vector.extract_strided_slice %121 {offsets = [0, 3, 0, 0], sizes = [1, 1, 18, 16], strides = [1, 1, 1, 1]} : vector<1x8x18x16xf32> to vector<1x1x18x16xf32>
    %127 = vector.extract_strided_slice %121 {offsets = [0, 4, 0, 0], sizes = [1, 1, 18, 16], strides = [1, 1, 1, 1]} : vector<1x8x18x16xf32> to vector<1x1x18x16xf32>
    %128 = vector.extract_strided_slice %121 {offsets = [0, 5, 0, 0], sizes = [1, 1, 18, 16], strides = [1, 1, 1, 1]} : vector<1x8x18x16xf32> to vector<1x1x18x16xf32>
    %129 = vector.extract_strided_slice %121 {offsets = [0, 6, 0, 0], sizes = [1, 1, 18, 16], strides = [1, 1, 1, 1]} : vector<1x8x18x16xf32> to vector<1x1x18x16xf32>
    %130 = vector.extract_strided_slice %121 {offsets = [0, 7, 0, 0], sizes = [1, 1, 18, 16], strides = [1, 1, 1, 1]} : vector<1x8x18x16xf32> to vector<1x1x18x16xf32>
    %131 = tpu.concatenate %122, %123, %122, %124, %122, %125, %122, %126, %122, %127, %122, %128, %122, %129, %122, %130 in 1 : vector<1x1x18x16xf32>, vector<1x1x18x16xf32>, vector<1x1x18x16xf32>, vector<1x1x18x16xf32>, vector<1x1x18x16xf32>, vector<1x1x18x16xf32>, vector<1x1x18x16xf32>, vector<1x1x18x16xf32>, vector<1x1x18x16xf32>, vector<1x1x18x16xf32>, vector<1x1x18x16xf32>, vector<1x1x18x16xf32>, vector<1x1x18x16xf32>, vector<1x1x18x16xf32>, vector<1x1x18x16xf32>, vector<1x1x18x16xf32> -> vector<1x16x18x16xf32>
    %132 = tpu.concatenate %122, %122 in 1 : vector<1x1x18x16xf32>, vector<1x1x18x16xf32> -> vector<1x2x18x16xf32>
    %133 = tpu.concatenate %131, %132 in 1 : vector<1x16x18x16xf32>, vector<1x2x18x16xf32> -> vector<1x18x18x16xf32>
    %cst_27 = arith.constant 0.000000e+00 : f32
    %134 = vector.broadcast %cst_27 : f32 to vector<256x8xf32>
    %135 = vector.extract_strided_slice %133 {offsets = [0, 0, 0, 0], sizes = [1, 16, 16, 16], strides = [1, 1, 1, 1]} : vector<1x18x18x16xf32> to vector<1x16x16x16xf32>
    %136 = vector.shape_cast %135 : vector<1x16x16x16xf32> to vector<256x16xf32>
    %137 = vector.extract_strided_slice %108 {offsets = [0, 0], sizes = [16, 8], strides = [1, 1]} : vector<144x8xf32> to vector<16x8xf32>
    %cst_28 = arith.constant dense<0.000000e+00> : vector<256x8xf32>
    %138 = tpu.matmul %136, %137, %cst_28 {dimension_numbers = #tpu.dot_dimension_numbers<[1], [0], [0], [1], [0, 0, 1, 1], [], []>} : vector<256x16xf32>, vector<16x8xf32>, vector<256x8xf32> -> vector<256x8xf32>
    %139 = arith.addf %134, %138 : vector<256x8xf32>
    %140 = vector.extract_strided_slice %133 {offsets = [0, 0, 1, 0], sizes = [1, 16, 16, 16], strides = [1, 1, 1, 1]} : vector<1x18x18x16xf32> to vector<1x16x16x16xf32>
    %141 = vector.shape_cast %140 : vector<1x16x16x16xf32> to vector<256x16xf32>
    %142 = vector.extract_strided_slice %108 {offsets = [16, 0], sizes = [16, 8], strides = [1, 1]} : vector<144x8xf32> to vector<16x8xf32>
    %cst_29 = arith.constant dense<0.000000e+00> : vector<256x8xf32>
    %143 = tpu.matmul %141, %142, %cst_29 {dimension_numbers = #tpu.dot_dimension_numbers<[1], [0], [0], [1], [0, 0, 1, 1], [], []>} : vector<256x16xf32>, vector<16x8xf32>, vector<256x8xf32> -> vector<256x8xf32>
    %144 = arith.addf %139, %143 : vector<256x8xf32>
    %145 = vector.extract_strided_slice %133 {offsets = [0, 0, 2, 0], sizes = [1, 16, 16, 16], strides = [1, 1, 1, 1]} : vector<1x18x18x16xf32> to vector<1x16x16x16xf32>
    %146 = vector.shape_cast %145 : vector<1x16x16x16xf32> to vector<256x16xf32>
    %147 = vector.extract_strided_slice %108 {offsets = [32, 0], sizes = [16, 8], strides = [1, 1]} : vector<144x8xf32> to vector<16x8xf32>
    %cst_30 = arith.constant dense<0.000000e+00> : vector<256x8xf32>
    %148 = tpu.matmul %146, %147, %cst_30 {dimension_numbers = #tpu.dot_dimension_numbers<[1], [0], [0], [1], [0, 0, 1, 1], [], []>} : vector<256x16xf32>, vector<16x8xf32>, vector<256x8xf32> -> vector<256x8xf32>
    %149 = arith.addf %144, %148 : vector<256x8xf32>
    %150 = vector.extract_strided_slice %133 {offsets = [0, 1, 0, 0], sizes = [1, 16, 16, 16], strides = [1, 1, 1, 1]} : vector<1x18x18x16xf32> to vector<1x16x16x16xf32>
    %151 = vector.shape_cast %150 : vector<1x16x16x16xf32> to vector<256x16xf32>
    %152 = vector.extract_strided_slice %108 {offsets = [48, 0], sizes = [16, 8], strides = [1, 1]} : vector<144x8xf32> to vector<16x8xf32>
    %cst_31 = arith.constant dense<0.000000e+00> : vector<256x8xf32>
    %153 = tpu.matmul %151, %152, %cst_31 {dimension_numbers = #tpu.dot_dimension_numbers<[1], [0], [0], [1], [0, 0, 1, 1], [], []>} : vector<256x16xf32>, vector<16x8xf32>, vector<256x8xf32> -> vector<256x8xf32>
    %154 = arith.addf %149, %153 : vector<256x8xf32>
    %155 = vector.extract_strided_slice %133 {offsets = [0, 1, 1, 0], sizes = [1, 16, 16, 16], strides = [1, 1, 1, 1]} : vector<1x18x18x16xf32> to vector<1x16x16x16xf32>
    %156 = vector.shape_cast %155 : vector<1x16x16x16xf32> to vector<256x16xf32>
    %157 = vector.extract_strided_slice %108 {offsets = [64, 0], sizes = [16, 8], strides = [1, 1]} : vector<144x8xf32> to vector<16x8xf32>
    %cst_32 = arith.constant dense<0.000000e+00> : vector<256x8xf32>
    %158 = tpu.matmul %156, %157, %cst_32 {dimension_numbers = #tpu.dot_dimension_numbers<[1], [0], [0], [1], [0, 0, 1, 1], [], []>} : vector<256x16xf32>, vector<16x8xf32>, vector<256x8xf32> -> vector<256x8xf32>
    %159 = arith.addf %154, %158 : vector<256x8xf32>
    %160 = vector.extract_strided_slice %133 {offsets = [0, 1, 2, 0], sizes = [1, 16, 16, 16], strides = [1, 1, 1, 1]} : vector<1x18x18x16xf32> to vector<1x16x16x16xf32>
    %161 = vector.shape_cast %160 : vector<1x16x16x16xf32> to vector<256x16xf32>
    %162 = vector.extract_strided_slice %108 {offsets = [80, 0], sizes = [16, 8], strides = [1, 1]} : vector<144x8xf32> to vector<16x8xf32>
    %cst_33 = arith.constant dense<0.000000e+00> : vector<256x8xf32>
    %163 = tpu.matmul %161, %162, %cst_33 {dimension_numbers = #tpu.dot_dimension_numbers<[1], [0], [0], [1], [0, 0, 1, 1], [], []>} : vector<256x16xf32>, vector<16x8xf32>, vector<256x8xf32> -> vector<256x8xf32>
    %164 = arith.addf %159, %163 : vector<256x8xf32>
    %165 = vector.extract_strided_slice %133 {offsets = [0, 2, 0, 0], sizes = [1, 16, 16, 16], strides = [1, 1, 1, 1]} : vector<1x18x18x16xf32> to vector<1x16x16x16xf32>
    %166 = vector.shape_cast %165 : vector<1x16x16x16xf32> to vector<256x16xf32>
    %167 = vector.extract_strided_slice %108 {offsets = [96, 0], sizes = [16, 8], strides = [1, 1]} : vector<144x8xf32> to vector<16x8xf32>
    %cst_34 = arith.constant dense<0.000000e+00> : vector<256x8xf32>
    %168 = tpu.matmul %166, %167, %cst_34 {dimension_numbers = #tpu.dot_dimension_numbers<[1], [0], [0], [1], [0, 0, 1, 1], [], []>} : vector<256x16xf32>, vector<16x8xf32>, vector<256x8xf32> -> vector<256x8xf32>
    %169 = arith.addf %164, %168 : vector<256x8xf32>
    %170 = vector.extract_strided_slice %133 {offsets = [0, 2, 1, 0], sizes = [1, 16, 16, 16], strides = [1, 1, 1, 1]} : vector<1x18x18x16xf32> to vector<1x16x16x16xf32>
    %171 = vector.shape_cast %170 : vector<1x16x16x16xf32> to vector<256x16xf32>
    %172 = vector.extract_strided_slice %108 {offsets = [112, 0], sizes = [16, 8], strides = [1, 1]} : vector<144x8xf32> to vector<16x8xf32>
    %cst_35 = arith.constant dense<0.000000e+00> : vector<256x8xf32>
    %173 = tpu.matmul %171, %172, %cst_35 {dimension_numbers = #tpu.dot_dimension_numbers<[1], [0], [0], [1], [0, 0, 1, 1], [], []>} : vector<256x16xf32>, vector<16x8xf32>, vector<256x8xf32> -> vector<256x8xf32>
    %174 = arith.addf %169, %173 : vector<256x8xf32>
    %175 = vector.extract_strided_slice %133 {offsets = [0, 2, 2, 0], sizes = [1, 16, 16, 16], strides = [1, 1, 1, 1]} : vector<1x18x18x16xf32> to vector<1x16x16x16xf32>
    %176 = vector.shape_cast %175 : vector<1x16x16x16xf32> to vector<256x16xf32>
    %177 = vector.extract_strided_slice %108 {offsets = [128, 0], sizes = [16, 8], strides = [1, 1]} : vector<144x8xf32> to vector<16x8xf32>
    %cst_36 = arith.constant dense<0.000000e+00> : vector<256x8xf32>
    %178 = tpu.matmul %176, %177, %cst_36 {dimension_numbers = #tpu.dot_dimension_numbers<[1], [0], [0], [1], [0, 0, 1, 1], [], []>} : vector<256x16xf32>, vector<16x8xf32>, vector<256x8xf32> -> vector<256x8xf32>
    %179 = arith.addf %174, %178 : vector<256x8xf32>
    %180 = vector.broadcast %109 : vector<1x8xf32> to vector<256x8xf32>
    %181 = arith.addf %179, %180 : vector<256x8xf32>
    %cst_37 = arith.constant 0.000000e+00 : f32
    %182 = vector.broadcast %cst_37 : f32 to vector<256x8xf32>
    %183 = arith.maximumf %181, %182 : vector<256x8xf32>
    %184 = vector.shape_cast %183 : vector<256x8xf32> to vector<1x16x16x8xf32>
    %c0_38 = arith.constant 0 : index
    %c0_39 = arith.constant 0 : index
    %185 = vector.load %arg8[%c0_38, %c0_39] : memref<72x4xf32, #tpu.memory_space<vmem>>, vector<72x4xf32>
    %c0_40 = arith.constant 0 : index
    %c0_41 = arith.constant 0 : index
    %186 = vector.load %arg9[%c0_40, %c0_41] : memref<1x4xf32, #tpu.memory_space<vmem>>, vector<1x4xf32>
    %cst_42 = arith.constant 0.000000e+00 : f32
    %187 = vector.broadcast %cst_42 : f32 to vector<1x16x1x8xf32>
    %188 = tpu.concatenate %187, %184, %187 in 2 : vector<1x16x1x8xf32>, vector<1x16x16x8xf32>, vector<1x16x1x8xf32> -> vector<1x16x18x8xf32>
    %cst_43 = arith.constant 0.000000e+00 : f32
    %189 = vector.broadcast %cst_43 : f32 to vector<1x1x18x8xf32>
    %190 = tpu.concatenate %189, %188, %189 in 1 : vector<1x1x18x8xf32>, vector<1x16x18x8xf32>, vector<1x1x18x8xf32> -> vector<1x18x18x8xf32>
    %cst_44 = arith.constant 0.000000e+00 : f32
    %191 = vector.broadcast %cst_44 : f32 to vector<256x4xf32>
    %192 = vector.extract_strided_slice %190 {offsets = [0, 0, 0, 0], sizes = [1, 16, 16, 8], strides = [1, 1, 1, 1]} : vector<1x18x18x8xf32> to vector<1x16x16x8xf32>
    %193 = vector.shape_cast %192 : vector<1x16x16x8xf32> to vector<256x8xf32>
    %194 = vector.extract_strided_slice %185 {offsets = [0, 0], sizes = [8, 4], strides = [1, 1]} : vector<72x4xf32> to vector<8x4xf32>
    %cst_45 = arith.constant dense<0.000000e+00> : vector<256x4xf32>
    %195 = tpu.matmul %193, %194, %cst_45 {dimension_numbers = #tpu.dot_dimension_numbers<[1], [0], [0], [1], [0, 0, 1, 1], [], []>} : vector<256x8xf32>, vector<8x4xf32>, vector<256x4xf32> -> vector<256x4xf32>
    %196 = arith.addf %191, %195 : vector<256x4xf32>
    %197 = vector.extract_strided_slice %190 {offsets = [0, 0, 1, 0], sizes = [1, 16, 16, 8], strides = [1, 1, 1, 1]} : vector<1x18x18x8xf32> to vector<1x16x16x8xf32>
    %198 = vector.shape_cast %197 : vector<1x16x16x8xf32> to vector<256x8xf32>
    %199 = vector.extract_strided_slice %185 {offsets = [8, 0], sizes = [8, 4], strides = [1, 1]} : vector<72x4xf32> to vector<8x4xf32>
    %cst_46 = arith.constant dense<0.000000e+00> : vector<256x4xf32>
    %200 = tpu.matmul %198, %199, %cst_46 {dimension_numbers = #tpu.dot_dimension_numbers<[1], [0], [0], [1], [0, 0, 1, 1], [], []>} : vector<256x8xf32>, vector<8x4xf32>, vector<256x4xf32> -> vector<256x4xf32>
    %201 = arith.addf %196, %200 : vector<256x4xf32>
    %202 = vector.extract_strided_slice %190 {offsets = [0, 0, 2, 0], sizes = [1, 16, 16, 8], strides = [1, 1, 1, 1]} : vector<1x18x18x8xf32> to vector<1x16x16x8xf32>
    %203 = vector.shape_cast %202 : vector<1x16x16x8xf32> to vector<256x8xf32>
    %204 = vector.extract_strided_slice %185 {offsets = [16, 0], sizes = [8, 4], strides = [1, 1]} : vector<72x4xf32> to vector<8x4xf32>
    %cst_47 = arith.constant dense<0.000000e+00> : vector<256x4xf32>
    %205 = tpu.matmul %203, %204, %cst_47 {dimension_numbers = #tpu.dot_dimension_numbers<[1], [0], [0], [1], [0, 0, 1, 1], [], []>} : vector<256x8xf32>, vector<8x4xf32>, vector<256x4xf32> -> vector<256x4xf32>
    %206 = arith.addf %201, %205 : vector<256x4xf32>
    %207 = vector.extract_strided_slice %190 {offsets = [0, 1, 0, 0], sizes = [1, 16, 16, 8], strides = [1, 1, 1, 1]} : vector<1x18x18x8xf32> to vector<1x16x16x8xf32>
    %208 = vector.shape_cast %207 : vector<1x16x16x8xf32> to vector<256x8xf32>
    %209 = vector.extract_strided_slice %185 {offsets = [24, 0], sizes = [8, 4], strides = [1, 1]} : vector<72x4xf32> to vector<8x4xf32>
    %cst_48 = arith.constant dense<0.000000e+00> : vector<256x4xf32>
    %210 = tpu.matmul %208, %209, %cst_48 {dimension_numbers = #tpu.dot_dimension_numbers<[1], [0], [0], [1], [0, 0, 1, 1], [], []>} : vector<256x8xf32>, vector<8x4xf32>, vector<256x4xf32> -> vector<256x4xf32>
    %211 = arith.addf %206, %210 : vector<256x4xf32>
    %212 = vector.extract_strided_slice %190 {offsets = [0, 1, 1, 0], sizes = [1, 16, 16, 8], strides = [1, 1, 1, 1]} : vector<1x18x18x8xf32> to vector<1x16x16x8xf32>
    %213 = vector.shape_cast %212 : vector<1x16x16x8xf32> to vector<256x8xf32>
    %214 = vector.extract_strided_slice %185 {offsets = [32, 0], sizes = [8, 4], strides = [1, 1]} : vector<72x4xf32> to vector<8x4xf32>
    %cst_49 = arith.constant dense<0.000000e+00> : vector<256x4xf32>
    %215 = tpu.matmul %213, %214, %cst_49 {dimension_numbers = #tpu.dot_dimension_numbers<[1], [0], [0], [1], [0, 0, 1, 1], [], []>} : vector<256x8xf32>, vector<8x4xf32>, vector<256x4xf32> -> vector<256x4xf32>
    %216 = arith.addf %211, %215 : vector<256x4xf32>
    %217 = vector.extract_strided_slice %190 {offsets = [0, 1, 2, 0], sizes = [1, 16, 16, 8], strides = [1, 1, 1, 1]} : vector<1x18x18x8xf32> to vector<1x16x16x8xf32>
    %218 = vector.shape_cast %217 : vector<1x16x16x8xf32> to vector<256x8xf32>
    %219 = vector.extract_strided_slice %185 {offsets = [40, 0], sizes = [8, 4], strides = [1, 1]} : vector<72x4xf32> to vector<8x4xf32>
    %cst_50 = arith.constant dense<0.000000e+00> : vector<256x4xf32>
    %220 = tpu.matmul %218, %219, %cst_50 {dimension_numbers = #tpu.dot_dimension_numbers<[1], [0], [0], [1], [0, 0, 1, 1], [], []>} : vector<256x8xf32>, vector<8x4xf32>, vector<256x4xf32> -> vector<256x4xf32>
    %221 = arith.addf %216, %220 : vector<256x4xf32>
    %222 = vector.extract_strided_slice %190 {offsets = [0, 2, 0, 0], sizes = [1, 16, 16, 8], strides = [1, 1, 1, 1]} : vector<1x18x18x8xf32> to vector<1x16x16x8xf32>
    %223 = vector.shape_cast %222 : vector<1x16x16x8xf32> to vector<256x8xf32>
    %224 = vector.extract_strided_slice %185 {offsets = [48, 0], sizes = [8, 4], strides = [1, 1]} : vector<72x4xf32> to vector<8x4xf32>
    %cst_51 = arith.constant dense<0.000000e+00> : vector<256x4xf32>
    %225 = tpu.matmul %223, %224, %cst_51 {dimension_numbers = #tpu.dot_dimension_numbers<[1], [0], [0], [1], [0, 0, 1, 1], [], []>} : vector<256x8xf32>, vector<8x4xf32>, vector<256x4xf32> -> vector<256x4xf32>
    %226 = arith.addf %221, %225 : vector<256x4xf32>
    %227 = vector.extract_strided_slice %190 {offsets = [0, 2, 1, 0], sizes = [1, 16, 16, 8], strides = [1, 1, 1, 1]} : vector<1x18x18x8xf32> to vector<1x16x16x8xf32>
    %228 = vector.shape_cast %227 : vector<1x16x16x8xf32> to vector<256x8xf32>
    %229 = vector.extract_strided_slice %185 {offsets = [56, 0], sizes = [8, 4], strides = [1, 1]} : vector<72x4xf32> to vector<8x4xf32>
    %cst_52 = arith.constant dense<0.000000e+00> : vector<256x4xf32>
    %230 = tpu.matmul %228, %229, %cst_52 {dimension_numbers = #tpu.dot_dimension_numbers<[1], [0], [0], [1], [0, 0, 1, 1], [], []>} : vector<256x8xf32>, vector<8x4xf32>, vector<256x4xf32> -> vector<256x4xf32>
    %231 = arith.addf %226, %230 : vector<256x4xf32>
    %232 = vector.extract_strided_slice %190 {offsets = [0, 2, 2, 0], sizes = [1, 16, 16, 8], strides = [1, 1, 1, 1]} : vector<1x18x18x8xf32> to vector<1x16x16x8xf32>
    %233 = vector.shape_cast %232 : vector<1x16x16x8xf32> to vector<256x8xf32>
    %234 = vector.extract_strided_slice %185 {offsets = [64, 0], sizes = [8, 4], strides = [1, 1]} : vector<72x4xf32> to vector<8x4xf32>
    %cst_53 = arith.constant dense<0.000000e+00> : vector<256x4xf32>
    %235 = tpu.matmul %233, %234, %cst_53 {dimension_numbers = #tpu.dot_dimension_numbers<[1], [0], [0], [1], [0, 0, 1, 1], [], []>} : vector<256x8xf32>, vector<8x4xf32>, vector<256x4xf32> -> vector<256x4xf32>
    %236 = arith.addf %231, %235 : vector<256x4xf32>
    %237 = vector.broadcast %186 : vector<1x4xf32> to vector<256x4xf32>
    %238 = arith.addf %236, %237 : vector<256x4xf32>
    %239 = arith.negf %238 : vector<256x4xf32>
    %240 = math.exp %239 : vector<256x4xf32>
    %cst_54 = arith.constant 1.000000e+00 : f32
    %241 = vector.broadcast %cst_54 : f32 to vector<256x4xf32>
    %242 = arith.addf %241, %240 : vector<256x4xf32>
    %243 = arith.divf %241, %242 : vector<256x4xf32>
    %244 = vector.shape_cast %243 : vector<256x4xf32> to vector<1x16x16x4xf32>
    %c0_55 = arith.constant 0 : index
    %c0_56 = arith.constant 0 : index
    %c0_57 = arith.constant 0 : index
    %c0_58 = arith.constant 0 : index
    %245 = vector.load %arg10[%c0_55, %c0_56, %c0_57, %c0_58] : memref<1x16x16x4xf32, #tpu.memory_space<vmem>>, vector<1x16x16x4xf32>
    tpu.vector_store %arg10[%c0_55, %c0_56, %c0_57, %c0_58], %244 {strides = array<i32>} : memref<1x16x16x4xf32, #tpu.memory_space<vmem>>, vector<1x16x16x4xf32>,
    return
  }
  func.func @transform_0(%arg0: i32) -> (i32, i32) {
    %c0_i32 = arith.constant 0 : i32
    %c0_i32_0 = arith.constant 0 : i32
    %c0_i32_1 = arith.constant 0 : i32
    return %c0_i32, %c0_i32_0 : i32, i32
  }
  func.func @transform_1(%arg0: i32) -> (i32, i32) {
    %c0_i32 = arith.constant 0 : i32
    %c0_i32_0 = arith.constant 0 : i32
    %c0_i32_1 = arith.constant 0 : i32
    return %c0_i32, %c0_i32_0 : i32, i32
  }
  func.func @transform_2(%arg0: i32) -> (i32, i32) {
    %c0_i32 = arith.constant 0 : i32
    %c0_i32_0 = arith.constant 0 : i32
    %c0_i32_1 = arith.constant 0 : i32
    return %c0_i32, %c0_i32_0 : i32, i32
  }
  func.func @transform_3(%arg0: i32) -> (i32, i32) {
    %c0_i32 = arith.constant 0 : i32
    %c0_i32_0 = arith.constant 0 : i32
    %c0_i32_1 = arith.constant 0 : i32
    return %c0_i32, %c0_i32_0 : i32, i32
  }
  func.func @transform_4(%arg0: i32) -> (i32, i32) {
    %c0_i32 = arith.constant 0 : i32
    %c0_i32_0 = arith.constant 0 : i32
    %c0_i32_1 = arith.constant 0 : i32
    return %c0_i32, %c0_i32_0 : i32, i32
  }
  func.func @transform_5(%arg0: i32) -> (i32, i32) {
    %c0_i32 = arith.constant 0 : i32
    %c0_i32_0 = arith.constant 0 : i32
    %c0_i32_1 = arith.constant 0 : i32
    return %c0_i32, %c0_i32_0 : i32, i32
  }
  func.func @transform_6(%arg0: i32) -> (i32, i32) {
    %c0_i32 = arith.constant 0 : i32
    %c0_i32_0 = arith.constant 0 : i32
    %c0_i32_1 = arith.constant 0 : i32
    return %c0_i32, %c0_i32_0 : i32, i32
  }
  func.func @transform_7(%arg0: i32) -> (i32, i32) {
    %c0_i32 = arith.constant 0 : i32
    %c0_i32_0 = arith.constant 0 : i32
    %c0_i32_1 = arith.constant 0 : i32
    return %c0_i32, %c0_i32_0 : i32, i32
  }
  func.func @transform_8(%arg0: i32) -> (i32, i32) {
    %c0_i32 = arith.constant 0 : i32
    %c0_i32_0 = arith.constant 0 : i32
    %c0_i32_1 = arith.constant 0 : i32
    return %c0_i32, %c0_i32_0 : i32, i32
  }
  func.func @transform_9(%arg0: i32) -> (i32, i32, i32, i32) {
    %c0_i32 = arith.constant 0 : i32
    %c0_i32_0 = arith.constant 0 : i32
    %c0_i32_1 = arith.constant 0 : i32
    %c0_i32_2 = arith.constant 0 : i32
    return %arg0, %c0_i32, %c0_i32_0, %c0_i32_1 : i32, i32, i32, i32
  }
}

</mosaic_0001>

<llo_original>
// kernel: decoder_forward.1
$region0: #{decoder_forward.1}
  #allocation0 [shape = 'u32[]', space=smem, size = 0x4, offset = 0x4, fixed_abs, tag = 'smem constant byte address 0x4 - core index']
  #allocation1 [shape = 'u32[72,128]{1,0:T(1,128)}', space=vmem, size = 0x9000, scoped, tag = 'internal scratch']
  %s0 = inlined_call_operand.vmem [shape: f32[2,32], index: 0, kind: input, shape index: {}]
  %s1 = inlined_call_operand.vmem [shape: f32[32,256], index: 1, kind: input, shape index: {}]
  %s2 = inlined_call_operand.vmem [shape: f32[1,256], index: 2, kind: input, shape index: {}]
  %s3 = inlined_call_operand.vmem [shape: f32[144,16], index: 3, kind: input, shape index: {}]
  %s4 = inlined_call_operand.vmem [shape: f32[1,16], index: 4, kind: input, shape index: {}]
  %s5 = inlined_call_operand.vmem [shape: f32[144,8], index: 5, kind: input, shape index: {}]
  %s6 = inlined_call_operand.vmem [shape: f32[1,8], index: 6, kind: input, shape index: {}]
  %s7 = inlined_call_operand.vmem [shape: f32[72,4], index: 7, kind: input, shape index: {}]
  %s8 = inlined_call_operand.vmem [shape: f32[1,4], index: 8, kind: input, shape index: {}]
  %s9 = inlined_call_operand.vmem [shape: f32[2,16,16,4], index: 9, kind: output, shape index: {}]
  %s10 = sld [smem:[#allocation0]]
  $region69: #{decoder_forward.1} parent=0
    _
  %s12 = ssub.s32 1, %s10
  %s13 = scalar_select 0, %s12, %s10
  loop: start=0, step=1, limit=4
  $region2: #{decoder_forward.1} parent=0 // loop_pre_header
    _
  $region3: #{decoder_forward.1} parent=0 // loop_header
    %s15 = sphi 0, %s19
    %p16 = scmp.ge.s32.totalorder %s15, 4
    %s23 = sphi 0, %s23
    %s25 = sphi 0, %s23
    %s26 = sphi 0, %s25
    %s40 = sphi 0, %s26
    %s44 = sphi 0, %s44
    %s46 = sphi 0, %s44
    %s47 = sphi 0, %s46
    %s61 = sphi 0, %s47
    %s65 = sphi 0, %s65
    %s67 = sphi 0, %s65
    %s68 = sphi 0, %s67
    %s82 = sphi 0, %s68
    %s86 = sphi 0, %s86
    %s88 = sphi 0, %s86
    %s89 = sphi 0, %s88
    %s103 = sphi 0, %s89
    %s107 = sphi 0, %s107
    %s109 = sphi 0, %s107
    %s110 = sphi 0, %s109
    %s124 = sphi 0, %s110
    %s128 = sphi 0, %s128
    %s130 = sphi 0, %s128
    %s131 = sphi 0, %s130
    %s145 = sphi 0, %s131
    %s149 = sphi 0, %s149
    %s151 = sphi 0, %s149
    %s152 = sphi 0, %s151
    %s166 = sphi 0, %s152
    %s170 = sphi 0, %s170
    %s172 = sphi 0, %s170
    %s173 = sphi 0, %s172
    %s187 = sphi 0, %s173
    %s191 = sphi 0, %s191
    %s193 = sphi 0, %s191
    %s194 = sphi 0, %s193
    %s208 = sphi 0, %s194
    %s214 = sphi 0, %s216
    %s217 = sphi 0, %s214
    %s218 = sphi 0, %s217
    %s234 = sphi 0, %s218
  $region4: #{decoder_forward.1} parent=0 // loop_header_branch
    %18 = sbr.rel (%p16) target = $region8
  $region5: #{decoder_forward.1} parent=0 // loop_body
    %s20 = ssub.s32 %s15, 1
    %s21 = ssub.s32 %s15, 2
    %s22 = sadd.s32 %s15, 1
    %s24 = sadd.s32 %s23, 1
    %p27 = scmp.eq.s32.totalorder %s15, 1
    %p28 = scmp.ne.s32.totalorder %s23, %s25
    %p29 = scmp.eq.s32.totalorder %s15, 0
    %p30 = por %p28, %p29
    %p31 = scmp.ne.s32.totalorder %s23, %s25
    %p32 = scmp.eq.s32.totalorder %s20, 1
    %p33 = por %p31, %p32
    %p34 = scmp.ne.s32.totalorder %s25, %s26
    %p35 = scmp.eq.s32.totalorder %s20, 0
    %p36 = por %p34, %p35
    %p37 = scmp.ne.s32.totalorder %s25, %s26
    %p38 = scmp.eq.s32.totalorder %s21, 1
    %p39 = por %p37, %p38
    %p41 = scmp.ne.s32.totalorder %s26, %s40
    %p42 = scmp.eq.s32.totalorder %s21, 0
    %p43 = por %p41, %p42
    %s45 = sadd.s32 %s44, 1
    %p48 = scmp.eq.s32.totalorder %s15, 1
    %p49 = scmp.ne.s32.totalorder %s44, %s46
    %p50 = scmp.eq.s32.totalorder %s15, 0
    %p51 = por %p49, %p50
    %p52 = scmp.ne.s32.totalorder %s44, %s46
    %p53 = scmp.eq.s32.totalorder %s20, 1
    %p54 = por %p52, %p53
    %p55 = scmp.ne.s32.totalorder %s46, %s47
    %p56 = scmp.eq.s32.totalorder %s20, 0
    %p57 = por %p55, %p56
    %p58 = scmp.ne.s32.totalorder %s46, %s47
    %p59 = scmp.eq.s32.totalorder %s21, 1
    %p60 = por %p58, %p59
    %p62 = scmp.ne.s32.totalorder %s47, %s61
    %p63 = scmp.eq.s32.totalorder %s21, 0
    %p64 = por %p62, %p63
    %s66 = sadd.s32 %s65, 1
    %p69 = scmp.eq.s32.totalorder %s15, 1
    %p70 = scmp.ne.s32.totalorder %s65, %s67
    %p71 = scmp.eq.s32.totalorder %s15, 0
    %p72 = por %p70, %p71
    %p73 = scmp.ne.s32.totalorder %s65, %s67
    %p74 = scmp.eq.s32.totalorder %s20, 1
    %p75 = por %p73, %p74
    %p76 = scmp.ne.s32.totalorder %s67, %s68
    %p77 = scmp.eq.s32.totalorder %s20, 0
    %p78 = por %p76, %p77
    %p79 = scmp.ne.s32.totalorder %s67, %s68
    %p80 = scmp.eq.s32.totalorder %s21, 1
    %p81 = por %p79, %p80
    %p83 = scmp.ne.s32.totalorder %s68, %s82
    %p84 = scmp.eq.s32.totalorder %s21, 0
    %p85 = por %p83, %p84
    %s87 = sadd.s32 %s86, 1
    %p90 = scmp.eq.s32.totalorder %s15, 1
    %p91 = scmp.ne.s32.totalorder %s86, %s88
    %p92 = scmp.eq.s32.totalorder %s15, 0
    %p93 = por %p91, %p92
    %p94 = scmp.ne.s32.totalorder %s86, %s88
    %p95 = scmp.eq.s32.totalorder %s20, 1
    %p96 = por %p94, %p95
    %p97 = scmp.ne.s32.totalorder %s88, %s89
    %p98 = scmp.eq.s32.totalorder %s20, 0
    %p99 = por %p97, %p98
    %p100 = scmp.ne.s32.totalorder %s88, %s89
    %p101 = scmp.eq.s32.totalorder %s21, 1
    %p102 = por %p100, %p101
    %p104 = scmp.ne.s32.totalorder %s89, %s103
    %p105 = scmp.eq.s32.totalorder %s21, 0
    %p106 = por %p104, %p105
    %s108 = sadd.s32 %s107, 1
    %p111 = scmp.eq.s32.totalorder %s15, 1
    %p112 = scmp.ne.s32.totalorder %s107, %s109
    %p113 = scmp.eq.s32.totalorder %s15, 0
    %p114 = por %p112, %p113
    %p115 = scmp.ne.s32.totalorder %s107, %s109
    %p116 = scmp.eq.s32.totalorder %s20, 1
    %p117 = por %p115, %p116
    %p118 = scmp.ne.s32.totalorder %s109, %s110
    %p119 = scmp.eq.s32.totalorder %s20, 0
    %p120 = por %p118, %p119
    %p121 = scmp.ne.s32.totalorder %s109, %s110
    %p122 = scmp.eq.s32.totalorder %s21, 1
    %p123 = por %p121, %p122
    %p125 = scmp.ne.s32.totalorder %s110, %s124
    %p126 = scmp.eq.s32.totalorder %s21, 0
    %p127 = por %p125, %p126
    %s129 = sadd.s32 %s128, 1
    %p132 = scmp.eq.s32.totalorder %s15, 1
    %p133 = scmp.ne.s32.totalorder %s128, %s130
    %p134 = scmp.eq.s32.totalorder %s15, 0
    %p135 = por %p133, %p134
    %p136 = scmp.ne.s32.totalorder %s128, %s130
    %p137 = scmp.eq.s32.totalorder %s20, 1
    %p138 = por %p136, %p137
    %p139 = scmp.ne.s32.totalorder %s130, %s131
    %p140 = scmp.eq.s32.totalorder %s20, 0
    %p141 = por %p139, %p140
    %p142 = scmp.ne.s32.totalorder %s130, %s131
    %p143 = scmp.eq.s32.totalorder %s21, 1
    %p144 = por %p142, %p143
    %p146 = scmp.ne.s32.totalorder %s131, %s145
    %p147 = scmp.eq.s32.totalorder %s21, 0
    %p148 = por %p146, %p147
    %s150 = sadd.s32 %s149, 1
    %p153 = scmp.eq.s32.totalorder %s15, 1
    %p154 = scmp.ne.s32.totalorder %s149, %s151
    %p155 = scmp.eq.s32.totalorder %s15, 0
    %p156 = por %p154, %p155
    %p157 = scmp.ne.s32.totalorder %s149, %s151
    %p158 = scmp.eq.s32.totalorder %s20, 1
    %p159 = por %p157, %p158
    %p160 = scmp.ne.s32.totalorder %s151, %s152
    %p161 = scmp.eq.s32.totalorder %s20, 0
    %p162 = por %p160, %p161
    %p163 = scmp.ne.s32.totalorder %s151, %s152
    %p164 = scmp.eq.s32.totalorder %s21, 1
    %p165 = por %p163, %p164
    %p167 = scmp.ne.s32.totalorder %s152, %s166
    %p168 = scmp.eq.s32.totalorder %s21, 0
    %p169 = por %p167, %p168
    %s171 = sadd.s32 %s170, 1
    %p174 = scmp.eq.s32.totalorder %s15, 1
    %p175 = scmp.ne.s32.totalorder %s170, %s172
    %p176 = scmp.eq.s32.totalorder %s15, 0
    %p177 = por %p175, %p176
    %p178 = scmp.ne.s32.totalorder %s170, %s172
    %p179 = scmp.eq.s32.totalorder %s20, 1
    %p180 = por %p178, %p179
    %p181 = scmp.ne.s32.totalorder %s172, %s173
    %p182 = scmp.eq.s32.totalorder %s20, 0
    %p183 = por %p181, %p182
    %p184 = scmp.ne.s32.totalorder %s172, %s173
    %p185 = scmp.eq.s32.totalorder %s21, 1
    %p186 = por %p184, %p185
    %p188 = scmp.ne.s32.totalorder %s173, %s187
    %p189 = scmp.eq.s32.totalorder %s21, 0
    %p190 = por %p188, %p189
    %s192 = sadd.s32 %s191, 1
    %p195 = scmp.eq.s32.totalorder %s15, 1
    %p196 = scmp.ne.s32.totalorder %s191, %s193
    %p197 = scmp.eq.s32.totalorder %s15, 0
    %p198 = por %p196, %p197
    %p199 = scmp.ne.s32.totalorder %s191, %s193
    %p200 = scmp.eq.s32.totalorder %s20, 1
    %p201 = por %p199, %p200
    %p202 = scmp.ne.s32.totalorder %s193, %s194
    %p203 = scmp.eq.s32.totalorder %s20, 0
    %p204 = por %p202, %p203
    %p205 = scmp.ne.s32.totalorder %s193, %s194
    %p206 = scmp.eq.s32.totalorder %s21, 1
    %p207 = por %p205, %p206
    %p209 = scmp.ne.s32.totalorder %s194, %s208
    %p210 = scmp.eq.s32.totalorder %s21, 0
    %p211 = por %p209, %p210
    %s212 = ssub.s32 %s15, %s22
    %p213 = scmp.eq.s32.totalorder %s212, 0
    %s215 = sadd.s32 %s214, 1
    %s216 = scalar_select %p213, %s214, %s215
    %p219 = pneg %p213
    %p220 = scmp.eq.s32.totalorder %s15, 1
    %p221 = por %p219, %p220
    %p222 = scmp.ne.s32.totalorder %s214, %s217
    %p223 = scmp.eq.s32.totalorder %s15, 0
    %p224 = por %p222, %p223
    %p225 = scmp.ne.s32.totalorder %s214, %s217
    %p226 = scmp.eq.s32.totalorder %s20, 1
    %p227 = por %p225, %p226
    %p228 = scmp.ne.s32.totalorder %s217, %s218
    %p229 = scmp.eq.s32.totalorder %s20, 0
    %p230 = por %p228, %p229
    %p231 = scmp.ne.s32.totalorder %s217, %s218
    %p232 = scmp.eq.s32.totalorder %s21, 1
    %p233 = por %p231, %p232
    %p235 = scmp.ne.s32.totalorder %s218, %s234
    %p236 = scmp.eq.s32.totalorder %s21, 0
    %p237 = por %p235, %p236
    %p238 = scmp.le.s32.totalorder 1, %s15
    %p239 = scmp.lt.s32.totalorder %s15, 3
    %p240 = pnand %p238, %p239
    %p241 = pneg %p240
    // Predicated region
    $region9: #{decoder_forward.1} parent=5 // pred_check
      _
    $region10: #{decoder_forward.1} parent=5 // pred_check_branch
      %243 = sbr.rel (%p240) target = $region12
    $region11: #{decoder_forward.1} parent=5 // pred_region
      %s244 = ssub.s32 %s15, 1
      // Predicated region
      $region13: #{decoder_forward.1} parent=11 // pred_check
        %p245 = pneg %p36
      $region14: #{decoder_forward.1} parent=11 // pred_check_branch
        %247 = sbr.rel (%p245) target = $region16
      $region15: #{decoder_forward.1} parent=11 // pred_region
        _
      $region16: #{decoder_forward.1} parent=11 // pred_fallthru
        _
      // Predicated region
      $region17: #{decoder_forward.1} parent=11 // pred_check
        %p248 = pneg %p57
      $region18: #{decoder_forward.1} parent=11 // pred_check_branch
        %250 = sbr.rel (%p248) target = $region20
      $region19: #{decoder_forward.1} parent=11 // pred_region
        _
      $region20: #{decoder_forward.1} parent=11 // pred_fallthru
        _
      // Predicated region
      $region21: #{decoder_forward.1} parent=11 // pred_check
        %p251 = pneg %p78
      $region22: #{decoder_forward.1} parent=11 // pred_check_branch
        %253 = sbr.rel (%p251) target = $region24
      $region23: #{decoder_forward.1} parent=11 // pred_region
        _
      $region24: #{decoder_forward.1} parent=11 // pred_fallthru
        _
      // Predicated region
      $region25: #{decoder_forward.1} parent=11 // pred_check
        %p254 = pneg %p99
      $region26: #{decoder_forward.1} parent=11 // pred_check_branch
        %256 = sbr.rel (%p254) target = $region28
      $region27: #{decoder_forward.1} parent=11 // pred_region
        _
      $region28: #{decoder_forward.1} parent=11 // pred_fallthru
        _
      // Predicated region
      $region29: #{decoder_forward.1} parent=11 // pred_check
        %p257 = pneg %p120
      $region30: #{decoder_forward.1} parent=11 // pred_check_branch
        %259 = sbr.rel (%p257) target = $region32
      $region31: #{decoder_forward.1} parent=11 // pred_region
        _
      $region32: #{decoder_forward.1} parent=11 // pred_fallthru
        _
      // Predicated region
      $region33: #{decoder_forward.1} parent=11 // pred_check
        %p260 = pneg %p141
      $region34: #{decoder_forward.1} parent=11 // pred_check_branch
        %262 = sbr.rel (%p260) target = $region36
      $region35: #{decoder_forward.1} parent=11 // pred_region
        _
      $region36: #{decoder_forward.1} parent=11 // pred_fallthru
        _
      // Predicated region
      $region37: #{decoder_forward.1} parent=11 // pred_check
        %p263 = pneg %p162
      $region38: #{decoder_forward.1} parent=11 // pred_check_branch
        %265 = sbr.rel (%p263) target = $region40
      $region39: #{decoder_forward.1} parent=11 // pred_region
        _
      $region40: #{decoder_forward.1} parent=11 // pred_fallthru
        _
      // Predicated region
      $region41: #{decoder_forward.1} parent=11 // pred_check
        %p266 = pneg %p183
      $region42: #{decoder_forward.1} parent=11 // pred_check_branch
        %268 = sbr.rel (%p266) target = $region44
      $region43: #{decoder_forward.1} parent=11 // pred_region
        _
      $region44: #{decoder_forward.1} parent=11 // pred_fallthru
        _
      // Predicated region
      $region45: #{decoder_forward.1} parent=11 // pred_check
        %p269 = pneg %p204
      $region46: #{decoder_forward.1} parent=11 // pred_check_branch
        %271 = sbr.rel (%p269) target = $region48
      $region47: #{decoder_forward.1} parent=11 // pred_region
        _
      $region48: #{decoder_forward.1} parent=11 // pred_fallthru
        _
    $region12: #{decoder_forward.1} parent=5 // pred_fallthru
      _
    %p272 = scmp.lt.s32.totalorder %s15, 2
    // Predicated region
    $region49: #{decoder_forward.1} parent=5 // pred_check
      %p273 = pneg %p272
    $region50: #{decoder_forward.1} parent=5 // pred_check_branch
      %275 = sbr.rel (%p273) target = $region52
    $region51: #{decoder_forward.1} parent=5 // pred_region
      _
    $region52: #{decoder_forward.1} parent=5 // pred_fallthru
      _
    %p276 = scmp.le.s32.totalorder 1, %s15
    %p277 = scmp.lt.s32.totalorder %s15, 3
    %p278 = pnand %p276, %p277
    %p279 = pneg %p278
    // Predicated region
    $region53: #{decoder_forward.1} parent=5 // pred_check
      _
    $region54: #{decoder_forward.1} parent=5 // pred_check_branch
      %281 = sbr.rel (%p278) target = $region56
    $region55: #{decoder_forward.1} parent=5 // pred_region
      %s282 = ssub.s32 %s15, 1
      %p283 = pneg %p36
      %p284 = pneg %p33
      %p285 = pneg %p57
      %p286 = pneg %p54
      %p287 = pneg %p78
      %p288 = pneg %p75
      %p289 = pneg %p99
      %p290 = pneg %p96
      %p291 = pneg %p120
      %p292 = pneg %p117
      %p293 = pneg %p141
      %p294 = pneg %p138
      %p295 = pneg %p162
      %p296 = pneg %p159
      %p297 = pneg %p183
      %p298 = pneg %p180
      %p299 = pneg %p204
      %p300 = pneg %p201
      %p301 = pneg %p230
      %p302 = pneg %p227
      %p303 = scmp.lt.s32.totalorder %s20, 1
      %s304 = scalar_select %p303, %s20, 1
      %s305 = smul.addr %s304, 32
      %s306 = smul.addr %s305, 8
      %s307 = scalar_lea.vmem %s9, %s306
      %p308 = scmp.lt.s32.totalorder %s20, 1
      %s309 = scalar_select %p308, %s20, 1
      %s310 = smul.addr %s309, 32
      %s311 = smul.addr %s310, 8
      %s312 = scalar_lea.vmem %s9, %s311
      %s313 = scalar_lea.vmem %s0, %s20
      %v314 = vld [vmem:[%s313] sm:$0x1]
      %v315 = vld [vmem:[%s1] sm:$0xff]
      %v316 = vld [vmem:[%s1 + $0x8] sm:$0xff]
      %v317 = vld [vmem:[%s1 + $0x10] sm:$0xff]
      %v318 = vld [vmem:[%s1 + $0x18] sm:$0xff]
      %v319 = vld [vmem:[%s1 + $0x20] sm:$0xff]
      %v320 = vld [vmem:[%s1 + $0x28] sm:$0xff]
      %v321 = vld [vmem:[%s1 + $0x30] sm:$0xff]
      %v322 = vld [vmem:[%s1 + $0x38] sm:$0xff]
      %v323 = vld [vmem:[%s2] sm:$0x3]
      %v325 = vperm.slane %v323, 0
      %v326 = vperm.slane %v323, 1
      %vm329 = vcmask 261120
      %v331 = vsel %vm329, %v314, 0
      %333 = vmatpush.msra.mxu0 0.0
      %334 = vmatpush.msra.mxu0 0.0
      %335 = vmatpush.msra.mxu0 0.0
      %336 = vmatpush.msra.mxu0 0.0
      %337 = vmatpush.msra.mxu0 0.0
      %338 = vmatpush.msra.mxu0 0.0
      %339 = vmatpush.msra.mxu0 0.0
      %340 = vmatpush.msra.mxu0 0.0
      %341 = vmatpush.msra.mxu0 0.0
      %342 = vmatpush.msra.mxu0 0.0
      %343 = vmatpush.msra.mxu0 0.0
      %344 = vmatpush.msra.mxu0 0.0
      %345 = vmatpush.msra.mxu0 %v321
      %346 = vmatpush.msra.mxu0 %v319
      %347 = vmatpush.msra.mxu0 %v317
      %348 = vmatpush.msra.mxu0 %v315
      %349 = vmatmul.f32.gmra.mxu0 %v331
      %v350 = vpop.f32.mrf.mxu0
      %v351 = vadd.f32 %v325, %v350
      %352 = vdwg.mxu0
      %353 = vmatpush.msra.mxu0 0.0
      %354 = vmatpush.msra.mxu0 0.0
      %355 = vmatpush.msra.mxu0 0.0
      %356 = vmatpush.msra.mxu0 0.0
      %357 = vmatpush.msra.mxu0 0.0
      %358 = vmatpush.msra.mxu0 0.0
      %359 = vmatpush.msra.mxu0 0.0
      %360 = vmatpush.msra.mxu0 0.0
      %361 = vmatpush.msra.mxu0 0.0
      %362 = vmatpush.msra.mxu0 0.0
      %363 = vmatpush.msra.mxu0 0.0
      %364 = vmatpush.msra.mxu0 0.0
      %365 = vmatpush.msra.mxu0 %v322
      %366 = vmatpush.msra.mxu0 %v320
      %367 = vmatpush.msra.mxu0 %v318
      %368 = vmatpush.msra.mxu0 %v316
      %369 = vmatmul.f32.gmra.mxu0 %v331
      %v370 = vpop.f32.mrf.mxu0
      %v371 = vadd.f32 %v326, %v370
      %372 = vdwg.mxu0
      %v374 = vrot.slane %v351, 7
      %375 = vrot.lane.b32.xlu0 %v374, 112
      %v376 = vpop.permute.xlu0 %375
      %v378 = vrot.slane %v351, 6
      %379 = vrot.lane.b32.xlu0 %v378, 96
      %v380 = vpop.permute.xlu0 %379
      %v382 = vrot.slane %v351, 5
      %383 = vrot.lane.b32.xlu0 %v382, 80
      %v384 = vpop.permute.xlu0 %383
      %vm386 = vcmask 1040384
      %v387 = vsel %vm386, %v351, %v376
      %vm388 = vcmask 1041408
      %v389 = vsel %vm388, %v387, %v380
      %vm390 = vcmask 1042432
      %v391 = vsel %vm390, %v389, %v384
      %v393 = vrot.slane %v371, 7
      %394 = vrot.lane.b32.xlu0 %v393, 112
      %v395 = vpop.permute.xlu0 %394
      %v397 = vrot.slane %v371, 6
      %398 = vrot.lane.b32.xlu0 %v397, 96
      %v399 = vpop.permute.xlu0 %398
      %v401 = vrot.slane %v371, 5
      %402 = vrot.lane.b32.xlu0 %v401, 80
      %v403 = vpop.permute.xlu0 %402
      %v405 = vsel %vm386, %v371, %v395
      %v406 = vsel %vm388, %v405, %v399
      %v407 = vsel %vm390, %v406, %v403
      %409 = vrot.lane.b32.xlu0 %v391, 64
      %v410 = vpop.permute.xlu0 %409
      %412 = vrot.lane.b32.xlu0 %v407, 64
      %v413 = vpop.permute.xlu0 %412
      %v414 = vld [vmem:[%s3] sm:$0xff]
      %v415 = vld [vmem:[%s3 + $0x8] sm:$0xff]
      %v416 = vld [vmem:[%s3 + $0x10] sm:$0xff]
      %v417 = vld [vmem:[%s3 + $0x18] sm:$0xff]
      %v418 = vld [vmem:[%s3 + $0x20] sm:$0xff]
      %v419 = vld [vmem:[%s3 + $0x28] sm:$0xff]
      %v420 = vld [vmem:[%s3 + $0x30] sm:$0xff]
      %v421 = vld [vmem:[%s3 + $0x38] sm:$0xff]
      %v422 = vld [vmem:[%s3 + $0x40] sm:$0xff]
      %v423 = vld [vmem:[%s3 + $0x48] sm:$0xff]
      %v424 = vld [vmem:[%s3 + $0x50] sm:$0xff]
      %v425 = vld [vmem:[%s3 + $0x58] sm:$0xff]
      %v426 = vld [vmem:[%s3 + $0x60] sm:$0xff]
      %v427 = vld [vmem:[%s3 + $0x68] sm:$0xff]
      %v428 = vld [vmem:[%s3 + $0x70] sm:$0xff]
      %v429 = vld [vmem:[%s3 + $0x78] sm:$0xff]
      %v430 = vld [vmem:[%s3 + $0x80] sm:$0xff]
      %v431 = vld [vmem:[%s3 + $0x88] sm:$0xff]
      %v432 = vld [vmem:[%s4] sm:$0x1]
      %v433 = vrot.slane %v391, 7
      %v434 = vrot.slane %v410, 7
      %v435 = vrot.slane %v407, 7
      %v436 = vrot.slane %v413, 7
      %v441 = vrot.slane %v391, 6
      %v442 = vrot.slane %v410, 6
      %v443 = vrot.slane %v407, 6
      %v444 = vrot.slane %v413, 6
      %v449 = vrot.slane %v391, 5
      %v450 = vrot.slane %v410, 5
      %v451 = vrot.slane %v407, 5
      %v452 = vrot.slane %v413, 5
      %v457 = vrot.slane %v391, 4
      %v458 = vrot.slane %v410, 4
      %v459 = vrot.slane %v407, 4
      %v460 = vrot.slane %v413, 4
      %v465 = vsel %vm386, 0.0, %v433
      %v466 = vsel %vm386, 0.0, %v434
      %v467 = vsel %vm386, 0.0, %v435
      %v468 = vsel %vm386, 0.0, %v436
      %v469 = vsel %vm388, %v465, 0.0
      %v470 = vsel %vm388, %v466, 0.0
      %v471 = vsel %vm388, %v467, 0.0
      %v472 = vsel %vm388, %v468, 0.0
      %v473 = vsel %vm390, %v469, %v441
      %v474 = vsel %vm390, %v470, %v442
      %v475 = vsel %vm390, %v471, %v443
      %v476 = vsel %vm390, %v472, %v444
      %vm477 = vcmask 1043456
      %v478 = vsel %vm477, %v473, 0.0
      %v479 = vsel %vm477, %v474, 0.0
      %v480 = vsel %vm477, %v475, 0.0
      %v481 = vsel %vm477, %v476, 0.0
      %vm482 = vcmask 1044480
      %v483 = vsel %vm482, %v478, %v449
      %v484 = vsel %vm482, %v479, %v450
      %v485 = vsel %vm482, %v480, %v451
      %v486 = vsel %vm482, %v481, %v452
      %vm487 = vcmask 1045504
      %v488 = vsel %vm487, %v483, 0.0
      %v489 = vsel %vm487, %v484, 0.0
      %v490 = vsel %vm487, %v485, 0.0
      %v491 = vsel %vm487, %v486, 0.0
      %vm492 = vcmask 1046528
      %v493 = vsel %vm492, %v488, %v457
      %v494 = vsel %vm492, %v489, %v458
      %v495 = vsel %vm492, %v490, %v459
      %v496 = vsel %vm492, %v491, %v460
      %v502 = vrot.slane 0.0, 1
      %v503 = vsel %vm492, %v502, %v502
      %v504 = vrot.slane %v493, 1
      %v505 = vsel %vm492, %v504, %v502
      %v506 = vrot.slane %v494, 1
      %v507 = vsel %vm492, %v506, %v502
      %v508 = vrot.slane %v495, 1
      %v509 = vsel %vm492, %v508, %v502
      %v510 = vrot.slane %v496, 1
      %v511 = vsel %vm492, %v510, %v502
      %vm512 = vcmask 130048
      %v513 = vsel %vm512, %v503, 0
      %v515 = vsel %vm512, %v505, 0
      %v517 = vsel %vm512, %v507, 0
      %v519 = vsel %vm512, %v509, 0
      %v521 = vsel %vm512, %v511, 0
      %523 = vmatpush.msra.mxu0 0.0
      %524 = vmatpush.msra.mxu0 0.0
      %525 = vmatpush.msra.mxu0 0.0
      %526 = vmatpush.msra.mxu0 0.0
      %527 = vmatpush.msra.mxu0 0.0
      %528 = vmatpush.msra.mxu0 0.0
      %529 = vmatpush.msra.mxu0 0.0
      %530 = vmatpush.msra.mxu0 0.0
      %531 = vmatpush.msra.mxu0 0.0
      %532 = vmatpush.msra.mxu0 0.0
      %533 = vmatpush.msra.mxu0 0.0
      %534 = vmatpush.msra.mxu0 0.0
      %535 = vmatpush.msra.mxu0 0.0
      %536 = vmatpush.msra.mxu0 0.0
      %537 = vmatpush.msra.mxu0 %v417
      %538 = vmatpush.msra.mxu0 %v416
      %539 = vmatmul.f32.gmra.mxu0 %v513
      %v540 = vpop.f32.mrf.mxu0
      %v541 = vadd.f32 0.0, %v540
      %542 = vmatmul.f32.gmra.mxu0 %v515
      %v543 = vpop.f32.mrf.mxu0
      %v544 = vadd.f32 0.0, %v543
      %545 = vmatmul.f32.gmra.mxu0 %v513
      %v546 = vpop.f32.mrf.mxu0
      %v547 = vadd.f32 0.0, %v546
      %548 = vmatmul.f32.gmra.mxu0 %v517
      %v549 = vpop.f32.mrf.mxu0
      %v550 = vadd.f32 0.0, %v549
      %551 = vmatmul.f32.gmra.mxu0 %v513
      %v552 = vpop.f32.mrf.mxu0
      %v553 = vadd.f32 0.0, %v552
      %554 = vmatmul.f32.gmra.mxu0 %v519
      %v555 = vpop.f32.mrf.mxu0
      %v556 = vadd.f32 0.0, %v555
      %557 = vmatmul.f32.gmra.mxu0 %v513
      %v558 = vpop.f32.mrf.mxu0
      %v559 = vadd.f32 0.0, %v558
      %560 = vmatmul.f32.gmra.mxu0 %v521
      %v561 = vpop.f32.mrf.mxu0
      %v562 = vadd.f32 0.0, %v561
      %563 = vdwg.mxu0
      %v564 = vsel %vm512, 0.0, 0
      %v566 = vsel %vm512, %v493, 0
      %v568 = vsel %vm512, %v494, 0
      %v570 = vsel %vm512, %v495, 0
      %v572 = vsel %vm512, %v496, 0
      %574 = vmatpush.msra.mxu0 0.0
      %575 = vmatpush.msra.mxu0 0.0
      %576 = vmatpush.msra.mxu0 0.0
      %577 = vmatpush.msra.mxu0 0.0
      %578 = vmatpush.msra.mxu0 0.0
      %579 = vmatpush.msra.mxu0 0.0
      %580 = vmatpush.msra.mxu0 0.0
      %581 = vmatpush.msra.mxu0 0.0
      %582 = vmatpush.msra.mxu0 0.0
      %583 = vmatpush.msra.mxu0 0.0
      %584 = vmatpush.msra.mxu0 0.0
      %585 = vmatpush.msra.mxu0 0.0
      %586 = vmatpush.msra.mxu0 0.0
      %587 = vmatpush.msra.mxu0 0.0
      %588 = vmatpush.msra.mxu0 %v415
      %589 = vmatpush.msra.mxu0 %v414
      %590 = vmatmul.f32.gmra.mxu0 %v564
      %v591 = vpop.f32.mrf.mxu0
      %v592 = vadd.f32 %v541, %v591
      %593 = vmatmul.f32.gmra.mxu0 %v566
      %v594 = vpop.f32.mrf.mxu0
      %v595 = vadd.f32 %v544, %v594
      %596 = vmatmul.f32.gmra.mxu0 %v564
      %v597 = vpop.f32.mrf.mxu0
      %v598 = vadd.f32 %v547, %v597
      %599 = vmatmul.f32.gmra.mxu0 %v568
      %v600 = vpop.f32.mrf.mxu0
      %v601 = vadd.f32 %v550, %v600
      %602 = vmatmul.f32.gmra.mxu0 %v564
      %v603 = vpop.f32.mrf.mxu0
      %v604 = vadd.f32 %v553, %v603
      %605 = vmatmul.f32.gmra.mxu0 %v570
      %v606 = vpop.f32.mrf.mxu0
      %v607 = vadd.f32 %v556, %v606
      %608 = vmatmul.f32.gmra.mxu0 %v564
      %v609 = vpop.f32.mrf.mxu0
      %v610 = vadd.f32 %v559, %v609
      %611 = vmatmul.f32.gmra.mxu0 %v572
      %v612 = vpop.f32.mrf.mxu0
      %v613 = vadd.f32 %v562, %v612
      %614 = vdwg.mxu0
      %v615 = vrot.slane 0.0, 2
      %v616 = vsel %vm487, %v615, %v615
      %v617 = vrot.slane %v493, 2
      %v618 = vsel %vm487, %v617, %v615
      %v619 = vrot.slane %v494, 2
      %v620 = vsel %vm487, %v619, %v615
      %v621 = vrot.slane %v495, 2
      %v622 = vsel %vm487, %v621, %v615
      %v623 = vrot.slane %v496, 2
      %v624 = vsel %vm487, %v623, %v615
      %v625 = vsel %vm512, %v616, 0
      %v627 = vsel %vm512, %v618, 0
      %v629 = vsel %vm512, %v620, 0
      %v631 = vsel %vm512, %v622, 0
      %v633 = vsel %vm512, %v624, 0
      %635 = vmatpush.msra.mxu0 0.0
      %636 = vmatpush.msra.mxu0 0.0
      %637 = vmatpush.msra.mxu0 0.0
      %638 = vmatpush.msra.mxu0 0.0
      %639 = vmatpush.msra.mxu0 0.0
      %640 = vmatpush.msra.mxu0 0.0
      %641 = vmatpush.msra.mxu0 0.0
      %642 = vmatpush.msra.mxu0 0.0
      %643 = vmatpush.msra.mxu0 0.0
      %644 = vmatpush.msra.mxu0 0.0
      %645 = vmatpush.msra.mxu0 0.0
      %646 = vmatpush.msra.mxu0 0.0
      %647 = vmatpush.msra.mxu0 0.0
      %648 = vmatpush.msra.mxu0 0.0
      %649 = vmatpush.msra.mxu0 %v419
      %650 = vmatpush.msra.mxu0 %v418
      %651 = vmatmul.f32.gmra.mxu0 %v625
      %v652 = vpop.f32.mrf.mxu0
      %v653 = vadd.f32 0.0, %v652
      %654 = vmatmul.f32.gmra.mxu0 %v627
      %v655 = vpop.f32.mrf.mxu0
      %v656 = vadd.f32 0.0, %v655
      %657 = vmatmul.f32.gmra.mxu0 %v625
      %v658 = vpop.f32.mrf.mxu0
      %v659 = vadd.f32 0.0, %v658
      %660 = vmatmul.f32.gmra.mxu0 %v629
      %v661 = vpop.f32.mrf.mxu0
      %v662 = vadd.f32 0.0, %v661
      %663 = vmatmul.f32.gmra.mxu0 %v625
      %v664 = vpop.f32.mrf.mxu0
      %v665 = vadd.f32 0.0, %v664
      %666 = vmatmul.f32.gmra.mxu0 %v631
      %v667 = vpop.f32.mrf.mxu0
      %v668 = vadd.f32 0.0, %v667
      %669 = vmatmul.f32.gmra.mxu0 %v625
      %v670 = vpop.f32.mrf.mxu0
      %v671 = vadd.f32 0.0, %v670
      %672 = vmatmul.f32.gmra.mxu0 %v633
      %v673 = vpop.f32.mrf.mxu0
      %v674 = vadd.f32 0.0, %v673
      %675 = vdwg.mxu0
      %v676 = vadd.f32 %v592, %v653
      %v677 = vadd.f32 %v595, %v656
      %v678 = vadd.f32 %v598, %v659
      %v679 = vadd.f32 %v601, %v662
      %v680 = vadd.f32 %v604, %v665
      %v681 = vadd.f32 %v607, %v668
      %v682 = vadd.f32 %v610, %v671
      %v683 = vadd.f32 %v613, %v674
      %684 = vmatpush.msra.mxu0 0.0
      %685 = vmatpush.msra.mxu0 0.0
      %686 = vmatpush.msra.mxu0 0.0
      %687 = vmatpush.msra.mxu0 0.0
      %688 = vmatpush.msra.mxu0 0.0
      %689 = vmatpush.msra.mxu0 0.0
      %690 = vmatpush.msra.mxu0 0.0
      %691 = vmatpush.msra.mxu0 0.0
      %692 = vmatpush.msra.mxu0 0.0
      %693 = vmatpush.msra.mxu0 0.0
      %694 = vmatpush.msra.mxu0 0.0
      %695 = vmatpush.msra.mxu0 0.0
      %696 = vmatpush.msra.mxu0 0.0
      %697 = vmatpush.msra.mxu0 0.0
      %698 = vmatpush.msra.mxu0 %v421
      %699 = vmatpush.msra.mxu0 %v420
      %700 = vmatmul.f32.gmra.mxu0 %v566
      %v701 = vpop.f32.mrf.mxu0
      %v702 = vadd.f32 0.0, %v701
      %703 = vmatmul.f32.gmra.mxu0 %v564
      %v704 = vpop.f32.mrf.mxu0
      %v705 = vadd.f32 0.0, %v704
      %706 = vmatmul.f32.gmra.mxu0 %v568
      %v707 = vpop.f32.mrf.mxu0
      %v708 = vadd.f32 0.0, %v707
      %709 = vmatmul.f32.gmra.mxu0 %v564
      %v710 = vpop.f32.mrf.mxu0
      %v711 = vadd.f32 0.0, %v710
      %712 = vmatmul.f32.gmra.mxu0 %v570
      %v713 = vpop.f32.mrf.mxu0
      %v714 = vadd.f32 0.0, %v713
      %715 = vmatmul.f32.gmra.mxu0 %v564
      %v716 = vpop.f32.mrf.mxu0
      %v717 = vadd.f32 0.0, %v716
      %718 = vmatmul.f32.gmra.mxu0 %v572
      %v719 = vpop.f32.mrf.mxu0
      %v720 = vadd.f32 0.0, %v719
      %721 = vmatmul.f32.gmra.mxu0 %v564
      %v722 = vpop.f32.mrf.mxu0
      %v723 = vadd.f32 0.0, %v722
      %724 = vdwg.mxu0
      %v725 = vadd.f32 %v676, %v702
      %v726 = vadd.f32 %v677, %v705
      %v727 = vadd.f32 %v678, %v708
      %v728 = vadd.f32 %v679, %v711
      %v729 = vadd.f32 %v680, %v714
      %v730 = vadd.f32 %v681, %v717
      %v731 = vadd.f32 %v682, %v720
      %v732 = vadd.f32 %v683, %v723
      %733 = vmatpush.msra.mxu0 0.0
      %734 = vmatpush.msra.mxu0 0.0
      %735 = vmatpush.msra.mxu0 0.0
      %736 = vmatpush.msra.mxu0 0.0
      %737 = vmatpush.msra.mxu0 0.0
      %738 = vmatpush.msra.mxu0 0.0
      %739 = vmatpush.msra.mxu0 0.0
      %740 = vmatpush.msra.mxu0 0.0
      %741 = vmatpush.msra.mxu0 0.0
      %742 = vmatpush.msra.mxu0 0.0
      %743 = vmatpush.msra.mxu0 0.0
      %744 = vmatpush.msra.mxu0 0.0
      %745 = vmatpush.msra.mxu0 0.0
      %746 = vmatpush.msra.mxu0 0.0
      %747 = vmatpush.msra.mxu0 %v423
      %748 = vmatpush.msra.mxu0 %v422
      %749 = vmatmul.f32.gmra.mxu0 %v515
      %v750 = vpop.f32.mrf.mxu0
      %v751 = vadd.f32 0.0, %v750
      %752 = vmatmul.f32.gmra.mxu0 %v513
      %v753 = vpop.f32.mrf.mxu0
      %v754 = vadd.f32 0.0, %v753
      %755 = vmatmul.f32.gmra.mxu0 %v517
      %v756 = vpop.f32.mrf.mxu0
      %v757 = vadd.f32 0.0, %v756
      %758 = vmatmul.f32.gmra.mxu0 %v513
      %v759 = vpop.f32.mrf.mxu0
      %v760 = vadd.f32 0.0, %v759
      %761 = vmatmul.f32.gmra.mxu0 %v519
      %v762 = vpop.f32.mrf.mxu0
      %v763 = vadd.f32 0.0, %v762
      %764 = vmatmul.f32.gmra.mxu0 %v513
      %v765 = vpop.f32.mrf.mxu0
      %v766 = vadd.f32 0.0, %v765
      %767 = vmatmul.f32.gmra.mxu0 %v521
      %v768 = vpop.f32.mrf.mxu0
      %v769 = vadd.f32 0.0, %v768
      %770 = vmatmul.f32.gmra.mxu0 %v513
      %v771 = vpop.f32.mrf.mxu0
      %v772 = vadd.f32 0.0, %v771
      %773 = vdwg.mxu0
      %v774 = vadd.f32 %v725, %v751
      %v775 = vadd.f32 %v726, %v754
      %v776 = vadd.f32 %v727, %v757
      %v777 = vadd.f32 %v728, %v760
      %v778 = vadd.f32 %v729, %v763
      %v779 = vadd.f32 %v730, %v766
      %v780 = vadd.f32 %v731, %v769
      %v781 = vadd.f32 %v732, %v772
      %782 = vmatpush.msra.mxu0 0.0
      %783 = vmatpush.msra.mxu0 0.0
      %784 = vmatpush.msra.mxu0 0.0
      %785 = vmatpush.msra.mxu0 0.0
      %786 = vmatpush.msra.mxu0 0.0
      %787 = vmatpush.msra.mxu0 0.0
      %788 = vmatpush.msra.mxu0 0.0
      %789 = vmatpush.msra.mxu0 0.0
      %790 = vmatpush.msra.mxu0 0.0
      %791 = vmatpush.msra.mxu0 0.0
      %792 = vmatpush.msra.mxu0 0.0
      %793 = vmatpush.msra.mxu0 0.0
      %794 = vmatpush.msra.mxu0 0.0
      %795 = vmatpush.msra.mxu0 0.0
      %796 = vmatpush.msra.mxu0 %v425
      %797 = vmatpush.msra.mxu0 %v424
      %798 = vmatmul.f32.gmra.mxu0 %v627
      %v799 = vpop.f32.mrf.mxu0
      %v800 = vadd.f32 0.0, %v799
      %801 = vmatmul.f32.gmra.mxu0 %v625
      %v802 = vpop.f32.mrf.mxu0
      %v803 = vadd.f32 0.0, %v802
      %804 = vmatmul.f32.gmra.mxu0 %v629
      %v805 = vpop.f32.mrf.mxu0
      %v806 = vadd.f32 0.0, %v805
      %807 = vmatmul.f32.gmra.mxu0 %v625
      %v808 = vpop.f32.mrf.mxu0
      %v809 = vadd.f32 0.0, %v808
      %810 = vmatmul.f32.gmra.mxu0 %v631
      %v811 = vpop.f32.mrf.mxu0
      %v812 = vadd.f32 0.0, %v811
      %813 = vmatmul.f32.gmra.mxu0 %v625
      %v814 = vpop.f32.mrf.mxu0
      %v815 = vadd.f32 0.0, %v814
      %816 = vmatmul.f32.gmra.mxu0 %v633
      %v817 = vpop.f32.mrf.mxu0
      %v818 = vadd.f32 0.0, %v817
      %819 = vmatmul.f32.gmra.mxu0 %v625
      %v820 = vpop.f32.mrf.mxu0
      %v821 = vadd.f32 0.0, %v820
      %822 = vdwg.mxu0
      %v823 = vadd.f32 %v774, %v800
      %v824 = vadd.f32 %v775, %v803
      %v825 = vadd.f32 %v776, %v806
      %v826 = vadd.f32 %v777, %v809
      %v827 = vadd.f32 %v778, %v812
      %v828 = vadd.f32 %v779, %v815
      %v829 = vadd.f32 %v780, %v818
      %v830 = vadd.f32 %v781, %v821
      %831 = vmatpush.msra.mxu0 0.0
      %832 = vmatpush.msra.mxu0 0.0
      %833 = vmatpush.msra.mxu0 0.0
      %834 = vmatpush.msra.mxu0 0.0
      %835 = vmatpush.msra.mxu0 0.0
      %836 = vmatpush.msra.mxu0 0.0
      %837 = vmatpush.msra.mxu0 0.0
      %838 = vmatpush.msra.mxu0 0.0
      %839 = vmatpush.msra.mxu0 0.0
      %840 = vmatpush.msra.mxu0 0.0
      %841 = vmatpush.msra.mxu0 0.0
      %842 = vmatpush.msra.mxu0 0.0
      %843 = vmatpush.msra.mxu0 0.0
      %844 = vmatpush.msra.mxu0 0.0
      %845 = vmatpush.msra.mxu0 %v427
      %846 = vmatpush.msra.mxu0 %v426
      %847 = vmatmul.f32.gmra.mxu0 %v564
      %v848 = vpop.f32.mrf.mxu0
      %v849 = vadd.f32 0.0, %v848
      %850 = vmatmul.f32.gmra.mxu0 %v568
      %v851 = vpop.f32.mrf.mxu0
      %v852 = vadd.f32 0.0, %v851
      %853 = vmatmul.f32.gmra.mxu0 %v564
      %v854 = vpop.f32.mrf.mxu0
      %v855 = vadd.f32 0.0, %v854
      %856 = vmatmul.f32.gmra.mxu0 %v570
      %v857 = vpop.f32.mrf.mxu0
      %v858 = vadd.f32 0.0, %v857
      %859 = vmatmul.f32.gmra.mxu0 %v564
      %v860 = vpop.f32.mrf.mxu0
      %v861 = vadd.f32 0.0, %v860
      %862 = vmatmul.f32.gmra.mxu0 %v572
      %v863 = vpop.f32.mrf.mxu0
      %v864 = vadd.f32 0.0, %v863
      %865 = vmatmul.f32.gmra.mxu0 %v564
      %v866 = vpop.f32.mrf.mxu0
      %v867 = vadd.f32 0.0, %v866
      %868 = vmatmul.f32.gmra.mxu0 %v564
      %v869 = vpop.f32.mrf.mxu0
      %v870 = vadd.f32 0.0, %v869
      %871 = vdwg.mxu0
      %v872 = vadd.f32 %v823, %v849
      %v873 = vadd.f32 %v824, %v852
      %v874 = vadd.f32 %v825, %v855
      %v875 = vadd.f32 %v826, %v858
      %v876 = vadd.f32 %v827, %v861
      %v877 = vadd.f32 %v828, %v864
      %v878 = vadd.f32 %v829, %v867
      %v879 = vadd.f32 %v830, %v870
      %880 = vmatpush.msra.mxu0 0.0
      %881 = vmatpush.msra.mxu0 0.0
      %882 = vmatpush.msra.mxu0 0.0
      %883 = vmatpush.msra.mxu0 0.0
      %884 = vmatpush.msra.mxu0 0.0
      %885 = vmatpush.msra.mxu0 0.0
      %886 = vmatpush.msra.mxu0 0.0
      %887 = vmatpush.msra.mxu0 0.0
      %888 = vmatpush.msra.mxu0 0.0
      %889 = vmatpush.msra.mxu0 0.0
      %890 = vmatpush.msra.mxu0 0.0
      %891 = vmatpush.msra.mxu0 0.0
      %892 = vmatpush.msra.mxu0 0.0
      %893 = vmatpush.msra.mxu0 0.0
      %894 = vmatpush.msra.mxu0 %v429
      %895 = vmatpush.msra.mxu0 %v428
      %896 = vmatmul.f32.gmra.mxu0 %v513
      %v897 = vpop.f32.mrf.mxu0
      %v898 = vadd.f32 0.0, %v897
      %899 = vmatmul.f32.gmra.mxu0 %v517
      %v900 = vpop.f32.mrf.mxu0
      %v901 = vadd.f32 0.0, %v900
      %902 = vmatmul.f32.gmra.mxu0 %v513
      %v903 = vpop.f32.mrf.mxu0
      %v904 = vadd.f32 0.0, %v903
      %905 = vmatmul.f32.gmra.mxu0 %v519
      %v906 = vpop.f32.mrf.mxu0
      %v907 = vadd.f32 0.0, %v906
      %908 = vmatmul.f32.gmra.mxu0 %v513
      %v909 = vpop.f32.mrf.mxu0
      %v910 = vadd.f32 0.0, %v909
      %911 = vmatmul.f32.gmra.mxu0 %v521
      %v912 = vpop.f32.mrf.mxu0
      %v913 = vadd.f32 0.0, %v912
      %914 = vmatmul.f32.gmra.mxu0 %v513
      %v915 = vpop.f32.mrf.mxu0
      %v916 = vadd.f32 0.0, %v915
      %917 = vmatmul.f32.gmra.mxu0 %v513
      %v918 = vpop.f32.mrf.mxu0
      %v919 = vadd.f32 0.0, %v918
      %920 = vdwg.mxu0
      %v921 = vadd.f32 %v872, %v898
      %v922 = vadd.f32 %v873, %v901
      %v923 = vadd.f32 %v874, %v904
      %v924 = vadd.f32 %v875, %v907
      %v925 = vadd.f32 %v876, %v910
      %v926 = vadd.f32 %v877, %v913
      %v927 = vadd.f32 %v878, %v916
      %v928 = vadd.f32 %v879, %v919
      %929 = vmatpush.msra.mxu0 0.0
      %930 = vmatpush.msra.mxu0 0.0
      %931 = vmatpush.msra.mxu0 0.0
      %932 = vmatpush.msra.mxu0 0.0
      %933 = vmatpush.msra.mxu0 0.0
      %934 = vmatpush.msra.mxu0 0.0
      %935 = vmatpush.msra.mxu0 0.0
      %936 = vmatpush.msra.mxu0 0.0
      %937 = vmatpush.msra.mxu0 0.0
      %938 = vmatpush.msra.mxu0 0.0
      %939 = vmatpush.msra.mxu0 0.0
      %940 = vmatpush.msra.mxu0 0.0
      %941 = vmatpush.msra.mxu0 0.0
      %942 = vmatpush.msra.mxu0 0.0
      %943 = vmatpush.msra.mxu0 %v431
      %944 = vmatpush.msra.mxu0 %v430
      %945 = vmatmul.f32.gmra.mxu0 %v625
      %v946 = vpop.f32.mrf.mxu0
      %v947 = vadd.f32 0.0, %v946
      %948 = vmatmul.f32.gmra.mxu0 %v629
      %v949 = vpop.f32.mrf.mxu0
      %v950 = vadd.f32 0.0, %v949
      %951 = vmatmul.f32.gmra.mxu0 %v625
      %v952 = vpop.f32.mrf.mxu0
      %v953 = vadd.f32 0.0, %v952
      %954 = vmatmul.f32.gmra.mxu0 %v631
      %v955 = vpop.f32.mrf.mxu0
      %v956 = vadd.f32 0.0, %v955
      %957 = vmatmul.f32.gmra.mxu0 %v625
      %v958 = vpop.f32.mrf.mxu0
      %v959 = vadd.f32 0.0, %v958
      %960 = vmatmul.f32.gmra.mxu0 %v633
      %v961 = vpop.f32.mrf.mxu0
      %v962 = vadd.f32 0.0, %v961
      %963 = vmatmul.f32.gmra.mxu0 %v625
      %v964 = vpop.f32.mrf.mxu0
      %v965 = vadd.f32 0.0, %v964
      %966 = vmatmul.f32.gmra.mxu0 %v625
      %v967 = vpop.f32.mrf.mxu0
      %v968 = vadd.f32 0.0, %v967
      %969 = vdwg.mxu0
      %v970 = vadd.f32 %v921, %v947
      %v971 = vadd.f32 %v922, %v950
      %v972 = vadd.f32 %v923, %v953
      %v973 = vadd.f32 %v924, %v956
      %v974 = vadd.f32 %v925, %v959
      %v975 = vadd.f32 %v926, %v962
      %v976 = vadd.f32 %v927, %v965
      %v977 = vadd.f32 %v928, %v968
      %v979 = vperm.slane %v432, 0
      %v981 = vadd.f32 %v970, %v979
      %v982 = vadd.f32 %v971, %v979
      %v983 = vadd.f32 %v972, %v979
      %v984 = vadd.f32 %v973, %v979
      %v985 = vadd.f32 %v974, %v979
      %v986 = vadd.f32 %v975, %v979
      %v987 = vadd.f32 %v976, %v979
      %v988 = vadd.f32 %v977, %v979
      %v989 = vmax.f32 %v981, 0.0
      %v990 = vmax.f32 %v982, 0.0
      %v991 = vmax.f32 %v983, 0.0
      %v992 = vmax.f32 %v984, 0.0
      %v993 = vmax.f32 %v985, 0.0
      %v994 = vmax.f32 %v986, 0.0
      %v995 = vmax.f32 %v987, 0.0
      %v996 = vmax.f32 %v988, 0.0
      %v997 = vld [vmem:[%s5] sm:$0xff]
      %v998 = vld [vmem:[%s5 + $0x8] sm:$0xff]
      %v999 = vld [vmem:[%s5 + $0x10] sm:$0xff]
      %v1000 = vld [vmem:[%s5 + $0x18] sm:$0xff]
      %v1001 = vld [vmem:[%s5 + $0x20] sm:$0xff]
      %v1002 = vld [vmem:[%s5 + $0x28] sm:$0xff]
      %v1003 = vld [vmem:[%s5 + $0x30] sm:$0xff]
      %v1004 = vld [vmem:[%s5 + $0x38] sm:$0xff]
      %v1005 = vld [vmem:[%s5 + $0x40] sm:$0xff]
      %v1006 = vld [vmem:[%s5 + $0x48] sm:$0xff]
      %v1007 = vld [vmem:[%s5 + $0x50] sm:$0xff]
      %v1008 = vld [vmem:[%s5 + $0x58] sm:$0xff]
      %v1009 = vld [vmem:[%s5 + $0x60] sm:$0xff]
      %v1010 = vld [vmem:[%s5 + $0x68] sm:$0xff]
      %v1011 = vld [vmem:[%s5 + $0x70] sm:$0xff]
      %v1012 = vld [vmem:[%s5 + $0x78] sm:$0xff]
      %v1013 = vld [vmem:[%s5 + $0x80] sm:$0xff]
      %v1014 = vld [vmem:[%s5 + $0x88] sm:$0xff]
      %v1015 = vld [vmem:[%s6] sm:$0x1]
      %v1024 = vrot.slane %v989, 7
      %v1025 = vrot.slane %v990, 7
      %v1026 = vrot.slane %v991, 7
      %v1027 = vrot.slane %v992, 7
      %v1028 = vrot.slane %v993, 7
      %v1029 = vrot.slane %v994, 7
      %v1030 = vrot.slane %v995, 7
      %v1031 = vrot.slane %v996, 7
      %v1040 = vrot.slane %v989, 6
      %v1041 = vrot.slane %v990, 6
      %v1042 = vrot.slane %v991, 6
      %v1043 = vrot.slane %v992, 6
      %v1044 = vrot.slane %v993, 6
      %v1045 = vrot.slane %v994, 6
      %v1046 = vrot.slane %v995, 6
      %v1047 = vrot.slane %v996, 6
      %v1056 = vrot.slane %v989, 5
      %v1057 = vrot.slane %v990, 5
      %v1058 = vrot.slane %v991, 5
      %v1059 = vrot.slane %v992, 5
      %v1060 = vrot.slane %v993, 5
      %v1061 = vrot.slane %v994, 5
      %v1062 = vrot.slane %v995, 5
      %v1063 = vrot.slane %v996, 5
      %v1072 = vrot.slane %v989, 4
      %v1073 = vrot.slane %v990, 4
      %v1074 = vrot.slane %v991, 4
      %v1075 = vrot.slane %v992, 4
      %v1076 = vrot.slane %v993, 4
      %v1077 = vrot.slane %v994, 4
      %v1078 = vrot.slane %v995, 4
      %v1079 = vrot.slane %v996, 4
      %v1088 = vrot.slane %v989, 3
      %v1089 = vrot.slane %v990, 3
      %v1090 = vrot.slane %v991, 3
      %v1091 = vrot.slane %v992, 3
      %v1092 = vrot.slane %v993, 3
      %v1093 = vrot.slane %v994, 3
      %v1094 = vrot.slane %v995, 3
      %v1095 = vrot.slane %v996, 3
      %v1104 = vrot.slane %v989, 2
      %v1105 = vrot.slane %v990, 2
      %v1106 = vrot.slane %v991, 2
      %v1107 = vrot.slane %v992, 2
      %v1108 = vrot.slane %v993, 2
      %v1109 = vrot.slane %v994, 2
      %v1110 = vrot.slane %v995, 2
      %v1111 = vrot.slane %v996, 2
      %v1120 = vrot.slane %v989, 1
      %v1121 = vrot.slane %v990, 1
      %v1122 = vrot.slane %v991, 1
      %v1123 = vrot.slane %v992, 1
      %v1124 = vrot.slane %v993, 1
      %v1125 = vrot.slane %v994, 1
      %v1126 = vrot.slane %v995, 1
      %v1127 = vrot.slane %v996, 1
      %v1136 = vsel %vm386, 0.0, %v1024
      %v1137 = vsel %vm386, 0.0, %v1025
      %v1138 = vsel %vm386, 0.0, %v1026
      %v1139 = vsel %vm386, 0.0, %v1027
      %v1140 = vsel %vm386, 0.0, %v1028
      %v1141 = vsel %vm386, 0.0, %v1029
      %v1142 = vsel %vm386, 0.0, %v1030
      %v1143 = vsel %vm386, 0.0, %v1031
      %v1144 = vsel %vm388, %v1136, 0.0
      %v1145 = vsel %vm388, %v1137, 0.0
      %v1146 = vsel %vm388, %v1138, 0.0
      %v1147 = vsel %vm388, %v1139, 0.0
      %v1148 = vsel %vm388, %v1140, 0.0
      %v1149 = vsel %vm388, %v1141, 0.0
      %v1150 = vsel %vm388, %v1142, 0.0
      %v1151 = vsel %vm388, %v1143, 0.0
      %v1152 = vsel %vm390, %v1144, %v1040
      %v1153 = vsel %vm390, %v1145, %v1041
      %v1154 = vsel %vm390, %v1146, %v1042
      %v1155 = vsel %vm390, %v1147, %v1043
      %v1156 = vsel %vm390, %v1148, %v1044
      %v1157 = vsel %vm390, %v1149, %v1045
      %v1158 = vsel %vm390, %v1150, %v1046
      %v1159 = vsel %vm390, %v1151, %v1047
      %v1160 = vsel %vm477, %v1152, 0.0
      %v1161 = vsel %vm477, %v1153, 0.0
      %v1162 = vsel %vm477, %v1154, 0.0
      %v1163 = vsel %vm477, %v1155, 0.0
      %v1164 = vsel %vm477, %v1156, 0.0
      %v1165 = vsel %vm477, %v1157, 0.0
      %v1166 = vsel %vm477, %v1158, 0.0
      %v1167 = vsel %vm477, %v1159, 0.0
      %v1168 = vsel %vm482, %v1160, %v1056
      %v1169 = vsel %vm482, %v1161, %v1057
      %v1170 = vsel %vm482, %v1162, %v1058
      %v1171 = vsel %vm482, %v1163, %v1059
      %v1172 = vsel %vm482, %v1164, %v1060
      %v1173 = vsel %vm482, %v1165, %v1061
      %v1174 = vsel %vm482, %v1166, %v1062
      %v1175 = vsel %vm482, %v1167, %v1063
      %v1176 = vsel %vm487, %v1168, 0.0
      %v1177 = vsel %vm487, %v1169, 0.0
      %v1178 = vsel %vm487, %v1170, 0.0
      %v1179 = vsel %vm487, %v1171, 0.0
      %v1180 = vsel %vm487, %v1172, 0.0
      %v1181 = vsel %vm487, %v1173, 0.0
      %v1182 = vsel %vm487, %v1174, 0.0
      %v1183 = vsel %vm487, %v1175, 0.0
      %v1184 = vsel %vm492, %v1176, %v1072
      %v1185 = vsel %vm492, %v1177, %v1073
      %v1186 = vsel %vm492, %v1178, %v1074
      %v1187 = vsel %vm492, %v1179, %v1075
      %v1188 = vsel %vm492, %v1180, %v1076
      %v1189 = vsel %vm492, %v1181, %v1077
      %v1190 = vsel %vm492, %v1182, %v1078
      %v1191 = vsel %vm492, %v1183, %v1079
      %v1192 = vsel %vm386, 0.0, %v1088
      %v1193 = vsel %vm386, 0.0, %v1089
      %v1194 = vsel %vm386, 0.0, %v1090
      %v1195 = vsel %vm386, 0.0, %v1091
      %v1196 = vsel %vm386, 0.0, %v1092
      %v1197 = vsel %vm386, 0.0, %v1093
      %v1198 = vsel %vm386, 0.0, %v1094
      %v1199 = vsel %vm386, 0.0, %v1095
      %v1200 = vsel %vm388, %v1192, 0.0
      %v1201 = vsel %vm388, %v1193, 0.0
      %v1202 = vsel %vm388, %v1194, 0.0
      %v1203 = vsel %vm388, %v1195, 0.0
      %v1204 = vsel %vm388, %v1196, 0.0
      %v1205 = vsel %vm388, %v1197, 0.0
      %v1206 = vsel %vm388, %v1198, 0.0
      %v1207 = vsel %vm388, %v1199, 0.0
      %v1208 = vsel %vm390, %v1200, %v1104
      %v1209 = vsel %vm390, %v1201, %v1105
      %v1210 = vsel %vm390, %v1202, %v1106
      %v1211 = vsel %vm390, %v1203, %v1107
      %v1212 = vsel %vm390, %v1204, %v1108
      %v1213 = vsel %vm390, %v1205, %v1109
      %v1214 = vsel %vm390, %v1206, %v1110
      %v1215 = vsel %vm390, %v1207, %v1111
      %v1216 = vsel %vm477, %v1208, 0.0
      %v1217 = vsel %vm477, %v1209, 0.0
      %v1218 = vsel %vm477, %v1210, 0.0
      %v1219 = vsel %vm477, %v1211, 0.0
      %v1220 = vsel %vm477, %v1212, 0.0
      %v1221 = vsel %vm477, %v1213, 0.0
      %v1222 = vsel %vm477, %v1214, 0.0
      %v1223 = vsel %vm477, %v1215, 0.0
      %v1224 = vsel %vm482, %v1216, %v1120
      %v1225 = vsel %vm482, %v1217, %v1121
      %v1226 = vsel %vm482, %v1218, %v1122
      %v1227 = vsel %vm482, %v1219, %v1123
      %v1228 = vsel %vm482, %v1220, %v1124
      %v1229 = vsel %vm482, %v1221, %v1125
      %v1230 = vsel %vm482, %v1222, %v1126
      %v1231 = vsel %vm482, %v1223, %v1127
      %v1232 = vsel %vm487, %v1224, 0.0
      %v1233 = vsel %vm487, %v1225, 0.0
      %v1234 = vsel %vm487, %v1226, 0.0
      %v1235 = vsel %vm487, %v1227, 0.0
      %v1236 = vsel %vm487, %v1228, 0.0
      %v1237 = vsel %vm487, %v1229, 0.0
      %v1238 = vsel %vm487, %v1230, 0.0
      %v1239 = vsel %vm487, %v1231, 0.0
      %v1240 = vsel %vm492, %v1232, %v989
      %v1241 = vsel %vm492, %v1233, %v990
      %v1242 = vsel %vm492, %v1234, %v991
      %v1243 = vsel %vm492, %v1235, %v992
      %v1244 = vsel %vm492, %v1236, %v993
      %v1245 = vsel %vm492, %v1237, %v994
      %v1246 = vsel %vm492, %v1238, %v995
      %v1247 = vsel %vm492, %v1239, %v996
      %v1264 = vrot.slane %v1184, 1
      %v1265 = vrot.slane %v1240, 1
      %v1266 = vsel %vm492, %v1264, %v1265
      %v1267 = vsel %vm492, %v1265, %v502
      %v1268 = vrot.slane %v1185, 1
      %v1269 = vrot.slane %v1241, 1
      %v1270 = vsel %vm492, %v1268, %v1269
      %v1271 = vsel %vm492, %v1269, %v502
      %v1272 = vrot.slane %v1186, 1
      %v1273 = vrot.slane %v1242, 1
      %v1274 = vsel %vm492, %v1272, %v1273
      %v1275 = vsel %vm492, %v1273, %v502
      %v1276 = vrot.slane %v1187, 1
      %v1277 = vrot.slane %v1243, 1
      %v1278 = vsel %vm492, %v1276, %v1277
      %v1279 = vsel %vm492, %v1277, %v502
      %v1280 = vrot.slane %v1188, 1
      %v1281 = vrot.slane %v1244, 1
      %v1282 = vsel %vm492, %v1280, %v1281
      %v1283 = vsel %vm492, %v1281, %v502
      %v1284 = vrot.slane %v1189, 1
      %v1285 = vrot.slane %v1245, 1
      %v1286 = vsel %vm492, %v1284, %v1285
      %v1287 = vsel %vm492, %v1285, %v502
      %v1288 = vrot.slane %v1190, 1
      %v1289 = vrot.slane %v1246, 1
      %v1290 = vsel %vm492, %v1288, %v1289
      %v1291 = vsel %vm492, %v1289, %v502
      %v1292 = vrot.slane %v1191, 1
      %v1293 = vrot.slane %v1247, 1
      %v1294 = vsel %vm492, %v1292, %v1293
      %v1295 = vsel %vm492, %v1293, %v502
      %v1296 = vsel %vm512, %v1266, 0
      %v1298 = vsel %vm512, %v1267, 0
      %v1300 = vsel %vm512, %v1270, 0
      %v1302 = vsel %vm512, %v1271, 0
      %v1304 = vsel %vm512, %v1274, 0
      %v1306 = vsel %vm512, %v1275, 0
      %v1308 = vsel %vm512, %v1278, 0
      %v1310 = vsel %vm512, %v1279, 0
      %v1312 = vsel %vm512, %v1282, 0
      %v1314 = vsel %vm512, %v1283, 0
      %v1316 = vsel %vm512, %v1286, 0
      %v1318 = vsel %vm512, %v1287, 0
      %v1320 = vsel %vm512, %v1290, 0
      %v1322 = vsel %vm512, %v1291, 0
      %v1324 = vsel %vm512, %v1294, 0
      %v1326 = vsel %vm512, %v1295, 0
      %1328 = vmatpush.msra.mxu0 0.0
      %1329 = vmatpush.msra.mxu0 0.0
      %1330 = vmatpush.msra.mxu0 0.0
      %1331 = vmatpush.msra.mxu0 0.0
      %1332 = vmatpush.msra.mxu0 0.0
      %1333 = vmatpush.msra.mxu0 0.0
      %1334 = vmatpush.msra.mxu0 0.0
      %1335 = vmatpush.msra.mxu0 0.0
      %1336 = vmatpush.msra.mxu0 0.0
      %1337 = vmatpush.msra.mxu0 0.0
      %1338 = vmatpush.msra.mxu0 0.0
      %1339 = vmatpush.msra.mxu0 0.0
      %1340 = vmatpush.msra.mxu0 0.0
      %1341 = vmatpush.msra.mxu0 0.0
      %1342 = vmatpush.msra.mxu0 %v1000
      %1343 = vmatpush.msra.mxu0 %v999
      %1344 = vmatmul.f32.gmra.mxu0 %v513
      %v1345 = vpop.f32.mrf.mxu0
      %v1346 = vadd.f32 0.0, %v1345
      %1347 = vmatmul.f32.gmra.mxu0 %v513
      %v1348 = vpop.f32.mrf.mxu0
      %v1349 = vadd.f32 0.0, %v1348
      %1350 = vmatmul.f32.gmra.mxu0 %v1296
      %v1351 = vpop.f32.mrf.mxu0
      %v1352 = vadd.f32 0.0, %v1351
      %1353 = vmatmul.f32.gmra.mxu0 %v1298
      %v1354 = vpop.f32.mrf.mxu0
      %v1355 = vadd.f32 0.0, %v1354
      %1356 = vmatmul.f32.gmra.mxu0 %v513
      %v1357 = vpop.f32.mrf.mxu0
      %v1358 = vadd.f32 0.0, %v1357
      %1359 = vmatmul.f32.gmra.mxu0 %v513
      %v1360 = vpop.f32.mrf.mxu0
      %v1361 = vadd.f32 0.0, %v1360
      %1362 = vmatmul.f32.gmra.mxu0 %v1300
      %v1363 = vpop.f32.mrf.mxu0
      %v1364 = vadd.f32 0.0, %v1363
      %1365 = vmatmul.f32.gmra.mxu0 %v1302
      %v1366 = vpop.f32.mrf.mxu0
      %v1367 = vadd.f32 0.0, %v1366
      %1368 = vmatmul.f32.gmra.mxu0 %v513
      %v1369 = vpop.f32.mrf.mxu0
      %v1370 = vadd.f32 0.0, %v1369
      %1371 = vmatmul.f32.gmra.mxu0 %v513
      %v1372 = vpop.f32.mrf.mxu0
      %v1373 = vadd.f32 0.0, %v1372
      %1374 = vmatmul.f32.gmra.mxu0 %v1304
      %v1375 = vpop.f32.mrf.mxu0
      %v1376 = vadd.f32 0.0, %v1375
      %1377 = vmatmul.f32.gmra.mxu0 %v1306
      %v1378 = vpop.f32.mrf.mxu0
      %v1379 = vadd.f32 0.0, %v1378
      %1380 = vmatmul.f32.gmra.mxu0 %v513
      %v1381 = vpop.f32.mrf.mxu0
      %v1382 = vadd.f32 0.0, %v1381
      %1383 = vmatmul.f32.gmra.mxu0 %v513
      %v1384 = vpop.f32.mrf.mxu0
      %v1385 = vadd.f32 0.0, %v1384
      %1386 = vmatmul.f32.gmra.mxu0 %v1308
      %v1387 = vpop.f32.mrf.mxu0
      %v1388 = vadd.f32 0.0, %v1387
      %1389 = vmatmul.f32.gmra.mxu0 %v1310
      %v1390 = vpop.f32.mrf.mxu0
      %v1391 = vadd.f32 0.0, %v1390
      %1392 = vmatmul.f32.gmra.mxu0 %v513
      %v1393 = vpop.f32.mrf.mxu0
      %v1394 = vadd.f32 0.0, %v1393
      %1395 = vmatmul.f32.gmra.mxu0 %v513
      %v1396 = vpop.f32.mrf.mxu0
      %v1397 = vadd.f32 0.0, %v1396
      %1398 = vmatmul.f32.gmra.mxu0 %v1312
      %v1399 = vpop.f32.mrf.mxu0
      %v1400 = vadd.f32 0.0, %v1399
      %1401 = vmatmul.f32.gmra.mxu0 %v1314
      %v1402 = vpop.f32.mrf.mxu0
      %v1403 = vadd.f32 0.0, %v1402
      %1404 = vmatmul.f32.gmra.mxu0 %v513
      %v1405 = vpop.f32.mrf.mxu0
      %v1406 = vadd.f32 0.0, %v1405
      %1407 = vmatmul.f32.gmra.mxu0 %v513
      %v1408 = vpop.f32.mrf.mxu0
      %v1409 = vadd.f32 0.0, %v1408
      %1410 = vmatmul.f32.gmra.mxu0 %v1316
      %v1411 = vpop.f32.mrf.mxu0
      %v1412 = vadd.f32 0.0, %v1411
      %1413 = vmatmul.f32.gmra.mxu0 %v1318
      %v1414 = vpop.f32.mrf.mxu0
      %v1415 = vadd.f32 0.0, %v1414
      %1416 = vmatmul.f32.gmra.mxu0 %v513
      %v1417 = vpop.f32.mrf.mxu0
      %v1418 = vadd.f32 0.0, %v1417
      %1419 = vmatmul.f32.gmra.mxu0 %v513
      %v1420 = vpop.f32.mrf.mxu0
      %v1421 = vadd.f32 0.0, %v1420
      %1422 = vmatmul.f32.gmra.mxu0 %v1320
      %v1423 = vpop.f32.mrf.mxu0
      %v1424 = vadd.f32 0.0, %v1423
      %1425 = vmatmul.f32.gmra.mxu0 %v1322
      %v1426 = vpop.f32.mrf.mxu0
      %v1427 = vadd.f32 0.0, %v1426
      %1428 = vmatmul.f32.gmra.mxu0 %v513
      %v1429 = vpop.f32.mrf.mxu0
      %v1430 = vadd.f32 0.0, %v1429
      %1431 = vmatmul.f32.gmra.mxu0 %v513
      %v1432 = vpop.f32.mrf.mxu0
      %v1433 = vadd.f32 0.0, %v1432
      %1434 = vmatmul.f32.gmra.mxu0 %v1324
      %v1435 = vpop.f32.mrf.mxu0
      %v1436 = vadd.f32 0.0, %v1435
      %1437 = vmatmul.f32.gmra.mxu0 %v1326
      %v1438 = vpop.f32.mrf.mxu0
      %v1439 = vadd.f32 0.0, %v1438
      %1440 = vdwg.mxu0
      %v1441 = vsel %vm512, %v1184, 0
      %v1443 = vsel %vm512, %v1240, 0
      %v1445 = vsel %vm512, %v1185, 0
      %v1447 = vsel %vm512, %v1241, 0
      %v1449 = vsel %vm512, %v1186, 0
      %v1451 = vsel %vm512, %v1242, 0
      %v1453 = vsel %vm512, %v1187, 0
      %v1455 = vsel %vm512, %v1243, 0
      %v1457 = vsel %vm512, %v1188, 0
      %v1459 = vsel %vm512, %v1244, 0
      %v1461 = vsel %vm512, %v1189, 0
      %v1463 = vsel %vm512, %v1245, 0
      %v1465 = vsel %vm512, %v1190, 0
      %v1467 = vsel %vm512, %v1246, 0
      %v1469 = vsel %vm512, %v1191, 0
      %v1471 = vsel %vm512, %v1247, 0
      %1473 = vmatpush.msra.mxu0 0.0
      %1474 = vmatpush.msra.mxu0 0.0
      %1475 = vmatpush.msra.mxu0 0.0
      %1476 = vmatpush.msra.mxu0 0.0
      %1477 = vmatpush.msra.mxu0 0.0
      %1478 = vmatpush.msra.mxu0 0.0
      %1479 = vmatpush.msra.mxu0 0.0
      %1480 = vmatpush.msra.mxu0 0.0
      %1481 = vmatpush.msra.mxu0 0.0
      %1482 = vmatpush.msra.mxu0 0.0
      %1483 = vmatpush.msra.mxu0 0.0
      %1484 = vmatpush.msra.mxu0 0.0
      %1485 = vmatpush.msra.mxu0 0.0
      %1486 = vmatpush.msra.mxu0 0.0
      %1487 = vmatpush.msra.mxu0 %v998
      %1488 = vmatpush.msra.mxu0 %v997
      %1489 = vmatmul.f32.gmra.mxu0 %v564
      %v1490 = vpop.f32.mrf.mxu0
      %v1491 = vadd.f32 %v1346, %v1490
      %1492 = vmatmul.f32.gmra.mxu0 %v564
      %v1493 = vpop.f32.mrf.mxu0
      %v1494 = vadd.f32 %v1349, %v1493
      %1495 = vmatmul.f32.gmra.mxu0 %v1441
      %v1496 = vpop.f32.mrf.mxu0
      %v1497 = vadd.f32 %v1352, %v1496
      %1498 = vmatmul.f32.gmra.mxu0 %v1443
      %v1499 = vpop.f32.mrf.mxu0
      %v1500 = vadd.f32 %v1355, %v1499
      %1501 = vmatmul.f32.gmra.mxu0 %v564
      %v1502 = vpop.f32.mrf.mxu0
      %v1503 = vadd.f32 %v1358, %v1502
      %1504 = vmatmul.f32.gmra.mxu0 %v564
      %v1505 = vpop.f32.mrf.mxu0
      %v1506 = vadd.f32 %v1361, %v1505
      %1507 = vmatmul.f32.gmra.mxu0 %v1445
      %v1508 = vpop.f32.mrf.mxu0
      %v1509 = vadd.f32 %v1364, %v1508
      %1510 = vmatmul.f32.gmra.mxu0 %v1447
      %v1511 = vpop.f32.mrf.mxu0
      %v1512 = vadd.f32 %v1367, %v1511
      %1513 = vmatmul.f32.gmra.mxu0 %v564
      %v1514 = vpop.f32.mrf.mxu0
      %v1515 = vadd.f32 %v1370, %v1514
      %1516 = vmatmul.f32.gmra.mxu0 %v564
      %v1517 = vpop.f32.mrf.mxu0
      %v1518 = vadd.f32 %v1373, %v1517
      %1519 = vmatmul.f32.gmra.mxu0 %v1449
      %v1520 = vpop.f32.mrf.mxu0
      %v1521 = vadd.f32 %v1376, %v1520
      %1522 = vmatmul.f32.gmra.mxu0 %v1451
      %v1523 = vpop.f32.mrf.mxu0
      %v1524 = vadd.f32 %v1379, %v1523
      %1525 = vmatmul.f32.gmra.mxu0 %v564
      %v1526 = vpop.f32.mrf.mxu0
      %v1527 = vadd.f32 %v1382, %v1526
      %1528 = vmatmul.f32.gmra.mxu0 %v564
      %v1529 = vpop.f32.mrf.mxu0
      %v1530 = vadd.f32 %v1385, %v1529
      %1531 = vmatmul.f32.gmra.mxu0 %v1453
      %v1532 = vpop.f32.mrf.mxu0
      %v1533 = vadd.f32 %v1388, %v1532
      %1534 = vmatmul.f32.gmra.mxu0 %v1455
      %v1535 = vpop.f32.mrf.mxu0
      %v1536 = vadd.f32 %v1391, %v1535
      %1537 = vmatmul.f32.gmra.mxu0 %v564
      %v1538 = vpop.f32.mrf.mxu0
      %v1539 = vadd.f32 %v1394, %v1538
      %1540 = vmatmul.f32.gmra.mxu0 %v564
      %v1541 = vpop.f32.mrf.mxu0
      %v1542 = vadd.f32 %v1397, %v1541
      %1543 = vmatmul.f32.gmra.mxu0 %v1457
      %v1544 = vpop.f32.mrf.mxu0
      %v1545 = vadd.f32 %v1400, %v1544
      %1546 = vmatmul.f32.gmra.mxu0 %v1459
      %v1547 = vpop.f32.mrf.mxu0
      %v1548 = vadd.f32 %v1403, %v1547
      %1549 = vmatmul.f32.gmra.mxu0 %v564
      %v1550 = vpop.f32.mrf.mxu0
      %v1551 = vadd.f32 %v1406, %v1550
      %1552 = vmatmul.f32.gmra.mxu0 %v564
      %v1553 = vpop.f32.mrf.mxu0
      %v1554 = vadd.f32 %v1409, %v1553
      %1555 = vmatmul.f32.gmra.mxu0 %v1461
      %v1556 = vpop.f32.mrf.mxu0
      %v1557 = vadd.f32 %v1412, %v1556
      %1558 = vmatmul.f32.gmra.mxu0 %v1463
      %v1559 = vpop.f32.mrf.mxu0
      %v1560 = vadd.f32 %v1415, %v1559
      %1561 = vmatmul.f32.gmra.mxu0 %v564
      %v1562 = vpop.f32.mrf.mxu0
      %v1563 = vadd.f32 %v1418, %v1562
      %1564 = vmatmul.f32.gmra.mxu0 %v564
      %v1565 = vpop.f32.mrf.mxu0
      %v1566 = vadd.f32 %v1421, %v1565
      %1567 = vmatmul.f32.gmra.mxu0 %v1465
      %v1568 = vpop.f32.mrf.mxu0
      %v1569 = vadd.f32 %v1424, %v1568
      %1570 = vmatmul.f32.gmra.mxu0 %v1467
      %v1571 = vpop.f32.mrf.mxu0
      %v1572 = vadd.f32 %v1427, %v1571
      %1573 = vmatmul.f32.gmra.mxu0 %v564
      %v1574 = vpop.f32.mrf.mxu0
      %v1575 = vadd.f32 %v1430, %v1574
      %1576 = vmatmul.f32.gmra.mxu0 %v564
      %v1577 = vpop.f32.mrf.mxu0
      %v1578 = vadd.f32 %v1433, %v1577
      %1579 = vmatmul.f32.gmra.mxu0 %v1469
      %v1580 = vpop.f32.mrf.mxu0
      %v1581 = vadd.f32 %v1436, %v1580
      %1582 = vmatmul.f32.gmra.mxu0 %v1471
      %v1583 = vpop.f32.mrf.mxu0
      %v1584 = vadd.f32 %v1439, %v1583
      %1585 = vdwg.mxu0
      %v1586 = vrot.slane %v1184, 2
      %v1587 = vrot.slane %v1240, 2
      %v1588 = vsel %vm487, %v1586, %v1587
      %v1589 = vsel %vm487, %v1587, %v615
      %v1590 = vrot.slane %v1185, 2
      %v1591 = vrot.slane %v1241, 2
      %v1592 = vsel %vm487, %v1590, %v1591
      %v1593 = vsel %vm487, %v1591, %v615
      %v1594 = vrot.slane %v1186, 2
      %v1595 = vrot.slane %v1242, 2
      %v1596 = vsel %vm487, %v1594, %v1595
      %v1597 = vsel %vm487, %v1595, %v615
      %v1598 = vrot.slane %v1187, 2
      %v1599 = vrot.slane %v1243, 2
      %v1600 = vsel %vm487, %v1598, %v1599
      %v1601 = vsel %vm487, %v1599, %v615
      %v1602 = vrot.slane %v1188, 2
      %v1603 = vrot.slane %v1244, 2
      %v1604 = vsel %vm487, %v1602, %v1603
      %v1605 = vsel %vm487, %v1603, %v615
      %v1606 = vrot.slane %v1189, 2
      %v1607 = vrot.slane %v1245, 2
      %v1608 = vsel %vm487, %v1606, %v1607
      %v1609 = vsel %vm487, %v1607, %v615
      %v1610 = vrot.slane %v1190, 2
      %v1611 = vrot.slane %v1246, 2
      %v1612 = vsel %vm487, %v1610, %v1611
      %v1613 = vsel %vm487, %v1611, %v615
      %v1614 = vrot.slane %v1191, 2
      %v1615 = vrot.slane %v1247, 2
      %v1616 = vsel %vm487, %v1614, %v1615
      %v1617 = vsel %vm487, %v1615, %v615
      %v1618 = vsel %vm512, %v1588, 0
      %v1620 = vsel %vm512, %v1589, 0
      %v1622 = vsel %vm512, %v1592, 0
      %v1624 = vsel %vm512, %v1593, 0
      %v1626 = vsel %vm512, %v1596, 0
      %v1628 = vsel %vm512, %v1597, 0
      %v1630 = vsel %vm512, %v1600, 0
      %v1632 = vsel %vm512, %v1601, 0
      %v1634 = vsel %vm512, %v1604, 0
      %v1636 = vsel %vm512, %v1605, 0
      %v1638 = vsel %vm512, %v1608, 0
      %v1640 = vsel %vm512, %v1609, 0
      %v1642 = vsel %vm512, %v1612, 0
      %v1644 = vsel %vm512, %v1613, 0
      %v1646 = vsel %vm512, %v1616, 0
      %v1648 = vsel %vm512, %v1617, 0
      %1650 = vmatpush.msra.mxu0 0.0
      %1651 = vmatpush.msra.mxu0 0.0
      %1652 = vmatpush.msra.mxu0 0.0
      %1653 = vmatpush.msra.mxu0 0.0
      %1654 = vmatpush.msra.mxu0 0.0
      %1655 = vmatpush.msra.mxu0 0.0
      %1656 = vmatpush.msra.mxu0 0.0
      %1657 = vmatpush.msra.mxu0 0.0
      %1658 = vmatpush.msra.mxu0 0.0
      %1659 = vmatpush.msra.mxu0 0.0
      %1660 = vmatpush.msra.mxu0 0.0
      %1661 = vmatpush.msra.mxu0 0.0
      %1662 = vmatpush.msra.mxu0 0.0
      %1663 = vmatpush.msra.mxu0 0.0
      %1664 = vmatpush.msra.mxu0 %v1002
      %1665 = vmatpush.msra.mxu0 %v1001
      %1666 = vmatmul.f32.gmra.mxu0 %v625
      %v1667 = vpop.f32.mrf.mxu0
      %v1668 = vadd.f32 0.0, %v1667
      %1669 = vmatmul.f32.gmra.mxu0 %v625
      %v1670 = vpop.f32.mrf.mxu0
      %v1671 = vadd.f32 0.0, %v1670
      %1672 = vmatmul.f32.gmra.mxu0 %v1618
      %v1673 = vpop.f32.mrf.mxu0
      %v1674 = vadd.f32 0.0, %v1673
      %1675 = vmatmul.f32.gmra.mxu0 %v1620
      %v1676 = vpop.f32.mrf.mxu0
      %v1677 = vadd.f32 0.0, %v1676
      %1678 = vmatmul.f32.gmra.mxu0 %v625
      %v1679 = vpop.f32.mrf.mxu0
      %v1680 = vadd.f32 0.0, %v1679
      %1681 = vmatmul.f32.gmra.mxu0 %v625
      %v1682 = vpop.f32.mrf.mxu0
      %v1683 = vadd.f32 0.0, %v1682
      %1684 = vmatmul.f32.gmra.mxu0 %v1622
      %v1685 = vpop.f32.mrf.mxu0
      %v1686 = vadd.f32 0.0, %v1685
      %1687 = vmatmul.f32.gmra.mxu0 %v1624
      %v1688 = vpop.f32.mrf.mxu0
      %v1689 = vadd.f32 0.0, %v1688
      %1690 = vmatmul.f32.gmra.mxu0 %v625
      %v1691 = vpop.f32.mrf.mxu0
      %v1692 = vadd.f32 0.0, %v1691
      %1693 = vmatmul.f32.gmra.mxu0 %v625
      %v1694 = vpop.f32.mrf.mxu0
      %v1695 = vadd.f32 0.0, %v1694
      %1696 = vmatmul.f32.gmra.mxu0 %v1626
      %v1697 = vpop.f32.mrf.mxu0
      %v1698 = vadd.f32 0.0, %v1697
      %1699 = vmatmul.f32.gmra.mxu0 %v1628
      %v1700 = vpop.f32.mrf.mxu0
      %v1701 = vadd.f32 0.0, %v1700
      %1702 = vmatmul.f32.gmra.mxu0 %v625
      %v1703 = vpop.f32.mrf.mxu0
      %v1704 = vadd.f32 0.0, %v1703
      %1705 = vmatmul.f32.gmra.mxu0 %v625
      %v1706 = vpop.f32.mrf.mxu0
      %v1707 = vadd.f32 0.0, %v1706
      %1708 = vmatmul.f32.gmra.mxu0 %v1630
      %v1709 = vpop.f32.mrf.mxu0
      %v1710 = vadd.f32 0.0, %v1709
      %1711 = vmatmul.f32.gmra.mxu0 %v1632
      %v1712 = vpop.f32.mrf.mxu0
      %v1713 = vadd.f32 0.0, %v1712
      %1714 = vmatmul.f32.gmra.mxu0 %v625
      %v1715 = vpop.f32.mrf.mxu0
      %v1716 = vadd.f32 0.0, %v1715
      %1717 = vmatmul.f32.gmra.mxu0 %v625
      %v1718 = vpop.f32.mrf.mxu0
      %v1719 = vadd.f32 0.0, %v1718
      %1720 = vmatmul.f32.gmra.mxu0 %v1634
      %v1721 = vpop.f32.mrf.mxu0
      %v1722 = vadd.f32 0.0, %v1721
      %1723 = vmatmul.f32.gmra.mxu0 %v1636
      %v1724 = vpop.f32.mrf.mxu0
      %v1725 = vadd.f32 0.0, %v1724
      %1726 = vmatmul.f32.gmra.mxu0 %v625
      %v1727 = vpop.f32.mrf.mxu0
      %v1728 = vadd.f32 0.0, %v1727
      %1729 = vmatmul.f32.gmra.mxu0 %v625
      %v1730 = vpop.f32.mrf.mxu0
      %v1731 = vadd.f32 0.0, %v1730
      %1732 = vmatmul.f32.gmra.mxu0 %v1638
      %v1733 = vpop.f32.mrf.mxu0
      %v1734 = vadd.f32 0.0, %v1733
      %1735 = vmatmul.f32.gmra.mxu0 %v1640
      %v1736 = vpop.f32.mrf.mxu0
      %v1737 = vadd.f32 0.0, %v1736
      %1738 = vmatmul.f32.gmra.mxu0 %v625
      %v1739 = vpop.f32.mrf.mxu0
      %v1740 = vadd.f32 0.0, %v1739
      %1741 = vmatmul.f32.gmra.mxu0 %v625
      %v1742 = vpop.f32.mrf.mxu0
      %v1743 = vadd.f32 0.0, %v1742
      %1744 = vmatmul.f32.gmra.mxu0 %v1642
      %v1745 = vpop.f32.mrf.mxu0
      %v1746 = vadd.f32 0.0, %v1745
      %1747 = vmatmul.f32.gmra.mxu0 %v1644
      %v1748 = vpop.f32.mrf.mxu0
      %v1749 = vadd.f32 0.0, %v1748
      %1750 = vmatmul.f32.gmra.mxu0 %v625
      %v1751 = vpop.f32.mrf.mxu0
      %v1752 = vadd.f32 0.0, %v1751
      %1753 = vmatmul.f32.gmra.mxu0 %v625
      %v1754 = vpop.f32.mrf.mxu0
      %v1755 = vadd.f32 0.0, %v1754
      %1756 = vmatmul.f32.gmra.mxu0 %v1646
      %v1757 = vpop.f32.mrf.mxu0
      %v1758 = vadd.f32 0.0, %v1757
      %1759 = vmatmul.f32.gmra.mxu0 %v1648
      %v1760 = vpop.f32.mrf.mxu0
      %v1761 = vadd.f32 0.0, %v1760
      %1762 = vdwg.mxu0
      %v1763 = vadd.f32 %v1491, %v1668
      %v1764 = vadd.f32 %v1494, %v1671
      %v1765 = vadd.f32 %v1497, %v1674
      %v1766 = vadd.f32 %v1500, %v1677
      %v1767 = vadd.f32 %v1503, %v1680
      %v1768 = vadd.f32 %v1506, %v1683
      %v1769 = vadd.f32 %v1509, %v1686
      %v1770 = vadd.f32 %v1512, %v1689
      %v1771 = vadd.f32 %v1515, %v1692
      %v1772 = vadd.f32 %v1518, %v1695
      %v1773 = vadd.f32 %v1521, %v1698
      %v1774 = vadd.f32 %v1524, %v1701
      %v1775 = vadd.f32 %v1527, %v1704
      %v1776 = vadd.f32 %v1530, %v1707
      %v1777 = vadd.f32 %v1533, %v1710
      %v1778 = vadd.f32 %v1536, %v1713
      %v1779 = vadd.f32 %v1539, %v1716
      %v1780 = vadd.f32 %v1542, %v1719
      %v1781 = vadd.f32 %v1545, %v1722
      %v1782 = vadd.f32 %v1548, %v1725
      %v1783 = vadd.f32 %v1551, %v1728
      %v1784 = vadd.f32 %v1554, %v1731
      %v1785 = vadd.f32 %v1557, %v1734
      %v1786 = vadd.f32 %v1560, %v1737
      %v1787 = vadd.f32 %v1563, %v1740
      %v1788 = vadd.f32 %v1566, %v1743
      %v1789 = vadd.f32 %v1569, %v1746
      %v1790 = vadd.f32 %v1572, %v1749
      %v1791 = vadd.f32 %v1575, %v1752
      %v1792 = vadd.f32 %v1578, %v1755
      %v1793 = vadd.f32 %v1581, %v1758
      %v1794 = vadd.f32 %v1584, %v1761
      %1795 = vmatpush.msra.mxu0 0.0
      %1796 = vmatpush.msra.mxu0 0.0
      %1797 = vmatpush.msra.mxu0 0.0
      %1798 = vmatpush.msra.mxu0 0.0
      %1799 = vmatpush.msra.mxu0 0.0
      %1800 = vmatpush.msra.mxu0 0.0
      %1801 = vmatpush.msra.mxu0 0.0
      %1802 = vmatpush.msra.mxu0 0.0
      %1803 = vmatpush.msra.mxu0 0.0
      %1804 = vmatpush.msra.mxu0 0.0
      %1805 = vmatpush.msra.mxu0 0.0
      %1806 = vmatpush.msra.mxu0 0.0
      %1807 = vmatpush.msra.mxu0 0.0
      %1808 = vmatpush.msra.mxu0 0.0
      %1809 = vmatpush.msra.mxu0 %v1004
      %1810 = vmatpush.msra.mxu0 %v1003
      %1811 = vmatmul.f32.gmra.mxu0 %v1441
      %v1812 = vpop.f32.mrf.mxu0
      %v1813 = vadd.f32 0.0, %v1812
      %1814 = vmatmul.f32.gmra.mxu0 %v1443
      %v1815 = vpop.f32.mrf.mxu0
      %v1816 = vadd.f32 0.0, %v1815
      %1817 = vmatmul.f32.gmra.mxu0 %v564
      %v1818 = vpop.f32.mrf.mxu0
      %v1819 = vadd.f32 0.0, %v1818
      %1820 = vmatmul.f32.gmra.mxu0 %v564
      %v1821 = vpop.f32.mrf.mxu0
      %v1822 = vadd.f32 0.0, %v1821
      %1823 = vmatmul.f32.gmra.mxu0 %v1445
      %v1824 = vpop.f32.mrf.mxu0
      %v1825 = vadd.f32 0.0, %v1824
      %1826 = vmatmul.f32.gmra.mxu0 %v1447
      %v1827 = vpop.f32.mrf.mxu0
      %v1828 = vadd.f32 0.0, %v1827
      %1829 = vmatmul.f32.gmra.mxu0 %v564
      %v1830 = vpop.f32.mrf.mxu0
      %v1831 = vadd.f32 0.0, %v1830
      %1832 = vmatmul.f32.gmra.mxu0 %v564
      %v1833 = vpop.f32.mrf.mxu0
      %v1834 = vadd.f32 0.0, %v1833
      %1835 = vmatmul.f32.gmra.mxu0 %v1449
      %v1836 = vpop.f32.mrf.mxu0
      %v1837 = vadd.f32 0.0, %v1836
      %1838 = vmatmul.f32.gmra.mxu0 %v1451
      %v1839 = vpop.f32.mrf.mxu0
      %v1840 = vadd.f32 0.0, %v1839
      %1841 = vmatmul.f32.gmra.mxu0 %v564
      %v1842 = vpop.f32.mrf.mxu0
      %v1843 = vadd.f32 0.0, %v1842
      %1844 = vmatmul.f32.gmra.mxu0 %v564
      %v1845 = vpop.f32.mrf.mxu0
      %v1846 = vadd.f32 0.0, %v1845
      %1847 = vmatmul.f32.gmra.mxu0 %v1453
      %v1848 = vpop.f32.mrf.mxu0
      %v1849 = vadd.f32 0.0, %v1848
      %1850 = vmatmul.f32.gmra.mxu0 %v1455
      %v1851 = vpop.f32.mrf.mxu0
      %v1852 = vadd.f32 0.0, %v1851
      %1853 = vmatmul.f32.gmra.mxu0 %v564
      %v1854 = vpop.f32.mrf.mxu0
      %v1855 = vadd.f32 0.0, %v1854
      %1856 = vmatmul.f32.gmra.mxu0 %v564
      %v1857 = vpop.f32.mrf.mxu0
      %v1858 = vadd.f32 0.0, %v1857
      %1859 = vmatmul.f32.gmra.mxu0 %v1457
      %v1860 = vpop.f32.mrf.mxu0
      %v1861 = vadd.f32 0.0, %v1860
      %1862 = vmatmul.f32.gmra.mxu0 %v1459
      %v1863 = vpop.f32.mrf.mxu0
      %v1864 = vadd.f32 0.0, %v1863
      %1865 = vmatmul.f32.gmra.mxu0 %v564
      %v1866 = vpop.f32.mrf.mxu0
      %v1867 = vadd.f32 0.0, %v1866
      %1868 = vmatmul.f32.gmra.mxu0 %v564
      %v1869 = vpop.f32.mrf.mxu0
      %v1870 = vadd.f32 0.0, %v1869
      %1871 = vmatmul.f32.gmra.mxu0 %v1461
      %v1872 = vpop.f32.mrf.mxu0
      %v1873 = vadd.f32 0.0, %v1872
      %1874 = vmatmul.f32.gmra.mxu0 %v1463
      %v1875 = vpop.f32.mrf.mxu0
      %v1876 = vadd.f32 0.0, %v1875
      %1877 = vmatmul.f32.gmra.mxu0 %v564
      %v1878 = vpop.f32.mrf.mxu0
      %v1879 = vadd.f32 0.0, %v1878
      %1880 = vmatmul.f32.gmra.mxu0 %v564
      %v1881 = vpop.f32.mrf.mxu0
      %v1882 = vadd.f32 0.0, %v1881
      %1883 = vmatmul.f32.gmra.mxu0 %v1465
      %v1884 = vpop.f32.mrf.mxu0
      %v1885 = vadd.f32 0.0, %v1884
      %1886 = vmatmul.f32.gmra.mxu0 %v1467
      %v1887 = vpop.f32.mrf.mxu0
      %v1888 = vadd.f32 0.0, %v1887
      %1889 = vmatmul.f32.gmra.mxu0 %v564
      %v1890 = vpop.f32.mrf.mxu0
      %v1891 = vadd.f32 0.0, %v1890
      %1892 = vmatmul.f32.gmra.mxu0 %v564
      %v1893 = vpop.f32.mrf.mxu0
      %v1894 = vadd.f32 0.0, %v1893
      %1895 = vmatmul.f32.gmra.mxu0 %v1469
      %v1896 = vpop.f32.mrf.mxu0
      %v1897 = vadd.f32 0.0, %v1896
      %1898 = vmatmul.f32.gmra.mxu0 %v1471
      %v1899 = vpop.f32.mrf.mxu0
      %v1900 = vadd.f32 0.0, %v1899
      %1901 = vmatmul.f32.gmra.mxu0 %v564
      %v1902 = vpop.f32.mrf.mxu0
      %v1903 = vadd.f32 0.0, %v1902
      %1904 = vmatmul.f32.gmra.mxu0 %v564
      %v1905 = vpop.f32.mrf.mxu0
      %v1906 = vadd.f32 0.0, %v1905
      %1907 = vdwg.mxu0
      %v1908 = vadd.f32 %v1763, %v1813
      %v1909 = vadd.f32 %v1764, %v1816
      %v1910 = vadd.f32 %v1765, %v1819
      %v1911 = vadd.f32 %v1766, %v1822
      %v1912 = vadd.f32 %v1767, %v1825
      %v1913 = vadd.f32 %v1768, %v1828
      %v1914 = vadd.f32 %v1769, %v1831
      %v1915 = vadd.f32 %v1770, %v1834
      %v1916 = vadd.f32 %v1771, %v1837
      %v1917 = vadd.f32 %v1772, %v1840
      %v1918 = vadd.f32 %v1773, %v1843
      %v1919 = vadd.f32 %v1774, %v1846
      %v1920 = vadd.f32 %v1775, %v1849
      %v1921 = vadd.f32 %v1776, %v1852
      %v1922 = vadd.f32 %v1777, %v1855
      %v1923 = vadd.f32 %v1778, %v1858
      %v1924 = vadd.f32 %v1779, %v1861
      %v1925 = vadd.f32 %v1780, %v1864
      %v1926 = vadd.f32 %v1781, %v1867
      %v1927 = vadd.f32 %v1782, %v1870
      %v1928 = vadd.f32 %v1783, %v1873
      %v1929 = vadd.f32 %v1784, %v1876
      %v1930 = vadd.f32 %v1785, %v1879
      %v1931 = vadd.f32 %v1786, %v1882
      %v1932 = vadd.f32 %v1787, %v1885
      %v1933 = vadd.f32 %v1788, %v1888
      %v1934 = vadd.f32 %v1789, %v1891
      %v1935 = vadd.f32 %v1790, %v1894
      %v1936 = vadd.f32 %v1791, %v1897
      %v1937 = vadd.f32 %v1792, %v1900
      %v1938 = vadd.f32 %v1793, %v1903
      %v1939 = vadd.f32 %v1794, %v1906
      %1940 = vmatpush.msra.mxu0 0.0
      %1941 = vmatpush.msra.mxu0 0.0
      %1942 = vmatpush.msra.mxu0 0.0
      %1943 = vmatpush.msra.mxu0 0.0
      %1944 = vmatpush.msra.mxu0 0.0
      %1945 = vmatpush.msra.mxu0 0.0
      %1946 = vmatpush.msra.mxu0 0.0
      %1947 = vmatpush.msra.mxu0 0.0
      %1948 = vmatpush.msra.mxu0 0.0
      %1949 = vmatpush.msra.mxu0 0.0
      %1950 = vmatpush.msra.mxu0 0.0
      %1951 = vmatpush.msra.mxu0 0.0
      %1952 = vmatpush.msra.mxu0 0.0
      %1953 = vmatpush.msra.mxu0 0.0
      %1954 = vmatpush.msra.mxu0 %v1006
      %1955 = vmatpush.msra.mxu0 %v1005
      %1956 = vmatmul.f32.gmra.mxu0 %v1296
      %v1957 = vpop.f32.mrf.mxu0
      %v1958 = vadd.f32 0.0, %v1957
      %1959 = vmatmul.f32.gmra.mxu0 %v1298
      %v1960 = vpop.f32.mrf.mxu0
      %v1961 = vadd.f32 0.0, %v1960
      %1962 = vmatmul.f32.gmra.mxu0 %v513
      %v1963 = vpop.f32.mrf.mxu0
      %v1964 = vadd.f32 0.0, %v1963
      %1965 = vmatmul.f32.gmra.mxu0 %v513
      %v1966 = vpop.f32.mrf.mxu0
      %v1967 = vadd.f32 0.0, %v1966
      %1968 = vmatmul.f32.gmra.mxu0 %v1300
      %v1969 = vpop.f32.mrf.mxu0
      %v1970 = vadd.f32 0.0, %v1969
      %1971 = vmatmul.f32.gmra.mxu0 %v1302
      %v1972 = vpop.f32.mrf.mxu0
      %v1973 = vadd.f32 0.0, %v1972
      %1974 = vmatmul.f32.gmra.mxu0 %v513
      %v1975 = vpop.f32.mrf.mxu0
      %v1976 = vadd.f32 0.0, %v1975
      %1977 = vmatmul.f32.gmra.mxu0 %v513
      %v1978 = vpop.f32.mrf.mxu0
      %v1979 = vadd.f32 0.0, %v1978
      %1980 = vmatmul.f32.gmra.mxu0 %v1304
      %v1981 = vpop.f32.mrf.mxu0
      %v1982 = vadd.f32 0.0, %v1981
      %1983 = vmatmul.f32.gmra.mxu0 %v1306
      %v1984 = vpop.f32.mrf.mxu0
      %v1985 = vadd.f32 0.0, %v1984
      %1986 = vmatmul.f32.gmra.mxu0 %v513
      %v1987 = vpop.f32.mrf.mxu0
      %v1988 = vadd.f32 0.0, %v1987
      %1989 = vmatmul.f32.gmra.mxu0 %v513
      %v1990 = vpop.f32.mrf.mxu0
      %v1991 = vadd.f32 0.0, %v1990
      %1992 = vmatmul.f32.gmra.mxu0 %v1308
      %v1993 = vpop.f32.mrf.mxu0
      %v1994 = vadd.f32 0.0, %v1993
      %1995 = vmatmul.f32.gmra.mxu0 %v1310
      %v1996 = vpop.f32.mrf.mxu0
      %v1997 = vadd.f32 0.0, %v1996
      %1998 = vmatmul.f32.gmra.mxu0 %v513
      %v1999 = vpop.f32.mrf.mxu0
      %v2000 = vadd.f32 0.0, %v1999
      %2001 = vmatmul.f32.gmra.mxu0 %v513
      %v2002 = vpop.f32.mrf.mxu0
      %v2003 = vadd.f32 0.0, %v2002
      %2004 = vmatmul.f32.gmra.mxu0 %v1312
      %v2005 = vpop.f32.mrf.mxu0
      %v2006 = vadd.f32 0.0, %v2005
      %2007 = vmatmul.f32.gmra.mxu0 %v1314
      %v2008 = vpop.f32.mrf.mxu0
      %v2009 = vadd.f32 0.0, %v2008
      %2010 = vmatmul.f32.gmra.mxu0 %v513
      %v2011 = vpop.f32.mrf.mxu0
      %v2012 = vadd.f32 0.0, %v2011
      %2013 = vmatmul.f32.gmra.mxu0 %v513
      %v2014 = vpop.f32.mrf.mxu0
      %v2015 = vadd.f32 0.0, %v2014
      %2016 = vmatmul.f32.gmra.mxu0 %v1316
      %v2017 = vpop.f32.mrf.mxu0
      %v2018 = vadd.f32 0.0, %v2017
      %2019 = vmatmul.f32.gmra.mxu0 %v1318
      %v2020 = vpop.f32.mrf.mxu0
      %v2021 = vadd.f32 0.0, %v2020
      %2022 = vmatmul.f32.gmra.mxu0 %v513
      %v2023 = vpop.f32.mrf.mxu0
      %v2024 = vadd.f32 0.0, %v2023
      %2025 = vmatmul.f32.gmra.mxu0 %v513
      %v2026 = vpop.f32.mrf.mxu0
      %v2027 = vadd.f32 0.0, %v2026
      %2028 = vmatmul.f32.gmra.mxu0 %v1320
      %v2029 = vpop.f32.mrf.mxu0
      %v2030 = vadd.f32 0.0, %v2029
      %2031 = vmatmul.f32.gmra.mxu0 %v1322
      %v2032 = vpop.f32.mrf.mxu0
      %v2033 = vadd.f32 0.0, %v2032
      %2034 = vmatmul.f32.gmra.mxu0 %v513
      %v2035 = vpop.f32.mrf.mxu0
      %v2036 = vadd.f32 0.0, %v2035
      %2037 = vmatmul.f32.gmra.mxu0 %v513
      %v2038 = vpop.f32.mrf.mxu0
      %v2039 = vadd.f32 0.0, %v2038
      %2040 = vmatmul.f32.gmra.mxu0 %v1324
      %v2041 = vpop.f32.mrf.mxu0
      %v2042 = vadd.f32 0.0, %v2041
      %2043 = vmatmul.f32.gmra.mxu0 %v1326
      %v2044 = vpop.f32.mrf.mxu0
      %v2045 = vadd.f32 0.0, %v2044
      %2046 = vmatmul.f32.gmra.mxu0 %v513
      %v2047 = vpop.f32.mrf.mxu0
      %v2048 = vadd.f32 0.0, %v2047
      %2049 = vmatmul.f32.gmra.mxu0 %v513
      %v2050 = vpop.f32.mrf.mxu0
      %v2051 = vadd.f32 0.0, %v2050
      %2052 = vdwg.mxu0
      %v2053 = vadd.f32 %v1908, %v1958
      %v2054 = vadd.f32 %v1909, %v1961
      %v2055 = vadd.f32 %v1910, %v1964
      %v2056 = vadd.f32 %v1911, %v1967
      %v2057 = vadd.f32 %v1912, %v1970
      %v2058 = vadd.f32 %v1913, %v1973
      %v2059 = vadd.f32 %v1914, %v1976
      %v2060 = vadd.f32 %v1915, %v1979
      %v2061 = vadd.f32 %v1916, %v1982
      %v2062 = vadd.f32 %v1917, %v1985
      %v2063 = vadd.f32 %v1918, %v1988
      %v2064 = vadd.f32 %v1919, %v1991
      %v2065 = vadd.f32 %v1920, %v1994
      %v2066 = vadd.f32 %v1921, %v1997
      %v2067 = vadd.f32 %v1922, %v2000
      %v2068 = vadd.f32 %v1923, %v2003
      %v2069 = vadd.f32 %v1924, %v2006
      %v2070 = vadd.f32 %v1925, %v2009
      %v2071 = vadd.f32 %v1926, %v2012
      %v2072 = vadd.f32 %v1927, %v2015
      %v2073 = vadd.f32 %v1928, %v2018
      %v2074 = vadd.f32 %v1929, %v2021
      %v2075 = vadd.f32 %v1930, %v2024
      %v2076 = vadd.f32 %v1931, %v2027
      %v2077 = vadd.f32 %v1932, %v2030
      %v2078 = vadd.f32 %v1933, %v2033
      %v2079 = vadd.f32 %v1934, %v2036
      %v2080 = vadd.f32 %v1935, %v2039
      %v2081 = vadd.f32 %v1936, %v2042
      %v2082 = vadd.f32 %v1937, %v2045
      %v2083 = vadd.f32 %v1938, %v2048
      %v2084 = vadd.f32 %v1939, %v2051
      %2085 = vmatpush.msra.mxu0 0.0
      %2086 = vmatpush.msra.mxu0 0.0
      %2087 = vmatpush.msra.mxu0 0.0
      %2088 = vmatpush.msra.mxu0 0.0
      %2089 = vmatpush.msra.mxu0 0.0
      %2090 = vmatpush.msra.mxu0 0.0
      %2091 = vmatpush.msra.mxu0 0.0
      %2092 = vmatpush.msra.mxu0 0.0
      %2093 = vmatpush.msra.mxu0 0.0
      %2094 = vmatpush.msra.mxu0 0.0
      %2095 = vmatpush.msra.mxu0 0.0
      %2096 = vmatpush.msra.mxu0 0.0
      %2097 = vmatpush.msra.mxu0 0.0
      %2098 = vmatpush.msra.mxu0 0.0
      %2099 = vmatpush.msra.mxu0 %v1008
      %2100 = vmatpush.msra.mxu0 %v1007
      %2101 = vmatmul.f32.gmra.mxu0 %v1618
      %v2102 = vpop.f32.mrf.mxu0
      %v2103 = vadd.f32 0.0, %v2102
      %2104 = vmatmul.f32.gmra.mxu0 %v1620
      %v2105 = vpop.f32.mrf.mxu0
      %v2106 = vadd.f32 0.0, %v2105
      %2107 = vmatmul.f32.gmra.mxu0 %v625
      %v2108 = vpop.f32.mrf.mxu0
      %v2109 = vadd.f32 0.0, %v2108
      %2110 = vmatmul.f32.gmra.mxu0 %v625
      %v2111 = vpop.f32.mrf.mxu0
      %v2112 = vadd.f32 0.0, %v2111
      %2113 = vmatmul.f32.gmra.mxu0 %v1622
      %v2114 = vpop.f32.mrf.mxu0
      %v2115 = vadd.f32 0.0, %v2114
      %2116 = vmatmul.f32.gmra.mxu0 %v1624
      %v2117 = vpop.f32.mrf.mxu0
      %v2118 = vadd.f32 0.0, %v2117
      %2119 = vmatmul.f32.gmra.mxu0 %v625
      %v2120 = vpop.f32.mrf.mxu0
      %v2121 = vadd.f32 0.0, %v2120
      %2122 = vmatmul.f32.gmra.mxu0 %v625
      %v2123 = vpop.f32.mrf.mxu0
      %v2124 = vadd.f32 0.0, %v2123
      %2125 = vmatmul.f32.gmra.mxu0 %v1626
      %v2126 = vpop.f32.mrf.mxu0
      %v2127 = vadd.f32 0.0, %v2126
      %2128 = vmatmul.f32.gmra.mxu0 %v1628
      %v2129 = vpop.f32.mrf.mxu0
      %v2130 = vadd.f32 0.0, %v2129
      %2131 = vmatmul.f32.gmra.mxu0 %v625
      %v2132 = vpop.f32.mrf.mxu0
      %v2133 = vadd.f32 0.0, %v2132
      %2134 = vmatmul.f32.gmra.mxu0 %v625
      %v2135 = vpop.f32.mrf.mxu0
      %v2136 = vadd.f32 0.0, %v2135
      %2137 = vmatmul.f32.gmra.mxu0 %v1630
      %v2138 = vpop.f32.mrf.mxu0
      %v2139 = vadd.f32 0.0, %v2138
      %2140 = vmatmul.f32.gmra.mxu0 %v1632
      %v2141 = vpop.f32.mrf.mxu0
      %v2142 = vadd.f32 0.0, %v2141
      %2143 = vmatmul.f32.gmra.mxu0 %v625
      %v2144 = vpop.f32.mrf.mxu0
      %v2145 = vadd.f32 0.0, %v2144
      %2146 = vmatmul.f32.gmra.mxu0 %v625
      %v2147 = vpop.f32.mrf.mxu0
      %v2148 = vadd.f32 0.0, %v2147
      %2149 = vmatmul.f32.gmra.mxu0 %v1634
      %v2150 = vpop.f32.mrf.mxu0
      %v2151 = vadd.f32 0.0, %v2150
      %2152 = vmatmul.f32.gmra.mxu0 %v1636
      %v2153 = vpop.f32.mrf.mxu0
      %v2154 = vadd.f32 0.0, %v2153
      %2155 = vmatmul.f32.gmra.mxu0 %v625
      %v2156 = vpop.f32.mrf.mxu0
      %v2157 = vadd.f32 0.0, %v2156
      %2158 = vmatmul.f32.gmra.mxu0 %v625
      %v2159 = vpop.f32.mrf.mxu0
      %v2160 = vadd.f32 0.0, %v2159
      %2161 = vmatmul.f32.gmra.mxu0 %v1638
      %v2162 = vpop.f32.mrf.mxu0
      %v2163 = vadd.f32 0.0, %v2162
      %2164 = vmatmul.f32.gmra.mxu0 %v1640
      %v2165 = vpop.f32.mrf.mxu0
      %v2166 = vadd.f32 0.0, %v2165
      %2167 = vmatmul.f32.gmra.mxu0 %v625
      %v2168 = vpop.f32.mrf.mxu0
      %v2169 = vadd.f32 0.0, %v2168
      %2170 = vmatmul.f32.gmra.mxu0 %v625
      %v2171 = vpop.f32.mrf.mxu0
      %v2172 = vadd.f32 0.0, %v2171
      %2173 = vmatmul.f32.gmra.mxu0 %v1642
      %v2174 = vpop.f32.mrf.mxu0
      %v2175 = vadd.f32 0.0, %v2174
      %2176 = vmatmul.f32.gmra.mxu0 %v1644
      %v2177 = vpop.f32.mrf.mxu0
      %v2178 = vadd.f32 0.0, %v2177
      %2179 = vmatmul.f32.gmra.mxu0 %v625
      %v2180 = vpop.f32.mrf.mxu0
      %v2181 = vadd.f32 0.0, %v2180
      %2182 = vmatmul.f32.gmra.mxu0 %v625
      %v2183 = vpop.f32.mrf.mxu0
      %v2184 = vadd.f32 0.0, %v2183
      %2185 = vmatmul.f32.gmra.mxu0 %v1646
      %v2186 = vpop.f32.mrf.mxu0
      %v2187 = vadd.f32 0.0, %v2186
      %2188 = vmatmul.f32.gmra.mxu0 %v1648
      %v2189 = vpop.f32.mrf.mxu0
      %v2190 = vadd.f32 0.0, %v2189
      %2191 = vmatmul.f32.gmra.mxu0 %v625
      %v2192 = vpop.f32.mrf.mxu0
      %v2193 = vadd.f32 0.0, %v2192
      %2194 = vmatmul.f32.gmra.mxu0 %v625
      %v2195 = vpop.f32.mrf.mxu0
      %v2196 = vadd.f32 0.0, %v2195
      %2197 = vdwg.mxu0
      %v2198 = vadd.f32 %v2053, %v2103
      %v2199 = vadd.f32 %v2054, %v2106
      %v2200 = vadd.f32 %v2055, %v2109
      %v2201 = vadd.f32 %v2056, %v2112
      %v2202 = vadd.f32 %v2057, %v2115
      %v2203 = vadd.f32 %v2058, %v2118
      %v2204 = vadd.f32 %v2059, %v2121
      %v2205 = vadd.f32 %v2060, %v2124
      %v2206 = vadd.f32 %v2061, %v2127
      %v2207 = vadd.f32 %v2062, %v2130
      %v2208 = vadd.f32 %v2063, %v2133
      %v2209 = vadd.f32 %v2064, %v2136
      %v2210 = vadd.f32 %v2065, %v2139
      %v2211 = vadd.f32 %v2066, %v2142
      %v2212 = vadd.f32 %v2067, %v2145
      %v2213 = vadd.f32 %v2068, %v2148
      %v2214 = vadd.f32 %v2069, %v2151
      %v2215 = vadd.f32 %v2070, %v2154
      %v2216 = vadd.f32 %v2071, %v2157
      %v2217 = vadd.f32 %v2072, %v2160
      %v2218 = vadd.f32 %v2073, %v2163
      %v2219 = vadd.f32 %v2074, %v2166
      %v2220 = vadd.f32 %v2075, %v2169
      %v2221 = vadd.f32 %v2076, %v2172
      %v2222 = vadd.f32 %v2077, %v2175
      %v2223 = vadd.f32 %v2078, %v2178
      %v2224 = vadd.f32 %v2079, %v2181
      %v2225 = vadd.f32 %v2080, %v2184
      %v2226 = vadd.f32 %v2081, %v2187
      %v2227 = vadd.f32 %v2082, %v2190
      %v2228 = vadd.f32 %v2083, %v2193
      %v2229 = vadd.f32 %v2084, %v2196
      %2230 = vmatpush.msra.mxu0 0.0
      %2231 = vmatpush.msra.mxu0 0.0
      %2232 = vmatpush.msra.mxu0 0.0
      %2233 = vmatpush.msra.mxu0 0.0
      %2234 = vmatpush.msra.mxu0 0.0
      %2235 = vmatpush.msra.mxu0 0.0
      %2236 = vmatpush.msra.mxu0 0.0
      %2237 = vmatpush.msra.mxu0 0.0
      %2238 = vmatpush.msra.mxu0 0.0
      %2239 = vmatpush.msra.mxu0 0.0
      %2240 = vmatpush.msra.mxu0 0.0
      %2241 = vmatpush.msra.mxu0 0.0
      %2242 = vmatpush.msra.mxu0 0.0
      %2243 = vmatpush.msra.mxu0 0.0
      %2244 = vmatpush.msra.mxu0 %v1010
      %2245 = vmatpush.msra.mxu0 %v1009
      %2246 = vmatmul.f32.gmra.mxu0 %v564
      %v2247 = vpop.f32.mrf.mxu0
      %v2248 = vadd.f32 0.0, %v2247
      %2249 = vmatmul.f32.gmra.mxu0 %v564
      %v2250 = vpop.f32.mrf.mxu0
      %v2251 = vadd.f32 0.0, %v2250
      %2252 = vmatmul.f32.gmra.mxu0 %v1445
      %v2253 = vpop.f32.mrf.mxu0
      %v2254 = vadd.f32 0.0, %v2253
      %2255 = vmatmul.f32.gmra.mxu0 %v1447
      %v2256 = vpop.f32.mrf.mxu0
      %v2257 = vadd.f32 0.0, %v2256
      %2258 = vmatmul.f32.gmra.mxu0 %v564
      %v2259 = vpop.f32.mrf.mxu0
      %v2260 = vadd.f32 0.0, %v2259
      %2261 = vmatmul.f32.gmra.mxu0 %v564
      %v2262 = vpop.f32.mrf.mxu0
      %v2263 = vadd.f32 0.0, %v2262
      %2264 = vmatmul.f32.gmra.mxu0 %v1449
      %v2265 = vpop.f32.mrf.mxu0
      %v2266 = vadd.f32 0.0, %v2265
      %2267 = vmatmul.f32.gmra.mxu0 %v1451
      %v2268 = vpop.f32.mrf.mxu0
      %v2269 = vadd.f32 0.0, %v2268
      %2270 = vmatmul.f32.gmra.mxu0 %v564
      %v2271 = vpop.f32.mrf.mxu0
      %v2272 = vadd.f32 0.0, %v2271
      %2273 = vmatmul.f32.gmra.mxu0 %v564
      %v2274 = vpop.f32.mrf.mxu0
      %v2275 = vadd.f32 0.0, %v2274
      %2276 = vmatmul.f32.gmra.mxu0 %v1453
      %v2277 = vpop.f32.mrf.mxu0
      %v2278 = vadd.f32 0.0, %v2277
      %2279 = vmatmul.f32.gmra.mxu0 %v1455
      %v2280 = vpop.f32.mrf.mxu0
      %v2281 = vadd.f32 0.0, %v2280
      %2282 = vmatmul.f32.gmra.mxu0 %v564
      %v2283 = vpop.f32.mrf.mxu0
      %v2284 = vadd.f32 0.0, %v2283
      %2285 = vmatmul.f32.gmra.mxu0 %v564
      %v2286 = vpop.f32.mrf.mxu0
      %v2287 = vadd.f32 0.0, %v2286
      %2288 = vmatmul.f32.gmra.mxu0 %v1457
      %v2289 = vpop.f32.mrf.mxu0
      %v2290 = vadd.f32 0.0, %v2289
      %2291 = vmatmul.f32.gmra.mxu0 %v1459
      %v2292 = vpop.f32.mrf.mxu0
      %v2293 = vadd.f32 0.0, %v2292
      %2294 = vmatmul.f32.gmra.mxu0 %v564
      %v2295 = vpop.f32.mrf.mxu0
      %v2296 = vadd.f32 0.0, %v2295
      %2297 = vmatmul.f32.gmra.mxu0 %v564
      %v2298 = vpop.f32.mrf.mxu0
      %v2299 = vadd.f32 0.0, %v2298
      %2300 = vmatmul.f32.gmra.mxu0 %v1461
      %v2301 = vpop.f32.mrf.mxu0
      %v2302 = vadd.f32 0.0, %v2301
      %2303 = vmatmul.f32.gmra.mxu0 %v1463
      %v2304 = vpop.f32.mrf.mxu0
      %v2305 = vadd.f32 0.0, %v2304
      %2306 = vmatmul.f32.gmra.mxu0 %v564
      %v2307 = vpop.f32.mrf.mxu0
      %v2308 = vadd.f32 0.0, %v2307
      %2309 = vmatmul.f32.gmra.mxu0 %v564
      %v2310 = vpop.f32.mrf.mxu0
      %v2311 = vadd.f32 0.0, %v2310
      %2312 = vmatmul.f32.gmra.mxu0 %v1465
      %v2313 = vpop.f32.mrf.mxu0
      %v2314 = vadd.f32 0.0, %v2313
      %2315 = vmatmul.f32.gmra.mxu0 %v1467
      %v2316 = vpop.f32.mrf.mxu0
      %v2317 = vadd.f32 0.0, %v2316
      %2318 = vmatmul.f32.gmra.mxu0 %v564
      %v2319 = vpop.f32.mrf.mxu0
      %v2320 = vadd.f32 0.0, %v2319
      %2321 = vmatmul.f32.gmra.mxu0 %v564
      %v2322 = vpop.f32.mrf.mxu0
      %v2323 = vadd.f32 0.0, %v2322
      %2324 = vmatmul.f32.gmra.mxu0 %v1469
      %v2325 = vpop.f32.mrf.mxu0
      %v2326 = vadd.f32 0.0, %v2325
      %2327 = vmatmul.f32.gmra.mxu0 %v1471
      %v2328 = vpop.f32.mrf.mxu0
      %v2329 = vadd.f32 0.0, %v2328
      %2330 = vmatmul.f32.gmra.mxu0 %v564
      %v2331 = vpop.f32.mrf.mxu0
      %v2332 = vadd.f32 0.0, %v2331
      %2333 = vmatmul.f32.gmra.mxu0 %v564
      %v2334 = vpop.f32.mrf.mxu0
      %v2335 = vadd.f32 0.0, %v2334
      %2336 = vmatmul.f32.gmra.mxu0 %v564
      %v2337 = vpop.f32.mrf.mxu0
      %v2338 = vadd.f32 0.0, %v2337
      %2339 = vmatmul.f32.gmra.mxu0 %v564
      %v2340 = vpop.f32.mrf.mxu0
      %v2341 = vadd.f32 0.0, %v2340
      %2342 = vdwg.mxu0
      %v2343 = vadd.f32 %v2198, %v2248
      %v2344 = vadd.f32 %v2199, %v2251
      %v2345 = vadd.f32 %v2200, %v2254
      %v2346 = vadd.f32 %v2201, %v2257
      %v2347 = vadd.f32 %v2202, %v2260
      %v2348 = vadd.f32 %v2203, %v2263
      %v2349 = vadd.f32 %v2204, %v2266
      %v2350 = vadd.f32 %v2205, %v2269
      %v2351 = vadd.f32 %v2206, %v2272
      %v2352 = vadd.f32 %v2207, %v2275
      %v2353 = vadd.f32 %v2208, %v2278
      %v2354 = vadd.f32 %v2209, %v2281
      %v2355 = vadd.f32 %v2210, %v2284
      %v2356 = vadd.f32 %v2211, %v2287
      %v2357 = vadd.f32 %v2212, %v2290
      %v2358 = vadd.f32 %v2213, %v2293
      %v2359 = vadd.f32 %v2214, %v2296
      %v2360 = vadd.f32 %v2215, %v2299
      %v2361 = vadd.f32 %v2216, %v2302
      %v2362 = vadd.f32 %v2217, %v2305
      %v2363 = vadd.f32 %v2218, %v2308
      %v2364 = vadd.f32 %v2219, %v2311
      %v2365 = vadd.f32 %v2220, %v2314
      %v2366 = vadd.f32 %v2221, %v2317
      %v2367 = vadd.f32 %v2222, %v2320
      %v2368 = vadd.f32 %v2223, %v2323
      %v2369 = vadd.f32 %v2224, %v2326
      %v2370 = vadd.f32 %v2225, %v2329
      %v2371 = vadd.f32 %v2226, %v2332
      %v2372 = vadd.f32 %v2227, %v2335
      %v2373 = vadd.f32 %v2228, %v2338
      %v2374 = vadd.f32 %v2229, %v2341
      %2375 = vmatpush.msra.mxu0 0.0
      %2376 = vmatpush.msra.mxu0 0.0
      %2377 = vmatpush.msra.mxu0 0.0
      %2378 = vmatpush.msra.mxu0 0.0
      %2379 = vmatpush.msra.mxu0 0.0
      %2380 = vmatpush.msra.mxu0 0.0
      %2381 = vmatpush.msra.mxu0 0.0
      %2382 = vmatpush.msra.mxu0 0.0
      %2383 = vmatpush.msra.mxu0 0.0
      %2384 = vmatpush.msra.mxu0 0.0
      %2385 = vmatpush.msra.mxu0 0.0
      %2386 = vmatpush.msra.mxu0 0.0
      %2387 = vmatpush.msra.mxu0 0.0
      %2388 = vmatpush.msra.mxu0 0.0
      %2389 = vmatpush.msra.mxu0 %v1012
      %2390 = vmatpush.msra.mxu0 %v1011
      %2391 = vmatmul.f32.gmra.mxu0 %v513
      %v2392 = vpop.f32.mrf.mxu0
      %v2393 = vadd.f32 0.0, %v2392
      %2394 = vmatmul.f32.gmra.mxu0 %v513
      %v2395 = vpop.f32.mrf.mxu0
      %v2396 = vadd.f32 0.0, %v2395
      %2397 = vmatmul.f32.gmra.mxu0 %v1300
      %v2398 = vpop.f32.mrf.mxu0
      %v2399 = vadd.f32 0.0, %v2398
      %2400 = vmatmul.f32.gmra.mxu0 %v1302
      %v2401 = vpop.f32.mrf.mxu0
      %v2402 = vadd.f32 0.0, %v2401
      %2403 = vmatmul.f32.gmra.mxu0 %v513
      %v2404 = vpop.f32.mrf.mxu0
      %v2405 = vadd.f32 0.0, %v2404
      %2406 = vmatmul.f32.gmra.mxu0 %v513
      %v2407 = vpop.f32.mrf.mxu0
      %v2408 = vadd.f32 0.0, %v2407
      %2409 = vmatmul.f32.gmra.mxu0 %v1304
      %v2410 = vpop.f32.mrf.mxu0
      %v2411 = vadd.f32 0.0, %v2410
      %2412 = vmatmul.f32.gmra.mxu0 %v1306
      %v2413 = vpop.f32.mrf.mxu0
      %v2414 = vadd.f32 0.0, %v2413
      %2415 = vmatmul.f32.gmra.mxu0 %v513
      %v2416 = vpop.f32.mrf.mxu0
      %v2417 = vadd.f32 0.0, %v2416
      %2418 = vmatmul.f32.gmra.mxu0 %v513
      %v2419 = vpop.f32.mrf.mxu0
      %v2420 = vadd.f32 0.0, %v2419
      %2421 = vmatmul.f32.gmra.mxu0 %v1308
      %v2422 = vpop.f32.mrf.mxu0
      %v2423 = vadd.f32 0.0, %v2422
      %2424 = vmatmul.f32.gmra.mxu0 %v1310
      %v2425 = vpop.f32.mrf.mxu0
      %v2426 = vadd.f32 0.0, %v2425
      %2427 = vmatmul.f32.gmra.mxu0 %v513
      %v2428 = vpop.f32.mrf.mxu0
      %v2429 = vadd.f32 0.0, %v2428
      %2430 = vmatmul.f32.gmra.mxu0 %v513
      %v2431 = vpop.f32.mrf.mxu0
      %v2432 = vadd.f32 0.0, %v2431
      %2433 = vmatmul.f32.gmra.mxu0 %v1312
      %v2434 = vpop.f32.mrf.mxu0
      %v2435 = vadd.f32 0.0, %v2434
      %2436 = vmatmul.f32.gmra.mxu0 %v1314
      %v2437 = vpop.f32.mrf.mxu0
      %v2438 = vadd.f32 0.0, %v2437
      %2439 = vmatmul.f32.gmra.mxu0 %v513
      %v2440 = vpop.f32.mrf.mxu0
      %v2441 = vadd.f32 0.0, %v2440
      %2442 = vmatmul.f32.gmra.mxu0 %v513
      %v2443 = vpop.f32.mrf.mxu0
      %v2444 = vadd.f32 0.0, %v2443
      %2445 = vmatmul.f32.gmra.mxu0 %v1316
      %v2446 = vpop.f32.mrf.mxu0
      %v2447 = vadd.f32 0.0, %v2446
      %2448 = vmatmul.f32.gmra.mxu0 %v1318
      %v2449 = vpop.f32.mrf.mxu0
      %v2450 = vadd.f32 0.0, %v2449
      %2451 = vmatmul.f32.gmra.mxu0 %v513
      %v2452 = vpop.f32.mrf.mxu0
      %v2453 = vadd.f32 0.0, %v2452
      %2454 = vmatmul.f32.gmra.mxu0 %v513
      %v2455 = vpop.f32.mrf.mxu0
      %v2456 = vadd.f32 0.0, %v2455
      %2457 = vmatmul.f32.gmra.mxu0 %v1320
      %v2458 = vpop.f32.mrf.mxu0
      %v2459 = vadd.f32 0.0, %v2458
      %2460 = vmatmul.f32.gmra.mxu0 %v1322
      %v2461 = vpop.f32.mrf.mxu0
      %v2462 = vadd.f32 0.0, %v2461
      %2463 = vmatmul.f32.gmra.mxu0 %v513
      %v2464 = vpop.f32.mrf.mxu0
      %v2465 = vadd.f32 0.0, %v2464
      %2466 = vmatmul.f32.gmra.mxu0 %v513
      %v2467 = vpop.f32.mrf.mxu0
      %v2468 = vadd.f32 0.0, %v2467
      %2469 = vmatmul.f32.gmra.mxu0 %v1324
      %v2470 = vpop.f32.mrf.mxu0
      %v2471 = vadd.f32 0.0, %v2470
      %2472 = vmatmul.f32.gmra.mxu0 %v1326
      %v2473 = vpop.f32.mrf.mxu0
      %v2474 = vadd.f32 0.0, %v2473
      %2475 = vmatmul.f32.gmra.mxu0 %v513
      %v2476 = vpop.f32.mrf.mxu0
      %v2477 = vadd.f32 0.0, %v2476
      %2478 = vmatmul.f32.gmra.mxu0 %v513
      %v2479 = vpop.f32.mrf.mxu0
      %v2480 = vadd.f32 0.0, %v2479
      %2481 = vmatmul.f32.gmra.mxu0 %v513
      %v2482 = vpop.f32.mrf.mxu0
      %v2483 = vadd.f32 0.0, %v2482
      %2484 = vmatmul.f32.gmra.mxu0 %v513
      %v2485 = vpop.f32.mrf.mxu0
      %v2486 = vadd.f32 0.0, %v2485
      %2487 = vdwg.mxu0
      %v2488 = vadd.f32 %v2343, %v2393
      %v2489 = vadd.f32 %v2344, %v2396
      %v2490 = vadd.f32 %v2345, %v2399
      %v2491 = vadd.f32 %v2346, %v2402
      %v2492 = vadd.f32 %v2347, %v2405
      %v2493 = vadd.f32 %v2348, %v2408
      %v2494 = vadd.f32 %v2349, %v2411
      %v2495 = vadd.f32 %v2350, %v2414
      %v2496 = vadd.f32 %v2351, %v2417
      %v2497 = vadd.f32 %v2352, %v2420
      %v2498 = vadd.f32 %v2353, %v2423
      %v2499 = vadd.f32 %v2354, %v2426
      %v2500 = vadd.f32 %v2355, %v2429
      %v2501 = vadd.f32 %v2356, %v2432
      %v2502 = vadd.f32 %v2357, %v2435
      %v2503 = vadd.f32 %v2358, %v2438
      %v2504 = vadd.f32 %v2359, %v2441
      %v2505 = vadd.f32 %v2360, %v2444
      %v2506 = vadd.f32 %v2361, %v2447
      %v2507 = vadd.f32 %v2362, %v2450
      %v2508 = vadd.f32 %v2363, %v2453
      %v2509 = vadd.f32 %v2364, %v2456
      %v2510 = vadd.f32 %v2365, %v2459
      %v2511 = vadd.f32 %v2366, %v2462
      %v2512 = vadd.f32 %v2367, %v2465
      %v2513 = vadd.f32 %v2368, %v2468
      %v2514 = vadd.f32 %v2369, %v2471
      %v2515 = vadd.f32 %v2370, %v2474
      %v2516 = vadd.f32 %v2371, %v2477
      %v2517 = vadd.f32 %v2372, %v2480
      %v2518 = vadd.f32 %v2373, %v2483
      %v2519 = vadd.f32 %v2374, %v2486
      %2520 = vmatpush.msra.mxu0 0.0
      %2521 = vmatpush.msra.mxu0 0.0
      %2522 = vmatpush.msra.mxu0 0.0
      %2523 = vmatpush.msra.mxu0 0.0
      %2524 = vmatpush.msra.mxu0 0.0
      %2525 = vmatpush.msra.mxu0 0.0
      %2526 = vmatpush.msra.mxu0 0.0
      %2527 = vmatpush.msra.mxu0 0.0
      %2528 = vmatpush.msra.mxu0 0.0
      %2529 = vmatpush.msra.mxu0 0.0
      %2530 = vmatpush.msra.mxu0 0.0
      %2531 = vmatpush.msra.mxu0 0.0
      %2532 = vmatpush.msra.mxu0 0.0
      %2533 = vmatpush.msra.mxu0 0.0
      %2534 = vmatpush.msra.mxu0 %v1014
      %2535 = vmatpush.msra.mxu0 %v1013
      %2536 = vmatmul.f32.gmra.mxu0 %v625
      %v2537 = vpop.f32.mrf.mxu0
      %v2538 = vadd.f32 0.0, %v2537
      %2539 = vmatmul.f32.gmra.mxu0 %v625
      %v2540 = vpop.f32.mrf.mxu0
      %v2541 = vadd.f32 0.0, %v2540
      %2542 = vmatmul.f32.gmra.mxu0 %v1622
      %v2543 = vpop.f32.mrf.mxu0
      %v2544 = vadd.f32 0.0, %v2543
      %2545 = vmatmul.f32.gmra.mxu0 %v1624
      %v2546 = vpop.f32.mrf.mxu0
      %v2547 = vadd.f32 0.0, %v2546
      %2548 = vmatmul.f32.gmra.mxu0 %v625
      %v2549 = vpop.f32.mrf.mxu0
      %v2550 = vadd.f32 0.0, %v2549
      %2551 = vmatmul.f32.gmra.mxu0 %v625
      %v2552 = vpop.f32.mrf.mxu0
      %v2553 = vadd.f32 0.0, %v2552
      %2554 = vmatmul.f32.gmra.mxu0 %v1626
      %v2555 = vpop.f32.mrf.mxu0
      %v2556 = vadd.f32 0.0, %v2555
      %2557 = vmatmul.f32.gmra.mxu0 %v1628
      %v2558 = vpop.f32.mrf.mxu0
      %v2559 = vadd.f32 0.0, %v2558
      %2560 = vmatmul.f32.gmra.mxu0 %v625
      %v2561 = vpop.f32.mrf.mxu0
      %v2562 = vadd.f32 0.0, %v2561
      %2563 = vmatmul.f32.gmra.mxu0 %v625
      %v2564 = vpop.f32.mrf.mxu0
      %v2565 = vadd.f32 0.0, %v2564
      %2566 = vmatmul.f32.gmra.mxu0 %v1630
      %v2567 = vpop.f32.mrf.mxu0
      %v2568 = vadd.f32 0.0, %v2567
      %2569 = vmatmul.f32.gmra.mxu0 %v1632
      %v2570 = vpop.f32.mrf.mxu0
      %v2571 = vadd.f32 0.0, %v2570
      %2572 = vmatmul.f32.gmra.mxu0 %v625
      %v2573 = vpop.f32.mrf.mxu0
      %v2574 = vadd.f32 0.0, %v2573
      %2575 = vmatmul.f32.gmra.mxu0 %v625
      %v2576 = vpop.f32.mrf.mxu0
      %v2577 = vadd.f32 0.0, %v2576
      %2578 = vmatmul.f32.gmra.mxu0 %v1634
      %v2579 = vpop.f32.mrf.mxu0
      %v2580 = vadd.f32 0.0, %v2579
      %2581 = vmatmul.f32.gmra.mxu0 %v1636
      %v2582 = vpop.f32.mrf.mxu0
      %v2583 = vadd.f32 0.0, %v2582
      %2584 = vmatmul.f32.gmra.mxu0 %v625
      %v2585 = vpop.f32.mrf.mxu0
      %v2586 = vadd.f32 0.0, %v2585
      %2587 = vmatmul.f32.gmra.mxu0 %v625
      %v2588 = vpop.f32.mrf.mxu0
      %v2589 = vadd.f32 0.0, %v2588
      %2590 = vmatmul.f32.gmra.mxu0 %v1638
      %v2591 = vpop.f32.mrf.mxu0
      %v2592 = vadd.f32 0.0, %v2591
      %2593 = vmatmul.f32.gmra.mxu0 %v1640
      %v2594 = vpop.f32.mrf.mxu0
      %v2595 = vadd.f32 0.0, %v2594
      %2596 = vmatmul.f32.gmra.mxu0 %v625
      %v2597 = vpop.f32.mrf.mxu0
      %v2598 = vadd.f32 0.0, %v2597
      %2599 = vmatmul.f32.gmra.mxu0 %v625
      %v2600 = vpop.f32.mrf.mxu0
      %v2601 = vadd.f32 0.0, %v2600
      %2602 = vmatmul.f32.gmra.mxu0 %v1642
      %v2603 = vpop.f32.mrf.mxu0
      %v2604 = vadd.f32 0.0, %v2603
      %2605 = vmatmul.f32.gmra.mxu0 %v1644
      %v2606 = vpop.f32.mrf.mxu0
      %v2607 = vadd.f32 0.0, %v2606
      %2608 = vmatmul.f32.gmra.mxu0 %v625
      %v2609 = vpop.f32.mrf.mxu0
      %v2610 = vadd.f32 0.0, %v2609
      %2611 = vmatmul.f32.gmra.mxu0 %v625
      %v2612 = vpop.f32.mrf.mxu0
      %v2613 = vadd.f32 0.0, %v2612
      %2614 = vmatmul.f32.gmra.mxu0 %v1646
      %v2615 = vpop.f32.mrf.mxu0
      %v2616 = vadd.f32 0.0, %v2615
      %2617 = vmatmul.f32.gmra.mxu0 %v1648
      %v2618 = vpop.f32.mrf.mxu0
      %v2619 = vadd.f32 0.0, %v2618
      %2620 = vmatmul.f32.gmra.mxu0 %v625
      %v2621 = vpop.f32.mrf.mxu0
      %v2622 = vadd.f32 0.0, %v2621
      %2623 = vmatmul.f32.gmra.mxu0 %v625
      %v2624 = vpop.f32.mrf.mxu0
      %v2625 = vadd.f32 0.0, %v2624
      %2626 = vmatmul.f32.gmra.mxu0 %v625
      %v2627 = vpop.f32.mrf.mxu0
      %v2628 = vadd.f32 0.0, %v2627
      %2629 = vmatmul.f32.gmra.mxu0 %v625
      %v2630 = vpop.f32.mrf.mxu0
      %v2631 = vadd.f32 0.0, %v2630
      %2632 = vdwg.mxu0
      %v2633 = vadd.f32 %v2488, %v2538
      %v2634 = vadd.f32 %v2489, %v2541
      %v2635 = vadd.f32 %v2490, %v2544
      %v2636 = vadd.f32 %v2491, %v2547
      %v2637 = vadd.f32 %v2492, %v2550
      %v2638 = vadd.f32 %v2493, %v2553
      %v2639 = vadd.f32 %v2494, %v2556
      %v2640 = vadd.f32 %v2495, %v2559
      %v2641 = vadd.f32 %v2496, %v2562
      %v2642 = vadd.f32 %v2497, %v2565
      %v2643 = vadd.f32 %v2498, %v2568
      %v2644 = vadd.f32 %v2499, %v2571
      %v2645 = vadd.f32 %v2500, %v2574
      %v2646 = vadd.f32 %v2501, %v2577
      %v2647 = vadd.f32 %v2502, %v2580
      %v2648 = vadd.f32 %v2503, %v2583
      %v2649 = vadd.f32 %v2504, %v2586
      %v2650 = vadd.f32 %v2505, %v2589
      %v2651 = vadd.f32 %v2506, %v2592
      %v2652 = vadd.f32 %v2507, %v2595
      %v2653 = vadd.f32 %v2508, %v2598
      %v2654 = vadd.f32 %v2509, %v2601
      %v2655 = vadd.f32 %v2510, %v2604
      %v2656 = vadd.f32 %v2511, %v2607
      %v2657 = vadd.f32 %v2512, %v2610
      %v2658 = vadd.f32 %v2513, %v2613
      %v2659 = vadd.f32 %v2514, %v2616
      %v2660 = vadd.f32 %v2515, %v2619
      %v2661 = vadd.f32 %v2516, %v2622
      %v2662 = vadd.f32 %v2517, %v2625
      %v2663 = vadd.f32 %v2518, %v2628
      %v2664 = vadd.f32 %v2519, %v2631
      %v2666 = vperm.slane %v1015, 0
      %v2668 = vadd.f32 %v2633, %v2666
      %v2669 = vadd.f32 %v2634, %v2666
      %v2670 = vadd.f32 %v2635, %v2666
      %v2671 = vadd.f32 %v2636, %v2666
      %v2672 = vadd.f32 %v2637, %v2666
      %v2673 = vadd.f32 %v2638, %v2666
      %v2674 = vadd.f32 %v2639, %v2666
      %v2675 = vadd.f32 %v2640, %v2666
      %v2676 = vadd.f32 %v2641, %v2666
      %v2677 = vadd.f32 %v2642, %v2666
      %v2678 = vadd.f32 %v2643, %v2666
      %v2679 = vadd.f32 %v2644, %v2666
      %v2680 = vadd.f32 %v2645, %v2666
      %v2681 = vadd.f32 %v2646, %v2666
      %v2682 = vadd.f32 %v2647, %v2666
      %v2683 = vadd.f32 %v2648, %v2666
      %v2684 = vadd.f32 %v2649, %v2666
      %v2685 = vadd.f32 %v2650, %v2666
      %v2686 = vadd.f32 %v2651, %v2666
      %v2687 = vadd.f32 %v2652, %v2666
      %v2688 = vadd.f32 %v2653, %v2666
      %v2689 = vadd.f32 %v2654, %v2666
      %v2690 = vadd.f32 %v2655, %v2666
      %v2691 = vadd.f32 %v2656, %v2666
      %v2692 = vadd.f32 %v2657, %v2666
      %v2693 = vadd.f32 %v2658, %v2666
      %v2694 = vadd.f32 %v2659, %v2666
      %v2695 = vadd.f32 %v2660, %v2666
      %v2696 = vadd.f32 %v2661, %v2666
      %v2697 = vadd.f32 %v2662, %v2666
      %v2698 = vadd.f32 %v2663, %v2666
      %v2699 = vadd.f32 %v2664, %v2666
      %v2700 = vmax.f32 %v2668, 0.0
      %v2701 = vmax.f32 %v2669, 0.0
      %v2702 = vmax.f32 %v2670, 0.0
      %v2703 = vmax.f32 %v2671, 0.0
      %v2704 = vmax.f32 %v2672, 0.0
      %v2705 = vmax.f32 %v2673, 0.0
      %v2706 = vmax.f32 %v2674, 0.0
      %v2707 = vmax.f32 %v2675, 0.0
      %v2708 = vmax.f32 %v2676, 0.0
      %v2709 = vmax.f32 %v2677, 0.0
      %v2710 = vmax.f32 %v2678, 0.0
      %v2711 = vmax.f32 %v2679, 0.0
      %v2712 = vmax.f32 %v2680, 0.0
      %v2713 = vmax.f32 %v2681, 0.0
      %v2714 = vmax.f32 %v2682, 0.0
      %v2715 = vmax.f32 %v2683, 0.0
      %v2716 = vmax.f32 %v2684, 0.0
      %v2717 = vmax.f32 %v2685, 0.0
      %v2718 = vmax.f32 %v2686, 0.0
      %v2719 = vmax.f32 %v2687, 0.0
      %v2720 = vmax.f32 %v2688, 0.0
      %v2721 = vmax.f32 %v2689, 0.0
      %v2722 = vmax.f32 %v2690, 0.0
      %v2723 = vmax.f32 %v2691, 0.0
      %v2724 = vmax.f32 %v2692, 0.0
      %v2725 = vmax.f32 %v2693, 0.0
      %v2726 = vmax.f32 %v2694, 0.0
      %v2727 = vmax.f32 %v2695, 0.0
      %v2728 = vmax.f32 %v2696, 0.0
      %v2729 = vmax.f32 %v2697, 0.0
      %v2730 = vmax.f32 %v2698, 0.0
      %v2731 = vmax.f32 %v2699, 0.0
      %v2732 = vld [vmem:[%s7] sm:$0xff]
      %v2733 = vld [vmem:[%s7 + $0x8] sm:$0xff]
      %v2734 = vld [vmem:[%s7 + $0x10] sm:$0xff]
      %v2735 = vld [vmem:[%s7 + $0x18] sm:$0xff]
      %v2736 = vld [vmem:[%s7 + $0x20] sm:$0xff]
      %v2737 = vld [vmem:[%s7 + $0x28] sm:$0xff]
      %v2738 = vld [vmem:[%s7 + $0x30] sm:$0xff]
      %v2739 = vld [vmem:[%s7 + $0x38] sm:$0xff]
      %v2740 = vld [vmem:[%s7 + $0x40] sm:$0xff]
      %v2741 = vld [vmem:[%s8] sm:$0x1]
      %v2774 = vrot.slane %v2700, 7
      %v2775 = vrot.slane %v2701, 7
      %v2776 = vsel %vm386, %v2774, %v2775
      %v2777 = vrot.slane %v2702, 7
      %v2778 = vrot.slane %v2703, 7
      %v2779 = vsel %vm386, %v2777, %v2778
      %v2780 = vrot.slane %v2704, 7
      %v2781 = vrot.slane %v2705, 7
      %v2782 = vsel %vm386, %v2780, %v2781
      %v2783 = vrot.slane %v2706, 7
      %v2784 = vrot.slane %v2707, 7
      %v2785 = vsel %vm386, %v2783, %v2784
      %v2786 = vrot.slane %v2708, 7
      %v2787 = vrot.slane %v2709, 7
      %v2788 = vsel %vm386, %v2786, %v2787
      %v2789 = vrot.slane %v2710, 7
      %v2790 = vrot.slane %v2711, 7
      %v2791 = vsel %vm386, %v2789, %v2790
      %v2792 = vrot.slane %v2712, 7
      %v2793 = vrot.slane %v2713, 7
      %v2794 = vsel %vm386, %v2792, %v2793
      %v2795 = vrot.slane %v2714, 7
      %v2796 = vrot.slane %v2715, 7
      %v2797 = vsel %vm386, %v2795, %v2796
      %v2798 = vrot.slane %v2716, 7
      %v2799 = vrot.slane %v2717, 7
      %v2800 = vsel %vm386, %v2798, %v2799
      %v2801 = vrot.slane %v2718, 7
      %v2802 = vrot.slane %v2719, 7
      %v2803 = vsel %vm386, %v2801, %v2802
      %v2804 = vrot.slane %v2720, 7
      %v2805 = vrot.slane %v2721, 7
      %v2806 = vsel %vm386, %v2804, %v2805
      %v2807 = vrot.slane %v2722, 7
      %v2808 = vrot.slane %v2723, 7
      %v2809 = vsel %vm386, %v2807, %v2808
      %v2810 = vrot.slane %v2724, 7
      %v2811 = vrot.slane %v2725, 7
      %v2812 = vsel %vm386, %v2810, %v2811
      %v2813 = vrot.slane %v2726, 7
      %v2814 = vrot.slane %v2727, 7
      %v2815 = vsel %vm386, %v2813, %v2814
      %v2816 = vrot.slane %v2728, 7
      %v2817 = vrot.slane %v2729, 7
      %v2818 = vsel %vm386, %v2816, %v2817
      %v2819 = vrot.slane %v2730, 7
      %v2820 = vrot.slane %v2731, 7
      %v2821 = vsel %vm386, %v2819, %v2820
      %v2854 = vsel %vm386, 0.0, %v2774
      %v2855 = vsel %vm386, 0.0, %v2777
      %v2856 = vsel %vm386, 0.0, %v2780
      %v2857 = vsel %vm386, 0.0, %v2783
      %v2858 = vsel %vm386, 0.0, %v2786
      %v2859 = vsel %vm386, 0.0, %v2789
      %v2860 = vsel %vm386, 0.0, %v2792
      %v2861 = vsel %vm386, 0.0, %v2795
      %v2862 = vsel %vm386, 0.0, %v2798
      %v2863 = vsel %vm386, 0.0, %v2801
      %v2864 = vsel %vm386, 0.0, %v2804
      %v2865 = vsel %vm386, 0.0, %v2807
      %v2866 = vsel %vm386, 0.0, %v2810
      %v2867 = vsel %vm386, 0.0, %v2813
      %v2868 = vsel %vm386, 0.0, %v2816
      %v2869 = vsel %vm386, 0.0, %v2819
      %v2870 = vsel %vm386, %v2775, 0.0
      %v2871 = vsel %vm386, %v2778, 0.0
      %v2872 = vsel %vm386, %v2781, 0.0
      %v2873 = vsel %vm386, %v2784, 0.0
      %v2874 = vsel %vm386, %v2787, 0.0
      %v2875 = vsel %vm386, %v2790, 0.0
      %v2876 = vsel %vm386, %v2793, 0.0
      %v2877 = vsel %vm386, %v2796, 0.0
      %v2878 = vsel %vm386, %v2799, 0.0
      %v2879 = vsel %vm386, %v2802, 0.0
      %v2880 = vsel %vm386, %v2805, 0.0
      %v2881 = vsel %vm386, %v2808, 0.0
      %v2882 = vsel %vm386, %v2811, 0.0
      %v2883 = vsel %vm386, %v2814, 0.0
      %v2884 = vsel %vm386, %v2817, 0.0
      %v2885 = vsel %vm386, %v2820, 0.0
      %v2916 = vrot.slane %v2854, 1
      %v2917 = vrot.slane %v2776, 1
      %v2918 = vsel %vm492, %v2916, %v2917
      %v2919 = vrot.slane %v2870, 1
      %v2920 = vsel %vm492, %v2917, %v2919
      %v2921 = vrot.slane %v2855, 1
      %v2922 = vrot.slane %v2779, 1
      %v2923 = vsel %vm492, %v2921, %v2922
      %v2924 = vrot.slane %v2871, 1
      %v2925 = vsel %vm492, %v2922, %v2924
      %v2926 = vrot.slane %v2856, 1
      %v2927 = vrot.slane %v2782, 1
      %v2928 = vsel %vm492, %v2926, %v2927
      %v2929 = vrot.slane %v2872, 1
      %v2930 = vsel %vm492, %v2927, %v2929
      %v2931 = vrot.slane %v2857, 1
      %v2932 = vrot.slane %v2785, 1
      %v2933 = vsel %vm492, %v2931, %v2932
      %v2934 = vrot.slane %v2873, 1
      %v2935 = vsel %vm492, %v2932, %v2934
      %v2936 = vrot.slane %v2858, 1
      %v2937 = vrot.slane %v2788, 1
      %v2938 = vsel %vm492, %v2936, %v2937
      %v2939 = vrot.slane %v2874, 1
      %v2940 = vsel %vm492, %v2937, %v2939
      %v2941 = vrot.slane %v2859, 1
      %v2942 = vrot.slane %v2791, 1
      %v2943 = vsel %vm492, %v2941, %v2942
      %v2944 = vrot.slane %v2875, 1
      %v2945 = vsel %vm492, %v2942, %v2944
      %v2946 = vrot.slane %v2860, 1
      %v2947 = vrot.slane %v2794, 1
      %v2948 = vsel %vm492, %v2946, %v2947
      %v2949 = vrot.slane %v2876, 1
      %v2950 = vsel %vm492, %v2947, %v2949
      %v2951 = vrot.slane %v2861, 1
      %v2952 = vrot.slane %v2797, 1
      %v2953 = vsel %vm492, %v2951, %v2952
      %v2954 = vrot.slane %v2877, 1
      %v2955 = vsel %vm492, %v2952, %v2954
      %v2956 = vrot.slane %v2862, 1
      %v2957 = vrot.slane %v2800, 1
      %v2958 = vsel %vm492, %v2956, %v2957
      %v2959 = vrot.slane %v2878, 1
      %v2960 = vsel %vm492, %v2957, %v2959
      %v2961 = vrot.slane %v2863, 1
      %v2962 = vrot.slane %v2803, 1
      %v2963 = vsel %vm492, %v2961, %v2962
      %v2964 = vrot.slane %v2879, 1
      %v2965 = vsel %vm492, %v2962, %v2964
      %v2966 = vrot.slane %v2864, 1
      %v2967 = vrot.slane %v2806, 1
      %v2968 = vsel %vm492, %v2966, %v2967
      %v2969 = vrot.slane %v2880, 1
      %v2970 = vsel %vm492, %v2967, %v2969
      %v2971 = vrot.slane %v2865, 1
      %v2972 = vrot.slane %v2809, 1
      %v2973 = vsel %vm492, %v2971, %v2972
      %v2974 = vrot.slane %v2881, 1
      %v2975 = vsel %vm492, %v2972, %v2974
      %v2976 = vrot.slane %v2866, 1
      %v2977 = vrot.slane %v2812, 1
      %v2978 = vsel %vm492, %v2976, %v2977
      %v2979 = vrot.slane %v2882, 1
      %v2980 = vsel %vm492, %v2977, %v2979
      %v2981 = vrot.slane %v2867, 1
      %v2982 = vrot.slane %v2815, 1
      %v2983 = vsel %vm492, %v2981, %v2982
      %v2984 = vrot.slane %v2883, 1
      %v2985 = vsel %vm492, %v2982, %v2984
      %v2986 = vrot.slane %v2868, 1
      %v2987 = vrot.slane %v2818, 1
      %v2988 = vsel %vm492, %v2986, %v2987
      %v2989 = vrot.slane %v2884, 1
      %v2990 = vsel %vm492, %v2987, %v2989
      %vm2991 = vcmask 64512
      %v2992 = vsel %vm2991, %v503, 0
      %v2994 = vsel %vm2991, %v2918, 0
      %v2996 = vsel %vm2991, %v2920, 0
      %v2998 = vsel %vm2991, %v2923, 0
      %v3000 = vsel %vm2991, %v2925, 0
      %v3002 = vsel %vm2991, %v2928, 0
      %v3004 = vsel %vm2991, %v2930, 0
      %v3006 = vsel %vm2991, %v2933, 0
      %v3008 = vsel %vm2991, %v2935, 0
      %v3010 = vsel %vm2991, %v2938, 0
      %v3012 = vsel %vm2991, %v2940, 0
      %v3014 = vsel %vm2991, %v2943, 0
      %v3016 = vsel %vm2991, %v2945, 0
      %v3018 = vsel %vm2991, %v2948, 0
      %v3020 = vsel %vm2991, %v2950, 0
      %v3022 = vsel %vm2991, %v2953, 0
      %v3024 = vsel %vm2991, %v2955, 0
      %v3026 = vsel %vm2991, %v2958, 0
      %v3028 = vsel %vm2991, %v2960, 0
      %v3030 = vsel %vm2991, %v2963, 0
      %v3032 = vsel %vm2991, %v2965, 0
      %v3034 = vsel %vm2991, %v2968, 0
      %v3036 = vsel %vm2991, %v2970, 0
      %v3038 = vsel %vm2991, %v2973, 0
      %v3040 = vsel %vm2991, %v2975, 0
      %v3042 = vsel %vm2991, %v2978, 0
      %v3044 = vsel %vm2991, %v2980, 0
      %v3046 = vsel %vm2991, %v2983, 0
      %v3048 = vsel %vm2991, %v2985, 0
      %v3050 = vsel %vm2991, %v2988, 0
      %v3052 = vsel %vm2991, %v2990, 0
      %3054 = vmatpush.msra.mxu0 0.0
      %3055 = vmatpush.msra.mxu0 0.0
      %3056 = vmatpush.msra.mxu0 0.0
      %3057 = vmatpush.msra.mxu0 0.0
      %3058 = vmatpush.msra.mxu0 0.0
      %3059 = vmatpush.msra.mxu0 0.0
      %3060 = vmatpush.msra.mxu0 0.0
      %3061 = vmatpush.msra.mxu0 0.0
      %3062 = vmatpush.msra.mxu0 0.0
      %3063 = vmatpush.msra.mxu0 0.0
      %3064 = vmatpush.msra.mxu0 0.0
      %3065 = vmatpush.msra.mxu0 0.0
      %3066 = vmatpush.msra.mxu0 0.0
      %3067 = vmatpush.msra.mxu0 0.0
      %3068 = vmatpush.msra.mxu0 0.0
      %3069 = vmatpush.msra.mxu0 %v2733
      %3070 = vmatmul.f32.gmra.mxu0 %v2992
      %v3071 = vpop.f32.mrf.mxu0
      %v3072 = vadd.f32 0.0, %v3071
      %3073 = vmatmul.f32.gmra.mxu0 %v2992
      %v3074 = vpop.f32.mrf.mxu0
      %v3075 = vadd.f32 0.0, %v3074
      %3076 = vmatmul.f32.gmra.mxu0 %v2994
      %v3077 = vpop.f32.mrf.mxu0
      %v3078 = vadd.f32 0.0, %v3077
      %3079 = vmatmul.f32.gmra.mxu0 %v2996
      %v3080 = vpop.f32.mrf.mxu0
      %v3081 = vadd.f32 0.0, %v3080
      %3082 = vmatmul.f32.gmra.mxu0 %v2998
      %v3083 = vpop.f32.mrf.mxu0
      %v3084 = vadd.f32 0.0, %v3083
      %3085 = vmatmul.f32.gmra.mxu0 %v3000
      %v3086 = vpop.f32.mrf.mxu0
      %v3087 = vadd.f32 0.0, %v3086
      %3088 = vmatmul.f32.gmra.mxu0 %v3002
      %v3089 = vpop.f32.mrf.mxu0
      %v3090 = vadd.f32 0.0, %v3089
      %3091 = vmatmul.f32.gmra.mxu0 %v3004
      %v3092 = vpop.f32.mrf.mxu0
      %v3093 = vadd.f32 0.0, %v3092
      %3094 = vmatmul.f32.gmra.mxu0 %v3006
      %v3095 = vpop.f32.mrf.mxu0
      %v3096 = vadd.f32 0.0, %v3095
      %3097 = vmatmul.f32.gmra.mxu0 %v3008
      %v3098 = vpop.f32.mrf.mxu0
      %v3099 = vadd.f32 0.0, %v3098
      %3100 = vmatmul.f32.gmra.mxu0 %v3010
      %v3101 = vpop.f32.mrf.mxu0
      %v3102 = vadd.f32 0.0, %v3101
      %3103 = vmatmul.f32.gmra.mxu0 %v3012
      %v3104 = vpop.f32.mrf.mxu0
      %v3105 = vadd.f32 0.0, %v3104
      %3106 = vmatmul.f32.gmra.mxu0 %v3014
      %v3107 = vpop.f32.mrf.mxu0
      %v3108 = vadd.f32 0.0, %v3107
      %3109 = vmatmul.f32.gmra.mxu0 %v3016
      %v3110 = vpop.f32.mrf.mxu0
      %v3111 = vadd.f32 0.0, %v3110
      %3112 = vmatmul.f32.gmra.mxu0 %v3018
      %v3113 = vpop.f32.mrf.mxu0
      %v3114 = vadd.f32 0.0, %v3113
      %3115 = vmatmul.f32.gmra.mxu0 %v3020
      %v3116 = vpop.f32.mrf.mxu0
      %v3117 = vadd.f32 0.0, %v3116
      %3118 = vmatmul.f32.gmra.mxu0 %v3022
      %v3119 = vpop.f32.mrf.mxu0
      %v3120 = vadd.f32 0.0, %v3119
      %3121 = vmatmul.f32.gmra.mxu0 %v3024
      %v3122 = vpop.f32.mrf.mxu0
      %v3123 = vadd.f32 0.0, %v3122
      %3124 = vmatmul.f32.gmra.mxu0 %v3026
      %v3125 = vpop.f32.mrf.mxu0
      %v3126 = vadd.f32 0.0, %v3125
      %3127 = vmatmul.f32.gmra.mxu0 %v3028
      %v3128 = vpop.f32.mrf.mxu0
      %v3129 = vadd.f32 0.0, %v3128
      %3130 = vmatmul.f32.gmra.mxu0 %v3030
      %v3131 = vpop.f32.mrf.mxu0
      %v3132 = vadd.f32 0.0, %v3131
      %3133 = vmatmul.f32.gmra.mxu0 %v3032
      %v3134 = vpop.f32.mrf.mxu0
      %v3135 = vadd.f32 0.0, %v3134
      %3136 = vmatmul.f32.gmra.mxu0 %v3034
      %v3137 = vpop.f32.mrf.mxu0
      %v3138 = vadd.f32 0.0, %v3137
      %3139 = vmatmul.f32.gmra.mxu0 %v3036
      %v3140 = vpop.f32.mrf.mxu0
      %v3141 = vadd.f32 0.0, %v3140
      %3142 = vmatmul.f32.gmra.mxu0 %v3038
      %v3143 = vpop.f32.mrf.mxu0
      %v3144 = vadd.f32 0.0, %v3143
      %3145 = vmatmul.f32.gmra.mxu0 %v3040
      %v3146 = vpop.f32.mrf.mxu0
      %v3147 = vadd.f32 0.0, %v3146
      %3148 = vmatmul.f32.gmra.mxu0 %v3042
      %v3149 = vpop.f32.mrf.mxu0
      %v3150 = vadd.f32 0.0, %v3149
      %3151 = vmatmul.f32.gmra.mxu0 %v3044
      %v3152 = vpop.f32.mrf.mxu0
      %v3153 = vadd.f32 0.0, %v3152
      %3154 = vmatmul.f32.gmra.mxu0 %v3046
      %v3155 = vpop.f32.mrf.mxu0
      %v3156 = vadd.f32 0.0, %v3155
      %3157 = vmatmul.f32.gmra.mxu0 %v3048
      %v3158 = vpop.f32.mrf.mxu0
      %v3159 = vadd.f32 0.0, %v3158
      %3160 = vmatmul.f32.gmra.mxu0 %v3050
      %v3161 = vpop.f32.mrf.mxu0
      %v3162 = vadd.f32 0.0, %v3161
      %3163 = vmatmul.f32.gmra.mxu0 %v3052
      %v3164 = vpop.f32.mrf.mxu0
      %v3165 = vadd.f32 0.0, %v3164
      %3166 = vdwg.mxu0
      %v3167 = vsel %vm2991, 0.0, 0
      %v3169 = vsel %vm2991, %v2854, 0
      %v3171 = vsel %vm2991, %v2776, 0
      %v3173 = vsel %vm2991, %v2855, 0
      %v3175 = vsel %vm2991, %v2779, 0
      %v3177 = vsel %vm2991, %v2856, 0
      %v3179 = vsel %vm2991, %v2782, 0
      %v3181 = vsel %vm2991, %v2857, 0
      %v3183 = vsel %vm2991, %v2785, 0
      %v3185 = vsel %vm2991, %v2858, 0
      %v3187 = vsel %vm2991, %v2788, 0
      %v3189 = vsel %vm2991, %v2859, 0
      %v3191 = vsel %vm2991, %v2791, 0
      %v3193 = vsel %vm2991, %v2860, 0
      %v3195 = vsel %vm2991, %v2794, 0
      %v3197 = vsel %vm2991, %v2861, 0
      %v3199 = vsel %vm2991, %v2797, 0
      %v3201 = vsel %vm2991, %v2862, 0
      %v3203 = vsel %vm2991, %v2800, 0
      %v3205 = vsel %vm2991, %v2863, 0
      %v3207 = vsel %vm2991, %v2803, 0
      %v3209 = vsel %vm2991, %v2864, 0
      %v3211 = vsel %vm2991, %v2806, 0
      %v3213 = vsel %vm2991, %v2865, 0
      %v3215 = vsel %vm2991, %v2809, 0
      %v3217 = vsel %vm2991, %v2866, 0
      %v3219 = vsel %vm2991, %v2812, 0
      %v3221 = vsel %vm2991, %v2867, 0
      %v3223 = vsel %vm2991, %v2815, 0
      %v3225 = vsel %vm2991, %v2868, 0
      %v3227 = vsel %vm2991, %v2818, 0
      %3229 = vmatpush.msra.mxu0 0.0
      %3230 = vmatpush.msra.mxu0 0.0
      %3231 = vmatpush.msra.mxu0 0.0
      %3232 = vmatpush.msra.mxu0 0.0
      %3233 = vmatpush.msra.mxu0 0.0
      %3234 = vmatpush.msra.mxu0 0.0
      %3235 = vmatpush.msra.mxu0 0.0
      %3236 = vmatpush.msra.mxu0 0.0
      %3237 = vmatpush.msra.mxu0 0.0
      %3238 = vmatpush.msra.mxu0 0.0
      %3239 = vmatpush.msra.mxu0 0.0
      %3240 = vmatpush.msra.mxu0 0.0
      %3241 = vmatpush.msra.mxu0 0.0
      %3242 = vmatpush.msra.mxu0 0.0
      %3243 = vmatpush.msra.mxu0 0.0
      %3244 = vmatpush.msra.mxu0 %v2732
      %3245 = vmatmul.f32.gmra.mxu0 %v3167
      %v3246 = vpop.f32.mrf.mxu0
      %v3247 = vadd.f32 %v3072, %v3246
      %3248 = vmatmul.f32.gmra.mxu0 %v3167
      %v3249 = vpop.f32.mrf.mxu0
      %v3250 = vadd.f32 %v3075, %v3249
      %3251 = vmatmul.f32.gmra.mxu0 %v3169
      %v3252 = vpop.f32.mrf.mxu0
      %v3253 = vadd.f32 %v3078, %v3252
      %3254 = vmatmul.f32.gmra.mxu0 %v3171
      %v3255 = vpop.f32.mrf.mxu0
      %v3256 = vadd.f32 %v3081, %v3255
      %3257 = vmatmul.f32.gmra.mxu0 %v3173
      %v3258 = vpop.f32.mrf.mxu0
      %v3259 = vadd.f32 %v3084, %v3258
      %3260 = vmatmul.f32.gmra.mxu0 %v3175
      %v3261 = vpop.f32.mrf.mxu0
      %v3262 = vadd.f32 %v3087, %v3261
      %3263 = vmatmul.f32.gmra.mxu0 %v3177
      %v3264 = vpop.f32.mrf.mxu0
      %v3265 = vadd.f32 %v3090, %v3264
      %3266 = vmatmul.f32.gmra.mxu0 %v3179
      %v3267 = vpop.f32.mrf.mxu0
      %v3268 = vadd.f32 %v3093, %v3267
      %3269 = vmatmul.f32.gmra.mxu0 %v3181
      %v3270 = vpop.f32.mrf.mxu0
      %v3271 = vadd.f32 %v3096, %v3270
      %3272 = vmatmul.f32.gmra.mxu0 %v3183
      %v3273 = vpop.f32.mrf.mxu0
      %v3274 = vadd.f32 %v3099, %v3273
      %3275 = vmatmul.f32.gmra.mxu0 %v3185
      %v3276 = vpop.f32.mrf.mxu0
      %v3277 = vadd.f32 %v3102, %v3276
      %3278 = vmatmul.f32.gmra.mxu0 %v3187
      %v3279 = vpop.f32.mrf.mxu0
      %v3280 = vadd.f32 %v3105, %v3279
      %3281 = vmatmul.f32.gmra.mxu0 %v3189
      %v3282 = vpop.f32.mrf.mxu0
      %v3283 = vadd.f32 %v3108, %v3282
      %3284 = vmatmul.f32.gmra.mxu0 %v3191
      %v3285 = vpop.f32.mrf.mxu0
      %v3286 = vadd.f32 %v3111, %v3285
      %3287 = vmatmul.f32.gmra.mxu0 %v3193
      %v3288 = vpop.f32.mrf.mxu0
      %v3289 = vadd.f32 %v3114, %v3288
      %3290 = vmatmul.f32.gmra.mxu0 %v3195
      %v3291 = vpop.f32.mrf.mxu0
      %v3292 = vadd.f32 %v3117, %v3291
      %3293 = vmatmul.f32.gmra.mxu0 %v3197
      %v3294 = vpop.f32.mrf.mxu0
      %v3295 = vadd.f32 %v3120, %v3294
      %3296 = vmatmul.f32.gmra.mxu0 %v3199
      %v3297 = vpop.f32.mrf.mxu0
      %v3298 = vadd.f32 %v3123, %v3297
      %3299 = vmatmul.f32.gmra.mxu0 %v3201
      %v3300 = vpop.f32.mrf.mxu0
      %v3301 = vadd.f32 %v3126, %v3300
      %3302 = vmatmul.f32.gmra.mxu0 %v3203
      %v3303 = vpop.f32.mrf.mxu0
      %v3304 = vadd.f32 %v3129, %v3303
      %3305 = vmatmul.f32.gmra.mxu0 %v3205
      %v3306 = vpop.f32.mrf.mxu0
      %v3307 = vadd.f32 %v3132, %v3306
      %3308 = vmatmul.f32.gmra.mxu0 %v3207
      %v3309 = vpop.f32.mrf.mxu0
      %v3310 = vadd.f32 %v3135, %v3309
      %3311 = vmatmul.f32.gmra.mxu0 %v3209
      %v3312 = vpop.f32.mrf.mxu0
      %v3313 = vadd.f32 %v3138, %v3312
      %3314 = vmatmul.f32.gmra.mxu0 %v3211
      %v3315 = vpop.f32.mrf.mxu0
      %v3316 = vadd.f32 %v3141, %v3315
      %3317 = vmatmul.f32.gmra.mxu0 %v3213
      %v3318 = vpop.f32.mrf.mxu0
      %v3319 = vadd.f32 %v3144, %v3318
      %3320 = vmatmul.f32.gmra.mxu0 %v3215
      %v3321 = vpop.f32.mrf.mxu0
      %v3322 = vadd.f32 %v3147, %v3321
      %3323 = vmatmul.f32.gmra.mxu0 %v3217
      %v3324 = vpop.f32.mrf.mxu0
      %v3325 = vadd.f32 %v3150, %v3324
      %3326 = vmatmul.f32.gmra.mxu0 %v3219
      %v3327 = vpop.f32.mrf.mxu0
      %v3328 = vadd.f32 %v3153, %v3327
      %3329 = vmatmul.f32.gmra.mxu0 %v3221
      %v3330 = vpop.f32.mrf.mxu0
      %v3331 = vadd.f32 %v3156, %v3330
      %3332 = vmatmul.f32.gmra.mxu0 %v3223
      %v3333 = vpop.f32.mrf.mxu0
      %v3334 = vadd.f32 %v3159, %v3333
      %3335 = vmatmul.f32.gmra.mxu0 %v3225
      %v3336 = vpop.f32.mrf.mxu0
      %v3337 = vadd.f32 %v3162, %v3336
      %3338 = vmatmul.f32.gmra.mxu0 %v3227
      %v3339 = vpop.f32.mrf.mxu0
      %v3340 = vadd.f32 %v3165, %v3339
      %3341 = vdwg.mxu0
      %v3342 = vrot.slane %v2854, 2
      %v3343 = vrot.slane %v2776, 2
      %v3344 = vsel %vm487, %v3342, %v3343
      %v3345 = vrot.slane %v2870, 2
      %v3346 = vsel %vm487, %v3343, %v3345
      %v3347 = vrot.slane %v2855, 2
      %v3348 = vrot.slane %v2779, 2
      %v3349 = vsel %vm487, %v3347, %v3348
      %v3350 = vrot.slane %v2871, 2
      %v3351 = vsel %vm487, %v3348, %v3350
      %v3352 = vrot.slane %v2856, 2
      %v3353 = vrot.slane %v2782, 2
      %v3354 = vsel %vm487, %v3352, %v3353
      %v3355 = vrot.slane %v2872, 2
      %v3356 = vsel %vm487, %v3353, %v3355
      %v3357 = vrot.slane %v2857, 2
      %v3358 = vrot.slane %v2785, 2
      %v3359 = vsel %vm487, %v3357, %v3358
      %v3360 = vrot.slane %v2873, 2
      %v3361 = vsel %vm487, %v3358, %v3360
      %v3362 = vrot.slane %v2858, 2
      %v3363 = vrot.slane %v2788, 2
      %v3364 = vsel %vm487, %v3362, %v3363
      %v3365 = vrot.slane %v2874, 2
      %v3366 = vsel %vm487, %v3363, %v3365
      %v3367 = vrot.slane %v2859, 2
      %v3368 = vrot.slane %v2791, 2
      %v3369 = vsel %vm487, %v3367, %v3368
      %v3370 = vrot.slane %v2875, 2
      %v3371 = vsel %vm487, %v3368, %v3370
      %v3372 = vrot.slane %v2860, 2
      %v3373 = vrot.slane %v2794, 2
      %v3374 = vsel %vm487, %v3372, %v3373
      %v3375 = vrot.slane %v2876, 2
      %v3376 = vsel %vm487, %v3373, %v3375
      %v3377 = vrot.slane %v2861, 2
      %v3378 = vrot.slane %v2797, 2
      %v3379 = vsel %vm487, %v3377, %v3378
      %v3380 = vrot.slane %v2877, 2
      %v3381 = vsel %vm487, %v3378, %v3380
      %v3382 = vrot.slane %v2862, 2
      %v3383 = vrot.slane %v2800, 2
      %v3384 = vsel %vm487, %v3382, %v3383
      %v3385 = vrot.slane %v2878, 2
      %v3386 = vsel %vm487, %v3383, %v3385
      %v3387 = vrot.slane %v2863, 2
      %v3388 = vrot.slane %v2803, 2
      %v3389 = vsel %vm487, %v3387, %v3388
      %v3390 = vrot.slane %v2879, 2
      %v3391 = vsel %vm487, %v3388, %v3390
      %v3392 = vrot.slane %v2864, 2
      %v3393 = vrot.slane %v2806, 2
      %v3394 = vsel %vm487, %v3392, %v3393
      %v3395 = vrot.slane %v2880, 2
      %v3396 = vsel %vm487, %v3393, %v3395
      %v3397 = vrot.slane %v2865, 2
      %v3398 = vrot.slane %v2809, 2
      %v3399 = vsel %vm487, %v3397, %v3398
      %v3400 = vrot.slane %v2881, 2
      %v3401 = vsel %vm487, %v3398, %v3400
      %v3402 = vrot.slane %v2866, 2
      %v3403 = vrot.slane %v2812, 2
      %v3404 = vsel %vm487, %v3402, %v3403
      %v3405 = vrot.slane %v2882, 2
      %v3406 = vsel %vm487, %v3403, %v3405
      %v3407 = vrot.slane %v2867, 2
      %v3408 = vrot.slane %v2815, 2
      %v3409 = vsel %vm487, %v3407, %v3408
      %v3410 = vrot.slane %v2883, 2
      %v3411 = vsel %vm487, %v3408, %v3410
      %v3412 = vrot.slane %v2868, 2
      %v3413 = vrot.slane %v2818, 2
      %v3414 = vsel %vm487, %v3412, %v3413
      %v3415 = vrot.slane %v2884, 2
      %v3416 = vsel %vm487, %v3413, %v3415
      %v3417 = vsel %vm2991, %v616, 0
      %v3419 = vsel %vm2991, %v3344, 0
      %v3421 = vsel %vm2991, %v3346, 0
      %v3423 = vsel %vm2991, %v3349, 0
      %v3425 = vsel %vm2991, %v3351, 0
      %v3427 = vsel %vm2991, %v3354, 0
      %v3429 = vsel %vm2991, %v3356, 0
      %v3431 = vsel %vm2991, %v3359, 0
      %v3433 = vsel %vm2991, %v3361, 0
      %v3435 = vsel %vm2991, %v3364, 0
      %v3437 = vsel %vm2991, %v3366, 0
      %v3439 = vsel %vm2991, %v3369, 0
      %v3441 = vsel %vm2991, %v3371, 0
      %v3443 = vsel %vm2991, %v3374, 0
      %v3445 = vsel %vm2991, %v3376, 0
      %v3447 = vsel %vm2991, %v3379, 0
      %v3449 = vsel %vm2991, %v3381, 0
      %v3451 = vsel %vm2991, %v3384, 0
      %v3453 = vsel %vm2991, %v3386, 0
      %v3455 = vsel %vm2991, %v3389, 0
      %v3457 = vsel %vm2991, %v3391, 0
      %v3459 = vsel %vm2991, %v3394, 0
      %v3461 = vsel %vm2991, %v3396, 0
      %v3463 = vsel %vm2991, %v3399, 0
      %v3465 = vsel %vm2991, %v3401, 0
      %v3467 = vsel %vm2991, %v3404, 0
      %v3469 = vsel %vm2991, %v3406, 0
      %v3471 = vsel %vm2991, %v3409, 0
      %v3473 = vsel %vm2991, %v3411, 0
      %v3475 = vsel %vm2991, %v3414, 0
      %v3477 = vsel %vm2991, %v3416, 0
      %3479 = vmatpush.msra.mxu0 0.0
      %3480 = vmatpush.msra.mxu0 0.0
      %3481 = vmatpush.msra.mxu0 0.0
      %3482 = vmatpush.msra.mxu0 0.0
      %3483 = vmatpush.msra.mxu0 0.0
      %3484 = vmatpush.msra.mxu0 0.0
      %3485 = vmatpush.msra.mxu0 0.0
      %3486 = vmatpush.msra.mxu0 0.0
      %3487 = vmatpush.msra.mxu0 0.0
      %3488 = vmatpush.msra.mxu0 0.0
      %3489 = vmatpush.msra.mxu0 0.0
      %3490 = vmatpush.msra.mxu0 0.0
      %3491 = vmatpush.msra.mxu0 0.0
      %3492 = vmatpush.msra.mxu0 0.0
      %3493 = vmatpush.msra.mxu0 0.0
      %3494 = vmatpush.msra.mxu0 %v2734
      %3495 = vmatmul.f32.gmra.mxu0 %v3417
      %v3496 = vpop.f32.mrf.mxu0
      %v3497 = vadd.f32 0.0, %v3496
      %3498 = vmatmul.f32.gmra.mxu0 %v3417
      %v3499 = vpop.f32.mrf.mxu0
      %v3500 = vadd.f32 0.0, %v3499
      %3501 = vmatmul.f32.gmra.mxu0 %v3419
      %v3502 = vpop.f32.mrf.mxu0
      %v3503 = vadd.f32 0.0, %v3502
      %3504 = vmatmul.f32.gmra.mxu0 %v3421
      %v3505 = vpop.f32.mrf.mxu0
      %v3506 = vadd.f32 0.0, %v3505
      %3507 = vmatmul.f32.gmra.mxu0 %v3423
      %v3508 = vpop.f32.mrf.mxu0
      %v3509 = vadd.f32 0.0, %v3508
      %3510 = vmatmul.f32.gmra.mxu0 %v3425
      %v3511 = vpop.f32.mrf.mxu0
      %v3512 = vadd.f32 0.0, %v3511
      %3513 = vmatmul.f32.gmra.mxu0 %v3427
      %v3514 = vpop.f32.mrf.mxu0
      %v3515 = vadd.f32 0.0, %v3514
      %3516 = vmatmul.f32.gmra.mxu0 %v3429
      %v3517 = vpop.f32.mrf.mxu0
      %v3518 = vadd.f32 0.0, %v3517
      %3519 = vmatmul.f32.gmra.mxu0 %v3431
      %v3520 = vpop.f32.mrf.mxu0
      %v3521 = vadd.f32 0.0, %v3520
      %3522 = vmatmul.f32.gmra.mxu0 %v3433
      %v3523 = vpop.f32.mrf.mxu0
      %v3524 = vadd.f32 0.0, %v3523
      %3525 = vmatmul.f32.gmra.mxu0 %v3435
      %v3526 = vpop.f32.mrf.mxu0
      %v3527 = vadd.f32 0.0, %v3526
      %3528 = vmatmul.f32.gmra.mxu0 %v3437
      %v3529 = vpop.f32.mrf.mxu0
      %v3530 = vadd.f32 0.0, %v3529
      %3531 = vmatmul.f32.gmra.mxu0 %v3439
      %v3532 = vpop.f32.mrf.mxu0
      %v3533 = vadd.f32 0.0, %v3532
      %3534 = vmatmul.f32.gmra.mxu0 %v3441
      %v3535 = vpop.f32.mrf.mxu0
      %v3536 = vadd.f32 0.0, %v3535
      %3537 = vmatmul.f32.gmra.mxu0 %v3443
      %v3538 = vpop.f32.mrf.mxu0
      %v3539 = vadd.f32 0.0, %v3538
      %3540 = vmatmul.f32.gmra.mxu0 %v3445
      %v3541 = vpop.f32.mrf.mxu0
      %v3542 = vadd.f32 0.0, %v3541
      %3543 = vmatmul.f32.gmra.mxu0 %v3447
      %v3544 = vpop.f32.mrf.mxu0
      %v3545 = vadd.f32 0.0, %v3544
      %3546 = vmatmul.f32.gmra.mxu0 %v3449
      %v3547 = vpop.f32.mrf.mxu0
      %v3548 = vadd.f32 0.0, %v3547
      %3549 = vmatmul.f32.gmra.mxu0 %v3451
      %v3550 = vpop.f32.mrf.mxu0
      %v3551 = vadd.f32 0.0, %v3550
      %3552 = vmatmul.f32.gmra.mxu0 %v3453
      %v3553 = vpop.f32.mrf.mxu0
      %v3554 = vadd.f32 0.0, %v3553
      %3555 = vmatmul.f32.gmra.mxu0 %v3455
      %v3556 = vpop.f32.mrf.mxu0
      %v3557 = vadd.f32 0.0, %v3556
      %3558 = vmatmul.f32.gmra.mxu0 %v3457
      %v3559 = vpop.f32.mrf.mxu0
      %v3560 = vadd.f32 0.0, %v3559
      %3561 = vmatmul.f32.gmra.mxu0 %v3459
      %v3562 = vpop.f32.mrf.mxu0
      %v3563 = vadd.f32 0.0, %v3562
      %3564 = vmatmul.f32.gmra.mxu0 %v3461
      %v3565 = vpop.f32.mrf.mxu0
      %v3566 = vadd.f32 0.0, %v3565
      %3567 = vmatmul.f32.gmra.mxu0 %v3463
      %v3568 = vpop.f32.mrf.mxu0
      %v3569 = vadd.f32 0.0, %v3568
      %3570 = vmatmul.f32.gmra.mxu0 %v3465
      %v3571 = vpop.f32.mrf.mxu0
      %v3572 = vadd.f32 0.0, %v3571
      %3573 = vmatmul.f32.gmra.mxu0 %v3467
      %v3574 = vpop.f32.mrf.mxu0
      %v3575 = vadd.f32 0.0, %v3574
      %3576 = vmatmul.f32.gmra.mxu0 %v3469
      %v3577 = vpop.f32.mrf.mxu0
      %v3578 = vadd.f32 0.0, %v3577
      %3579 = vmatmul.f32.gmra.mxu0 %v3471
      %v3580 = vpop.f32.mrf.mxu0
      %v3581 = vadd.f32 0.0, %v3580
      %3582 = vmatmul.f32.gmra.mxu0 %v3473
      %v3583 = vpop.f32.mrf.mxu0
      %v3584 = vadd.f32 0.0, %v3583
      %3585 = vmatmul.f32.gmra.mxu0 %v3475
      %v3586 = vpop.f32.mrf.mxu0
      %v3587 = vadd.f32 0.0, %v3586
      %3588 = vmatmul.f32.gmra.mxu0 %v3477
      %v3589 = vpop.f32.mrf.mxu0
      %v3590 = vadd.f32 0.0, %v3589
      %3591 = vdwg.mxu0
      %v3592 = vadd.f32 %v3247, %v3497
      %v3593 = vadd.f32 %v3250, %v3500
      %v3594 = vadd.f32 %v3253, %v3503
      %v3595 = vadd.f32 %v3256, %v3506
      %v3596 = vadd.f32 %v3259, %v3509
      %v3597 = vadd.f32 %v3262, %v3512
      %v3598 = vadd.f32 %v3265, %v3515
      %v3599 = vadd.f32 %v3268, %v3518
      %v3600 = vadd.f32 %v3271, %v3521
      %v3601 = vadd.f32 %v3274, %v3524
      %v3602 = vadd.f32 %v3277, %v3527
      %v3603 = vadd.f32 %v3280, %v3530
      %v3604 = vadd.f32 %v3283, %v3533
      %v3605 = vadd.f32 %v3286, %v3536
      %v3606 = vadd.f32 %v3289, %v3539
      %v3607 = vadd.f32 %v3292, %v3542
      %v3608 = vadd.f32 %v3295, %v3545
      %v3609 = vadd.f32 %v3298, %v3548
      %v3610 = vadd.f32 %v3301, %v3551
      %v3611 = vadd.f32 %v3304, %v3554
      %v3612 = vadd.f32 %v3307, %v3557
      %v3613 = vadd.f32 %v3310, %v3560
      %v3614 = vadd.f32 %v3313, %v3563
      %v3615 = vadd.f32 %v3316, %v3566
      %v3616 = vadd.f32 %v3319, %v3569
      %v3617 = vadd.f32 %v3322, %v3572
      %v3618 = vadd.f32 %v3325, %v3575
      %v3619 = vadd.f32 %v3328, %v3578
      %v3620 = vadd.f32 %v3331, %v3581
      %v3621 = vadd.f32 %v3334, %v3584
      %v3622 = vadd.f32 %v3337, %v3587
      %v3623 = vadd.f32 %v3340, %v3590
      %v3625 = vsel %vm2991, %v2869, 0
      %v3627 = vsel %vm2991, %v2821, 0
      %3629 = vmatpush.msra.mxu0 0.0
      %3630 = vmatpush.msra.mxu0 0.0
      %3631 = vmatpush.msra.mxu0 0.0
      %3632 = vmatpush.msra.mxu0 0.0
      %3633 = vmatpush.msra.mxu0 0.0
      %3634 = vmatpush.msra.mxu0 0.0
      %3635 = vmatpush.msra.mxu0 0.0
      %3636 = vmatpush.msra.mxu0 0.0
      %3637 = vmatpush.msra.mxu0 0.0
      %3638 = vmatpush.msra.mxu0 0.0
      %3639 = vmatpush.msra.mxu0 0.0
      %3640 = vmatpush.msra.mxu0 0.0
      %3641 = vmatpush.msra.mxu0 0.0
      %3642 = vmatpush.msra.mxu0 0.0
      %3643 = vmatpush.msra.mxu0 0.0
      %3644 = vmatpush.msra.mxu0 %v2735
      %3645 = vmatmul.f32.gmra.mxu0 %v3169
      %v3646 = vpop.f32.mrf.mxu0
      %v3647 = vadd.f32 0.0, %v3646
      %3648 = vmatmul.f32.gmra.mxu0 %v3171
      %v3649 = vpop.f32.mrf.mxu0
      %v3650 = vadd.f32 0.0, %v3649
      %3651 = vmatmul.f32.gmra.mxu0 %v3173
      %v3652 = vpop.f32.mrf.mxu0
      %v3653 = vadd.f32 0.0, %v3652
      %3654 = vmatmul.f32.gmra.mxu0 %v3175
      %v3655 = vpop.f32.mrf.mxu0
      %v3656 = vadd.f32 0.0, %v3655
      %3657 = vmatmul.f32.gmra.mxu0 %v3177
      %v3658 = vpop.f32.mrf.mxu0
      %v3659 = vadd.f32 0.0, %v3658
      %3660 = vmatmul.f32.gmra.mxu0 %v3179
      %v3661 = vpop.f32.mrf.mxu0
      %v3662 = vadd.f32 0.0, %v3661
      %3663 = vmatmul.f32.gmra.mxu0 %v3181
      %v3664 = vpop.f32.mrf.mxu0
      %v3665 = vadd.f32 0.0, %v3664
      %3666 = vmatmul.f32.gmra.mxu0 %v3183
      %v3667 = vpop.f32.mrf.mxu0
      %v3668 = vadd.f32 0.0, %v3667
      %3669 = vmatmul.f32.gmra.mxu0 %v3185
      %v3670 = vpop.f32.mrf.mxu0
      %v3671 = vadd.f32 0.0, %v3670
      %3672 = vmatmul.f32.gmra.mxu0 %v3187
      %v3673 = vpop.f32.mrf.mxu0
      %v3674 = vadd.f32 0.0, %v3673
      %3675 = vmatmul.f32.gmra.mxu0 %v3189
      %v3676 = vpop.f32.mrf.mxu0
      %v3677 = vadd.f32 0.0, %v3676
      %3678 = vmatmul.f32.gmra.mxu0 %v3191
      %v3679 = vpop.f32.mrf.mxu0
      %v3680 = vadd.f32 0.0, %v3679
      %3681 = vmatmul.f32.gmra.mxu0 %v3193
      %v3682 = vpop.f32.mrf.mxu0
      %v3683 = vadd.f32 0.0, %v3682
      %3684 = vmatmul.f32.gmra.mxu0 %v3195
      %v3685 = vpop.f32.mrf.mxu0
      %v3686 = vadd.f32 0.0, %v3685
      %3687 = vmatmul.f32.gmra.mxu0 %v3197
      %v3688 = vpop.f32.mrf.mxu0
      %v3689 = vadd.f32 0.0, %v3688
      %3690 = vmatmul.f32.gmra.mxu0 %v3199
      %v3691 = vpop.f32.mrf.mxu0
      %v3692 = vadd.f32 0.0, %v3691
      %3693 = vmatmul.f32.gmra.mxu0 %v3201
      %v3694 = vpop.f32.mrf.mxu0
      %v3695 = vadd.f32 0.0, %v3694
      %3696 = vmatmul.f32.gmra.mxu0 %v3203
      %v3697 = vpop.f32.mrf.mxu0
      %v3698 = vadd.f32 0.0, %v3697
      %3699 = vmatmul.f32.gmra.mxu0 %v3205
      %v3700 = vpop.f32.mrf.mxu0
      %v3701 = vadd.f32 0.0, %v3700
      %3702 = vmatmul.f32.gmra.mxu0 %v3207
      %v3703 = vpop.f32.mrf.mxu0
      %v3704 = vadd.f32 0.0, %v3703
      %3705 = vmatmul.f32.gmra.mxu0 %v3209
      %v3706 = vpop.f32.mrf.mxu0
      %v3707 = vadd.f32 0.0, %v3706
      %3708 = vmatmul.f32.gmra.mxu0 %v3211
      %v3709 = vpop.f32.mrf.mxu0
      %v3710 = vadd.f32 0.0, %v3709
      %3711 = vmatmul.f32.gmra.mxu0 %v3213
      %v3712 = vpop.f32.mrf.mxu0
      %v3713 = vadd.f32 0.0, %v3712
      %3714 = vmatmul.f32.gmra.mxu0 %v3215
      %v3715 = vpop.f32.mrf.mxu0
      %v3716 = vadd.f32 0.0, %v3715
      %3717 = vmatmul.f32.gmra.mxu0 %v3217
      %v3718 = vpop.f32.mrf.mxu0
      %v3719 = vadd.f32 0.0, %v3718
      %3720 = vmatmul.f32.gmra.mxu0 %v3219
      %v3721 = vpop.f32.mrf.mxu0
      %v3722 = vadd.f32 0.0, %v3721
      %3723 = vmatmul.f32.gmra.mxu0 %v3221
      %v3724 = vpop.f32.mrf.mxu0
      %v3725 = vadd.f32 0.0, %v3724
      %3726 = vmatmul.f32.gmra.mxu0 %v3223
      %v3727 = vpop.f32.mrf.mxu0
      %v3728 = vadd.f32 0.0, %v3727
      %3729 = vmatmul.f32.gmra.mxu0 %v3225
      %v3730 = vpop.f32.mrf.mxu0
      %v3731 = vadd.f32 0.0, %v3730
      %3732 = vmatmul.f32.gmra.mxu0 %v3227
      %v3733 = vpop.f32.mrf.mxu0
      %v3734 = vadd.f32 0.0, %v3733
      %3735 = vmatmul.f32.gmra.mxu0 %v3625
      %v3736 = vpop.f32.mrf.mxu0
      %v3737 = vadd.f32 0.0, %v3736
      %3738 = vmatmul.f32.gmra.mxu0 %v3627
      %v3739 = vpop.f32.mrf.mxu0
      %v3740 = vadd.f32 0.0, %v3739
      %3741 = vdwg.mxu0
      %v3742 = vadd.f32 %v3592, %v3647
      %v3743 = vadd.f32 %v3593, %v3650
      %v3744 = vadd.f32 %v3594, %v3653
      %v3745 = vadd.f32 %v3595, %v3656
      %v3746 = vadd.f32 %v3596, %v3659
      %v3747 = vadd.f32 %v3597, %v3662
      %v3748 = vadd.f32 %v3598, %v3665
      %v3749 = vadd.f32 %v3599, %v3668
      %v3750 = vadd.f32 %v3600, %v3671
      %v3751 = vadd.f32 %v3601, %v3674
      %v3752 = vadd.f32 %v3602, %v3677
      %v3753 = vadd.f32 %v3603, %v3680
      %v3754 = vadd.f32 %v3604, %v3683
      %v3755 = vadd.f32 %v3605, %v3686
      %v3756 = vadd.f32 %v3606, %v3689
      %v3757 = vadd.f32 %v3607, %v3692
      %v3758 = vadd.f32 %v3608, %v3695
      %v3759 = vadd.f32 %v3609, %v3698
      %v3760 = vadd.f32 %v3610, %v3701
      %v3761 = vadd.f32 %v3611, %v3704
      %v3762 = vadd.f32 %v3612, %v3707
      %v3763 = vadd.f32 %v3613, %v3710
      %v3764 = vadd.f32 %v3614, %v3713
      %v3765 = vadd.f32 %v3615, %v3716
      %v3766 = vadd.f32 %v3616, %v3719
      %v3767 = vadd.f32 %v3617, %v3722
      %v3768 = vadd.f32 %v3618, %v3725
      %v3769 = vadd.f32 %v3619, %v3728
      %v3770 = vadd.f32 %v3620, %v3731
      %v3771 = vadd.f32 %v3621, %v3734
      %v3772 = vadd.f32 %v3622, %v3737
      %v3773 = vadd.f32 %v3623, %v3740
      %v3775 = vrot.slane %v2869, 1
      %v3776 = vrot.slane %v2821, 1
      %v3777 = vsel %vm492, %v3775, %v3776
      %v3778 = vrot.slane %v2885, 1
      %v3779 = vsel %vm492, %v3776, %v3778
      %v3780 = vsel %vm2991, %v3777, 0
      %v3782 = vsel %vm2991, %v3779, 0
      %3784 = vmatpush.msra.mxu0 0.0
      %3785 = vmatpush.msra.mxu0 0.0
      %3786 = vmatpush.msra.mxu0 0.0
      %3787 = vmatpush.msra.mxu0 0.0
      %3788 = vmatpush.msra.mxu0 0.0
      %3789 = vmatpush.msra.mxu0 0.0
      %3790 = vmatpush.msra.mxu0 0.0
      %3791 = vmatpush.msra.mxu0 0.0
      %3792 = vmatpush.msra.mxu0 0.0
      %3793 = vmatpush.msra.mxu0 0.0
      %3794 = vmatpush.msra.mxu0 0.0
      %3795 = vmatpush.msra.mxu0 0.0
      %3796 = vmatpush.msra.mxu0 0.0
      %3797 = vmatpush.msra.mxu0 0.0
      %3798 = vmatpush.msra.mxu0 0.0
      %3799 = vmatpush.msra.mxu0 %v2736
      %3800 = vmatmul.f32.gmra.mxu0 %v2994
      %v3801 = vpop.f32.mrf.mxu0
      %v3802 = vadd.f32 0.0, %v3801
      %3803 = vmatmul.f32.gmra.mxu0 %v2996
      %v3804 = vpop.f32.mrf.mxu0
      %v3805 = vadd.f32 0.0, %v3804
      %3806 = vmatmul.f32.gmra.mxu0 %v2998
      %v3807 = vpop.f32.mrf.mxu0
      %v3808 = vadd.f32 0.0, %v3807
      %3809 = vmatmul.f32.gmra.mxu0 %v3000
      %v3810 = vpop.f32.mrf.mxu0
      %v3811 = vadd.f32 0.0, %v3810
      %3812 = vmatmul.f32.gmra.mxu0 %v3002
      %v3813 = vpop.f32.mrf.mxu0
      %v3814 = vadd.f32 0.0, %v3813
      %3815 = vmatmul.f32.gmra.mxu0 %v3004
      %v3816 = vpop.f32.mrf.mxu0
      %v3817 = vadd.f32 0.0, %v3816
      %3818 = vmatmul.f32.gmra.mxu0 %v3006
      %v3819 = vpop.f32.mrf.mxu0
      %v3820 = vadd.f32 0.0, %v3819
      %3821 = vmatmul.f32.gmra.mxu0 %v3008
      %v3822 = vpop.f32.mrf.mxu0
      %v3823 = vadd.f32 0.0, %v3822
      %3824 = vmatmul.f32.gmra.mxu0 %v3010
      %v3825 = vpop.f32.mrf.mxu0
      %v3826 = vadd.f32 0.0, %v3825
      %3827 = vmatmul.f32.gmra.mxu0 %v3012
      %v3828 = vpop.f32.mrf.mxu0
      %v3829 = vadd.f32 0.0, %v3828
      %3830 = vmatmul.f32.gmra.mxu0 %v3014
      %v3831 = vpop.f32.mrf.mxu0
      %v3832 = vadd.f32 0.0, %v3831
      %3833 = vmatmul.f32.gmra.mxu0 %v3016
      %v3834 = vpop.f32.mrf.mxu0
      %v3835 = vadd.f32 0.0, %v3834
      %3836 = vmatmul.f32.gmra.mxu0 %v3018
      %v3837 = vpop.f32.mrf.mxu0
      %v3838 = vadd.f32 0.0, %v3837
      %3839 = vmatmul.f32.gmra.mxu0 %v3020
      %v3840 = vpop.f32.mrf.mxu0
      %v3841 = vadd.f32 0.0, %v3840
      %3842 = vmatmul.f32.gmra.mxu0 %v3022
      %v3843 = vpop.f32.mrf.mxu0
      %v3844 = vadd.f32 0.0, %v3843
      %3845 = vmatmul.f32.gmra.mxu0 %v3024
      %v3846 = vpop.f32.mrf.mxu0
      %v3847 = vadd.f32 0.0, %v3846
      %3848 = vmatmul.f32.gmra.mxu0 %v3026
      %v3849 = vpop.f32.mrf.mxu0
      %v3850 = vadd.f32 0.0, %v3849
      %3851 = vmatmul.f32.gmra.mxu0 %v3028
      %v3852 = vpop.f32.mrf.mxu0
      %v3853 = vadd.f32 0.0, %v3852
      %3854 = vmatmul.f32.gmra.mxu0 %v3030
      %v3855 = vpop.f32.mrf.mxu0
      %v3856 = vadd.f32 0.0, %v3855
      %3857 = vmatmul.f32.gmra.mxu0 %v3032
      %v3858 = vpop.f32.mrf.mxu0
      %v3859 = vadd.f32 0.0, %v3858
      %3860 = vmatmul.f32.gmra.mxu0 %v3034
      %v3861 = vpop.f32.mrf.mxu0
      %v3862 = vadd.f32 0.0, %v3861
      %3863 = vmatmul.f32.gmra.mxu0 %v3036
      %v3864 = vpop.f32.mrf.mxu0
      %v3865 = vadd.f32 0.0, %v3864
      %3866 = vmatmul.f32.gmra.mxu0 %v3038
      %v3867 = vpop.f32.mrf.mxu0
      %v3868 = vadd.f32 0.0, %v3867
      %3869 = vmatmul.f32.gmra.mxu0 %v3040
      %v3870 = vpop.f32.mrf.mxu0
      %v3871 = vadd.f32 0.0, %v3870
      %3872 = vmatmul.f32.gmra.mxu0 %v3042
      %v3873 = vpop.f32.mrf.mxu0
      %v3874 = vadd.f32 0.0, %v3873
      %3875 = vmatmul.f32.gmra.mxu0 %v3044
      %v3876 = vpop.f32.mrf.mxu0
      %v3877 = vadd.f32 0.0, %v3876
      %3878 = vmatmul.f32.gmra.mxu0 %v3046
      %v3879 = vpop.f32.mrf.mxu0
      %v3880 = vadd.f32 0.0, %v3879
      %3881 = vmatmul.f32.gmra.mxu0 %v3048
      %v3882 = vpop.f32.mrf.mxu0
      %v3883 = vadd.f32 0.0, %v3882
      %3884 = vmatmul.f32.gmra.mxu0 %v3050
      %v3885 = vpop.f32.mrf.mxu0
      %v3886 = vadd.f32 0.0, %v3885
      %3887 = vmatmul.f32.gmra.mxu0 %v3052
      %v3888 = vpop.f32.mrf.mxu0
      %v3889 = vadd.f32 0.0, %v3888
      %3890 = vmatmul.f32.gmra.mxu0 %v3780
      %v3891 = vpop.f32.mrf.mxu0
      %v3892 = vadd.f32 0.0, %v3891
      %3893 = vmatmul.f32.gmra.mxu0 %v3782
      %v3894 = vpop.f32.mrf.mxu0
      %v3895 = vadd.f32 0.0, %v3894
      %3896 = vdwg.mxu0
      %v3897 = vadd.f32 %v3742, %v3802
      %v3898 = vadd.f32 %v3743, %v3805
      %v3899 = vadd.f32 %v3744, %v3808
      %v3900 = vadd.f32 %v3745, %v3811
      %v3901 = vadd.f32 %v3746, %v3814
      %v3902 = vadd.f32 %v3747, %v3817
      %v3903 = vadd.f32 %v3748, %v3820
      %v3904 = vadd.f32 %v3749, %v3823
      %v3905 = vadd.f32 %v3750, %v3826
      %v3906 = vadd.f32 %v3751, %v3829
      %v3907 = vadd.f32 %v3752, %v3832
      %v3908 = vadd.f32 %v3753, %v3835
      %v3909 = vadd.f32 %v3754, %v3838
      %v3910 = vadd.f32 %v3755, %v3841
      %v3911 = vadd.f32 %v3756, %v3844
      %v3912 = vadd.f32 %v3757, %v3847
      %v3913 = vadd.f32 %v3758, %v3850
      %v3914 = vadd.f32 %v3759, %v3853
      %v3915 = vadd.f32 %v3760, %v3856
      %v3916 = vadd.f32 %v3761, %v3859
      %v3917 = vadd.f32 %v3762, %v3862
      %v3918 = vadd.f32 %v3763, %v3865
      %v3919 = vadd.f32 %v3764, %v3868
      %v3920 = vadd.f32 %v3765, %v3871
      %v3921 = vadd.f32 %v3766, %v3874
      %v3922 = vadd.f32 %v3767, %v3877
      %v3923 = vadd.f32 %v3768, %v3880
      %v3924 = vadd.f32 %v3769, %v3883
      %v3925 = vadd.f32 %v3770, %v3886
      %v3926 = vadd.f32 %v3771, %v3889
      %v3927 = vadd.f32 %v3772, %v3892
      %v3928 = vadd.f32 %v3773, %v3895
      %v3929 = vrot.slane %v2869, 2
      %v3930 = vrot.slane %v2821, 2
      %v3931 = vsel %vm487, %v3929, %v3930
      %v3932 = vrot.slane %v2885, 2
      %v3933 = vsel %vm487, %v3930, %v3932
      %v3934 = vsel %vm2991, %v3931, 0
      %v3936 = vsel %vm2991, %v3933, 0
      %3938 = vmatpush.msra.mxu0 0.0
      %3939 = vmatpush.msra.mxu0 0.0
      %3940 = vmatpush.msra.mxu0 0.0
      %3941 = vmatpush.msra.mxu0 0.0
      %3942 = vmatpush.msra.mxu0 0.0
      %3943 = vmatpush.msra.mxu0 0.0
      %3944 = vmatpush.msra.mxu0 0.0
      %3945 = vmatpush.msra.mxu0 0.0
      %3946 = vmatpush.msra.mxu0 0.0
      %3947 = vmatpush.msra.mxu0 0.0
      %3948 = vmatpush.msra.mxu0 0.0
      %3949 = vmatpush.msra.mxu0 0.0
      %3950 = vmatpush.msra.mxu0 0.0
      %3951 = vmatpush.msra.mxu0 0.0
      %3952 = vmatpush.msra.mxu0 0.0
      %3953 = vmatpush.msra.mxu0 %v2737
      %3954 = vmatmul.f32.gmra.mxu0 %v3419
      %v3955 = vpop.f32.mrf.mxu0
      %v3956 = vadd.f32 0.0, %v3955
      %3957 = vmatmul.f32.gmra.mxu0 %v3421
      %v3958 = vpop.f32.mrf.mxu0
      %v3959 = vadd.f32 0.0, %v3958
      %3960 = vmatmul.f32.gmra.mxu0 %v3423
      %v3961 = vpop.f32.mrf.mxu0
      %v3962 = vadd.f32 0.0, %v3961
      %3963 = vmatmul.f32.gmra.mxu0 %v3425
      %v3964 = vpop.f32.mrf.mxu0
      %v3965 = vadd.f32 0.0, %v3964
      %3966 = vmatmul.f32.gmra.mxu0 %v3427
      %v3967 = vpop.f32.mrf.mxu0
      %v3968 = vadd.f32 0.0, %v3967
      %3969 = vmatmul.f32.gmra.mxu0 %v3429
      %v3970 = vpop.f32.mrf.mxu0
      %v3971 = vadd.f32 0.0, %v3970
      %3972 = vmatmul.f32.gmra.mxu0 %v3431
      %v3973 = vpop.f32.mrf.mxu0
      %v3974 = vadd.f32 0.0, %v3973
      %3975 = vmatmul.f32.gmra.mxu0 %v3433
      %v3976 = vpop.f32.mrf.mxu0
      %v3977 = vadd.f32 0.0, %v3976
      %3978 = vmatmul.f32.gmra.mxu0 %v3435
      %v3979 = vpop.f32.mrf.mxu0
      %v3980 = vadd.f32 0.0, %v3979
      %3981 = vmatmul.f32.gmra.mxu0 %v3437
      %v3982 = vpop.f32.mrf.mxu0
      %v3983 = vadd.f32 0.0, %v3982
      %3984 = vmatmul.f32.gmra.mxu0 %v3439
      %v3985 = vpop.f32.mrf.mxu0
      %v3986 = vadd.f32 0.0, %v3985
      %3987 = vmatmul.f32.gmra.mxu0 %v3441
      %v3988 = vpop.f32.mrf.mxu0
      %v3989 = vadd.f32 0.0, %v3988
      %3990 = vmatmul.f32.gmra.mxu0 %v3443
      %v3991 = vpop.f32.mrf.mxu0
      %v3992 = vadd.f32 0.0, %v3991
      %3993 = vmatmul.f32.gmra.mxu0 %v3445
      %v3994 = vpop.f32.mrf.mxu0
      %v3995 = vadd.f32 0.0, %v3994
      %3996 = vmatmul.f32.gmra.mxu0 %v3447
      %v3997 = vpop.f32.mrf.mxu0
      %v3998 = vadd.f32 0.0, %v3997
      %3999 = vmatmul.f32.gmra.mxu0 %v3449
      %v4000 = vpop.f32.mrf.mxu0
      %v4001 = vadd.f32 0.0, %v4000
      %4002 = vmatmul.f32.gmra.mxu0 %v3451
      %v4003 = vpop.f32.mrf.mxu0
      %v4004 = vadd.f32 0.0, %v4003
      %4005 = vmatmul.f32.gmra.mxu0 %v3453
      %v4006 = vpop.f32.mrf.mxu0
      %v4007 = vadd.f32 0.0, %v4006
      %4008 = vmatmul.f32.gmra.mxu0 %v3455
      %v4009 = vpop.f32.mrf.mxu0
      %v4010 = vadd.f32 0.0, %v4009
      %4011 = vmatmul.f32.gmra.mxu0 %v3457
      %v4012 = vpop.f32.mrf.mxu0
      %v4013 = vadd.f32 0.0, %v4012
      %4014 = vmatmul.f32.gmra.mxu0 %v3459
      %v4015 = vpop.f32.mrf.mxu0
      %v4016 = vadd.f32 0.0, %v4015
      %4017 = vmatmul.f32.gmra.mxu0 %v3461
      %v4018 = vpop.f32.mrf.mxu0
      %v4019 = vadd.f32 0.0, %v4018
      %4020 = vmatmul.f32.gmra.mxu0 %v3463
      %v4021 = vpop.f32.mrf.mxu0
      %v4022 = vadd.f32 0.0, %v4021
      %4023 = vmatmul.f32.gmra.mxu0 %v3465
      %v4024 = vpop.f32.mrf.mxu0
      %v4025 = vadd.f32 0.0, %v4024
      %4026 = vmatmul.f32.gmra.mxu0 %v3467
      %v4027 = vpop.f32.mrf.mxu0
      %v4028 = vadd.f32 0.0, %v4027
      %4029 = vmatmul.f32.gmra.mxu0 %v3469
      %v4030 = vpop.f32.mrf.mxu0
      %v4031 = vadd.f32 0.0, %v4030
      %4032 = vmatmul.f32.gmra.mxu0 %v3471
      %v4033 = vpop.f32.mrf.mxu0
      %v4034 = vadd.f32 0.0, %v4033
      %4035 = vmatmul.f32.gmra.mxu0 %v3473
      %v4036 = vpop.f32.mrf.mxu0
      %v4037 = vadd.f32 0.0, %v4036
      %4038 = vmatmul.f32.gmra.mxu0 %v3475
      %v4039 = vpop.f32.mrf.mxu0
      %v4040 = vadd.f32 0.0, %v4039
      %4041 = vmatmul.f32.gmra.mxu0 %v3477
      %v4042 = vpop.f32.mrf.mxu0
      %v4043 = vadd.f32 0.0, %v4042
      %4044 = vmatmul.f32.gmra.mxu0 %v3934
      %v4045 = vpop.f32.mrf.mxu0
      %v4046 = vadd.f32 0.0, %v4045
      %4047 = vmatmul.f32.gmra.mxu0 %v3936
      %v4048 = vpop.f32.mrf.mxu0
      %v4049 = vadd.f32 0.0, %v4048
      %4050 = vdwg.mxu0
      %v4051 = vadd.f32 %v3897, %v3956
      %v4052 = vadd.f32 %v3898, %v3959
      %v4053 = vadd.f32 %v3899, %v3962
      %v4054 = vadd.f32 %v3900, %v3965
      %v4055 = vadd.f32 %v3901, %v3968
      %v4056 = vadd.f32 %v3902, %v3971
      %v4057 = vadd.f32 %v3903, %v3974
      %v4058 = vadd.f32 %v3904, %v3977
      %v4059 = vadd.f32 %v3905, %v3980
      %v4060 = vadd.f32 %v3906, %v3983
      %v4061 = vadd.f32 %v3907, %v3986
      %v4062 = vadd.f32 %v3908, %v3989
      %v4063 = vadd.f32 %v3909, %v3992
      %v4064 = vadd.f32 %v3910, %v3995
      %v4065 = vadd.f32 %v3911, %v3998
      %v4066 = vadd.f32 %v3912, %v4001
      %v4067 = vadd.f32 %v3913, %v4004
      %v4068 = vadd.f32 %v3914, %v4007
      %v4069 = vadd.f32 %v3915, %v4010
      %v4070 = vadd.f32 %v3916, %v4013
      %v4071 = vadd.f32 %v3917, %v4016
      %v4072 = vadd.f32 %v3918, %v4019
      %v4073 = vadd.f32 %v3919, %v4022
      %v4074 = vadd.f32 %v3920, %v4025
      %v4075 = vadd.f32 %v3921, %v4028
      %v4076 = vadd.f32 %v3922, %v4031
      %v4077 = vadd.f32 %v3923, %v4034
      %v4078 = vadd.f32 %v3924, %v4037
      %v4079 = vadd.f32 %v3925, %v4040
      %v4080 = vadd.f32 %v3926, %v4043
      %v4081 = vadd.f32 %v3927, %v4046
      %v4082 = vadd.f32 %v3928, %v4049
      %4083 = vmatpush.msra.mxu0 0.0
      %4084 = vmatpush.msra.mxu0 0.0
      %4085 = vmatpush.msra.mxu0 0.0
      %4086 = vmatpush.msra.mxu0 0.0
      %4087 = vmatpush.msra.mxu0 0.0
      %4088 = vmatpush.msra.mxu0 0.0
      %4089 = vmatpush.msra.mxu0 0.0
      %4090 = vmatpush.msra.mxu0 0.0
      %4091 = vmatpush.msra.mxu0 0.0
      %4092 = vmatpush.msra.mxu0 0.0
      %4093 = vmatpush.msra.mxu0 0.0
      %4094 = vmatpush.msra.mxu0 0.0
      %4095 = vmatpush.msra.mxu0 0.0
      %4096 = vmatpush.msra.mxu0 0.0
      %4097 = vmatpush.msra.mxu0 0.0
      %4098 = vmatpush.msra.mxu0 %v2738
      %4099 = vmatmul.f32.gmra.mxu0 %v3173
      %v4100 = vpop.f32.mrf.mxu0
      %v4101 = vadd.f32 0.0, %v4100
      %4102 = vmatmul.f32.gmra.mxu0 %v3175
      %v4103 = vpop.f32.mrf.mxu0
      %v4104 = vadd.f32 0.0, %v4103
      %4105 = vmatmul.f32.gmra.mxu0 %v3177
      %v4106 = vpop.f32.mrf.mxu0
      %v4107 = vadd.f32 0.0, %v4106
      %4108 = vmatmul.f32.gmra.mxu0 %v3179
      %v4109 = vpop.f32.mrf.mxu0
      %v4110 = vadd.f32 0.0, %v4109
      %4111 = vmatmul.f32.gmra.mxu0 %v3181
      %v4112 = vpop.f32.mrf.mxu0
      %v4113 = vadd.f32 0.0, %v4112
      %4114 = vmatmul.f32.gmra.mxu0 %v3183
      %v4115 = vpop.f32.mrf.mxu0
      %v4116 = vadd.f32 0.0, %v4115
      %4117 = vmatmul.f32.gmra.mxu0 %v3185
      %v4118 = vpop.f32.mrf.mxu0
      %v4119 = vadd.f32 0.0, %v4118
      %4120 = vmatmul.f32.gmra.mxu0 %v3187
      %v4121 = vpop.f32.mrf.mxu0
      %v4122 = vadd.f32 0.0, %v4121
      %4123 = vmatmul.f32.gmra.mxu0 %v3189
      %v4124 = vpop.f32.mrf.mxu0
      %v4125 = vadd.f32 0.0, %v4124
      %4126 = vmatmul.f32.gmra.mxu0 %v3191
      %v4127 = vpop.f32.mrf.mxu0
      %v4128 = vadd.f32 0.0, %v4127
      %4129 = vmatmul.f32.gmra.mxu0 %v3193
      %v4130 = vpop.f32.mrf.mxu0
      %v4131 = vadd.f32 0.0, %v4130
      %4132 = vmatmul.f32.gmra.mxu0 %v3195
      %v4133 = vpop.f32.mrf.mxu0
      %v4134 = vadd.f32 0.0, %v4133
      %4135 = vmatmul.f32.gmra.mxu0 %v3197
      %v4136 = vpop.f32.mrf.mxu0
      %v4137 = vadd.f32 0.0, %v4136
      %4138 = vmatmul.f32.gmra.mxu0 %v3199
      %v4139 = vpop.f32.mrf.mxu0
      %v4140 = vadd.f32 0.0, %v4139
      %4141 = vmatmul.f32.gmra.mxu0 %v3201
      %v4142 = vpop.f32.mrf.mxu0
      %v4143 = vadd.f32 0.0, %v4142
      %4144 = vmatmul.f32.gmra.mxu0 %v3203
      %v4145 = vpop.f32.mrf.mxu0
      %v4146 = vadd.f32 0.0, %v4145
      %4147 = vmatmul.f32.gmra.mxu0 %v3205
      %v4148 = vpop.f32.mrf.mxu0
      %v4149 = vadd.f32 0.0, %v4148
      %4150 = vmatmul.f32.gmra.mxu0 %v3207
      %v4151 = vpop.f32.mrf.mxu0
      %v4152 = vadd.f32 0.0, %v4151
      %4153 = vmatmul.f32.gmra.mxu0 %v3209
      %v4154 = vpop.f32.mrf.mxu0
      %v4155 = vadd.f32 0.0, %v4154
      %4156 = vmatmul.f32.gmra.mxu0 %v3211
      %v4157 = vpop.f32.mrf.mxu0
      %v4158 = vadd.f32 0.0, %v4157
      %4159 = vmatmul.f32.gmra.mxu0 %v3213
      %v4160 = vpop.f32.mrf.mxu0
      %v4161 = vadd.f32 0.0, %v4160
      %4162 = vmatmul.f32.gmra.mxu0 %v3215
      %v4163 = vpop.f32.mrf.mxu0
      %v4164 = vadd.f32 0.0, %v4163
      %4165 = vmatmul.f32.gmra.mxu0 %v3217
      %v4166 = vpop.f32.mrf.mxu0
      %v4167 = vadd.f32 0.0, %v4166
      %4168 = vmatmul.f32.gmra.mxu0 %v3219
      %v4169 = vpop.f32.mrf.mxu0
      %v4170 = vadd.f32 0.0, %v4169
      %4171 = vmatmul.f32.gmra.mxu0 %v3221
      %v4172 = vpop.f32.mrf.mxu0
      %v4173 = vadd.f32 0.0, %v4172
      %4174 = vmatmul.f32.gmra.mxu0 %v3223
      %v4175 = vpop.f32.mrf.mxu0
      %v4176 = vadd.f32 0.0, %v4175
      %4177 = vmatmul.f32.gmra.mxu0 %v3225
      %v4178 = vpop.f32.mrf.mxu0
      %v4179 = vadd.f32 0.0, %v4178
      %4180 = vmatmul.f32.gmra.mxu0 %v3227
      %v4181 = vpop.f32.mrf.mxu0
      %v4182 = vadd.f32 0.0, %v4181
      %4183 = vmatmul.f32.gmra.mxu0 %v3625
      %v4184 = vpop.f32.mrf.mxu0
      %v4185 = vadd.f32 0.0, %v4184
      %4186 = vmatmul.f32.gmra.mxu0 %v3627
      %v4187 = vpop.f32.mrf.mxu0
      %v4188 = vadd.f32 0.0, %v4187
      %4189 = vmatmul.f32.gmra.mxu0 %v3167
      %v4190 = vpop.f32.mrf.mxu0
      %v4191 = vadd.f32 0.0, %v4190
      %4192 = vmatmul.f32.gmra.mxu0 %v3167
      %v4193 = vpop.f32.mrf.mxu0
      %v4194 = vadd.f32 0.0, %v4193
      %4195 = vdwg.mxu0
      %v4196 = vadd.f32 %v4051, %v4101
      %v4197 = vadd.f32 %v4052, %v4104
      %v4198 = vadd.f32 %v4053, %v4107
      %v4199 = vadd.f32 %v4054, %v4110
      %v4200 = vadd.f32 %v4055, %v4113
      %v4201 = vadd.f32 %v4056, %v4116
      %v4202 = vadd.f32 %v4057, %v4119
      %v4203 = vadd.f32 %v4058, %v4122
      %v4204 = vadd.f32 %v4059, %v4125
      %v4205 = vadd.f32 %v4060, %v4128
      %v4206 = vadd.f32 %v4061, %v4131
      %v4207 = vadd.f32 %v4062, %v4134
      %v4208 = vadd.f32 %v4063, %v4137
      %v4209 = vadd.f32 %v4064, %v4140
      %v4210 = vadd.f32 %v4065, %v4143
      %v4211 = vadd.f32 %v4066, %v4146
      %v4212 = vadd.f32 %v4067, %v4149
      %v4213 = vadd.f32 %v4068, %v4152
      %v4214 = vadd.f32 %v4069, %v4155
      %v4215 = vadd.f32 %v4070, %v4158
      %v4216 = vadd.f32 %v4071, %v4161
      %v4217 = vadd.f32 %v4072, %v4164
      %v4218 = vadd.f32 %v4073, %v4167
      %v4219 = vadd.f32 %v4074, %v4170
      %v4220 = vadd.f32 %v4075, %v4173
      %v4221 = vadd.f32 %v4076, %v4176
      %v4222 = vadd.f32 %v4077, %v4179
      %v4223 = vadd.f32 %v4078, %v4182
      %v4224 = vadd.f32 %v4079, %v4185
      %v4225 = vadd.f32 %v4080, %v4188
      %v4226 = vadd.f32 %v4081, %v4191
      %v4227 = vadd.f32 %v4082, %v4194
      %4228 = vmatpush.msra.mxu0 0.0
      %4229 = vmatpush.msra.mxu0 0.0
      %4230 = vmatpush.msra.mxu0 0.0
      %4231 = vmatpush.msra.mxu0 0.0
      %4232 = vmatpush.msra.mxu0 0.0
      %4233 = vmatpush.msra.mxu0 0.0
      %4234 = vmatpush.msra.mxu0 0.0
      %4235 = vmatpush.msra.mxu0 0.0
      %4236 = vmatpush.msra.mxu0 0.0
      %4237 = vmatpush.msra.mxu0 0.0
      %4238 = vmatpush.msra.mxu0 0.0
      %4239 = vmatpush.msra.mxu0 0.0
      %4240 = vmatpush.msra.mxu0 0.0
      %4241 = vmatpush.msra.mxu0 0.0
      %4242 = vmatpush.msra.mxu0 0.0
      %4243 = vmatpush.msra.mxu0 %v2739
      %4244 = vmatmul.f32.gmra.mxu0 %v2998
      %v4245 = vpop.f32.mrf.mxu0
      %v4246 = vadd.f32 0.0, %v4245
      %4247 = vmatmul.f32.gmra.mxu0 %v3000
      %v4248 = vpop.f32.mrf.mxu0
      %v4249 = vadd.f32 0.0, %v4248
      %4250 = vmatmul.f32.gmra.mxu0 %v3002
      %v4251 = vpop.f32.mrf.mxu0
      %v4252 = vadd.f32 0.0, %v4251
      %4253 = vmatmul.f32.gmra.mxu0 %v3004
      %v4254 = vpop.f32.mrf.mxu0
      %v4255 = vadd.f32 0.0, %v4254
      %4256 = vmatmul.f32.gmra.mxu0 %v3006
      %v4257 = vpop.f32.mrf.mxu0
      %v4258 = vadd.f32 0.0, %v4257
      %4259 = vmatmul.f32.gmra.mxu0 %v3008
      %v4260 = vpop.f32.mrf.mxu0
      %v4261 = vadd.f32 0.0, %v4260
      %4262 = vmatmul.f32.gmra.mxu0 %v3010
      %v4263 = vpop.f32.mrf.mxu0
      %v4264 = vadd.f32 0.0, %v4263
      %4265 = vmatmul.f32.gmra.mxu0 %v3012
      %v4266 = vpop.f32.mrf.mxu0
      %v4267 = vadd.f32 0.0, %v4266
      %4268 = vmatmul.f32.gmra.mxu0 %v3014
      %v4269 = vpop.f32.mrf.mxu0
      %v4270 = vadd.f32 0.0, %v4269
      %4271 = vmatmul.f32.gmra.mxu0 %v3016
      %v4272 = vpop.f32.mrf.mxu0
      %v4273 = vadd.f32 0.0, %v4272
      %4274 = vmatmul.f32.gmra.mxu0 %v3018
      %v4275 = vpop.f32.mrf.mxu0
      %v4276 = vadd.f32 0.0, %v4275
      %4277 = vmatmul.f32.gmra.mxu0 %v3020
      %v4278 = vpop.f32.mrf.mxu0
      %v4279 = vadd.f32 0.0, %v4278
      %4280 = vmatmul.f32.gmra.mxu0 %v3022
      %v4281 = vpop.f32.mrf.mxu0
      %v4282 = vadd.f32 0.0, %v4281
      %4283 = vmatmul.f32.gmra.mxu0 %v3024
      %v4284 = vpop.f32.mrf.mxu0
      %v4285 = vadd.f32 0.0, %v4284
      %4286 = vmatmul.f32.gmra.mxu0 %v3026
      %v4287 = vpop.f32.mrf.mxu0
      %v4288 = vadd.f32 0.0, %v4287
      %4289 = vmatmul.f32.gmra.mxu0 %v3028
      %v4290 = vpop.f32.mrf.mxu0
      %v4291 = vadd.f32 0.0, %v4290
      %4292 = vmatmul.f32.gmra.mxu0 %v3030
      %v4293 = vpop.f32.mrf.mxu0
      %v4294 = vadd.f32 0.0, %v4293
      %4295 = vmatmul.f32.gmra.mxu0 %v3032
      %v4296 = vpop.f32.mrf.mxu0
      %v4297 = vadd.f32 0.0, %v4296
      %4298 = vmatmul.f32.gmra.mxu0 %v3034
      %v4299 = vpop.f32.mrf.mxu0
      %v4300 = vadd.f32 0.0, %v4299
      %4301 = vmatmul.f32.gmra.mxu0 %v3036
      %v4302 = vpop.f32.mrf.mxu0
      %v4303 = vadd.f32 0.0, %v4302
      %4304 = vmatmul.f32.gmra.mxu0 %v3038
      %v4305 = vpop.f32.mrf.mxu0
      %v4306 = vadd.f32 0.0, %v4305
      %4307 = vmatmul.f32.gmra.mxu0 %v3040
      %v4308 = vpop.f32.mrf.mxu0
      %v4309 = vadd.f32 0.0, %v4308
      %4310 = vmatmul.f32.gmra.mxu0 %v3042
      %v4311 = vpop.f32.mrf.mxu0
      %v4312 = vadd.f32 0.0, %v4311
      %4313 = vmatmul.f32.gmra.mxu0 %v3044
      %v4314 = vpop.f32.mrf.mxu0
      %v4315 = vadd.f32 0.0, %v4314
      %4316 = vmatmul.f32.gmra.mxu0 %v3046
      %v4317 = vpop.f32.mrf.mxu0
      %v4318 = vadd.f32 0.0, %v4317
      %4319 = vmatmul.f32.gmra.mxu0 %v3048
      %v4320 = vpop.f32.mrf.mxu0
      %v4321 = vadd.f32 0.0, %v4320
      %4322 = vmatmul.f32.gmra.mxu0 %v3050
      %v4323 = vpop.f32.mrf.mxu0
      %v4324 = vadd.f32 0.0, %v4323
      %4325 = vmatmul.f32.gmra.mxu0 %v3052
      %v4326 = vpop.f32.mrf.mxu0
      %v4327 = vadd.f32 0.0, %v4326
      %4328 = vmatmul.f32.gmra.mxu0 %v3780
      %v4329 = vpop.f32.mrf.mxu0
      %v4330 = vadd.f32 0.0, %v4329
      %4331 = vmatmul.f32.gmra.mxu0 %v3782
      %v4332 = vpop.f32.mrf.mxu0
      %v4333 = vadd.f32 0.0, %v4332
      %4334 = vmatmul.f32.gmra.mxu0 %v2992
      %v4335 = vpop.f32.mrf.mxu0
      %v4336 = vadd.f32 0.0, %v4335
      %4337 = vmatmul.f32.gmra.mxu0 %v2992
      %v4338 = vpop.f32.mrf.mxu0
      %v4339 = vadd.f32 0.0, %v4338
      %4340 = vdwg.mxu0
      %v4341 = vadd.f32 %v4196, %v4246
      %v4342 = vadd.f32 %v4197, %v4249
      %v4343 = vadd.f32 %v4198, %v4252
      %v4344 = vadd.f32 %v4199, %v4255
      %v4345 = vadd.f32 %v4200, %v4258
      %v4346 = vadd.f32 %v4201, %v4261
      %v4347 = vadd.f32 %v4202, %v4264
      %v4348 = vadd.f32 %v4203, %v4267
      %v4349 = vadd.f32 %v4204, %v4270
      %v4350 = vadd.f32 %v4205, %v4273
      %v4351 = vadd.f32 %v4206, %v4276
      %v4352 = vadd.f32 %v4207, %v4279
      %v4353 = vadd.f32 %v4208, %v4282
      %v4354 = vadd.f32 %v4209, %v4285
      %v4355 = vadd.f32 %v4210, %v4288
      %v4356 = vadd.f32 %v4211, %v4291
      %v4357 = vadd.f32 %v4212, %v4294
      %v4358 = vadd.f32 %v4213, %v4297
      %v4359 = vadd.f32 %v4214, %v4300
      %v4360 = vadd.f32 %v4215, %v4303
      %v4361 = vadd.f32 %v4216, %v4306
      %v4362 = vadd.f32 %v4217, %v4309
      %v4363 = vadd.f32 %v4218, %v4312
      %v4364 = vadd.f32 %v4219, %v4315
      %v4365 = vadd.f32 %v4220, %v4318
      %v4366 = vadd.f32 %v4221, %v4321
      %v4367 = vadd.f32 %v4222, %v4324
      %v4368 = vadd.f32 %v4223, %v4327
      %v4369 = vadd.f32 %v4224, %v4330
      %v4370 = vadd.f32 %v4225, %v4333
      %v4371 = vadd.f32 %v4226, %v4336
      %v4372 = vadd.f32 %v4227, %v4339
      %4373 = vmatpush.msra.mxu0 0.0
      %4374 = vmatpush.msra.mxu0 0.0
      %4375 = vmatpush.msra.mxu0 0.0
      %4376 = vmatpush.msra.mxu0 0.0
      %4377 = vmatpush.msra.mxu0 0.0
      %4378 = vmatpush.msra.mxu0 0.0
      %4379 = vmatpush.msra.mxu0 0.0
      %4380 = vmatpush.msra.mxu0 0.0
      %4381 = vmatpush.msra.mxu0 0.0
      %4382 = vmatpush.msra.mxu0 0.0
      %4383 = vmatpush.msra.mxu0 0.0
      %4384 = vmatpush.msra.mxu0 0.0
      %4385 = vmatpush.msra.mxu0 0.0
      %4386 = vmatpush.msra.mxu0 0.0
      %4387 = vmatpush.msra.mxu0 0.0
      %4388 = vmatpush.msra.mxu0 %v2740
      %4389 = vmatmul.f32.gmra.mxu0 %v3423
      %v4390 = vpop.f32.mrf.mxu0
      %v4391 = vadd.f32 0.0, %v4390
      %4392 = vmatmul.f32.gmra.mxu0 %v3425
      %v4393 = vpop.f32.mrf.mxu0
      %v4394 = vadd.f32 0.0, %v4393
      %4395 = vmatmul.f32.gmra.mxu0 %v3427
      %v4396 = vpop.f32.mrf.mxu0
      %v4397 = vadd.f32 0.0, %v4396
      %4398 = vmatmul.f32.gmra.mxu0 %v3429
      %v4399 = vpop.f32.mrf.mxu0
      %v4400 = vadd.f32 0.0, %v4399
      %4401 = vmatmul.f32.gmra.mxu0 %v3431
      %v4402 = vpop.f32.mrf.mxu0
      %v4403 = vadd.f32 0.0, %v4402
      %4404 = vmatmul.f32.gmra.mxu0 %v3433
      %v4405 = vpop.f32.mrf.mxu0
      %v4406 = vadd.f32 0.0, %v4405
      %4407 = vmatmul.f32.gmra.mxu0 %v3435
      %v4408 = vpop.f32.mrf.mxu0
      %v4409 = vadd.f32 0.0, %v4408
      %4410 = vmatmul.f32.gmra.mxu0 %v3437
      %v4411 = vpop.f32.mrf.mxu0
      %v4412 = vadd.f32 0.0, %v4411
      %4413 = vmatmul.f32.gmra.mxu0 %v3439
      %v4414 = vpop.f32.mrf.mxu0
      %v4415 = vadd.f32 0.0, %v4414
      %4416 = vmatmul.f32.gmra.mxu0 %v3441
      %v4417 = vpop.f32.mrf.mxu0
      %v4418 = vadd.f32 0.0, %v4417
      %4419 = vmatmul.f32.gmra.mxu0 %v3443
      %v4420 = vpop.f32.mrf.mxu0
      %v4421 = vadd.f32 0.0, %v4420
      %4422 = vmatmul.f32.gmra.mxu0 %v3445
      %v4423 = vpop.f32.mrf.mxu0
      %v4424 = vadd.f32 0.0, %v4423
      %4425 = vmatmul.f32.gmra.mxu0 %v3447
      %v4426 = vpop.f32.mrf.mxu0
      %v4427 = vadd.f32 0.0, %v4426
      %4428 = vmatmul.f32.gmra.mxu0 %v3449
      %v4429 = vpop.f32.mrf.mxu0
      %v4430 = vadd.f32 0.0, %v4429
      %4431 = vmatmul.f32.gmra.mxu0 %v3451
      %v4432 = vpop.f32.mrf.mxu0
      %v4433 = vadd.f32 0.0, %v4432
      %4434 = vmatmul.f32.gmra.mxu0 %v3453
      %v4435 = vpop.f32.mrf.mxu0
      %v4436 = vadd.f32 0.0, %v4435
      %4437 = vmatmul.f32.gmra.mxu0 %v3455
      %v4438 = vpop.f32.mrf.mxu0
      %v4439 = vadd.f32 0.0, %v4438
      %4440 = vmatmul.f32.gmra.mxu0 %v3457
      %v4441 = vpop.f32.mrf.mxu0
      %v4442 = vadd.f32 0.0, %v4441
      %4443 = vmatmul.f32.gmra.mxu0 %v3459
      %v4444 = vpop.f32.mrf.mxu0
      %v4445 = vadd.f32 0.0, %v4444
      %4446 = vmatmul.f32.gmra.mxu0 %v3461
      %v4447 = vpop.f32.mrf.mxu0
      %v4448 = vadd.f32 0.0, %v4447
      %4449 = vmatmul.f32.gmra.mxu0 %v3463
      %v4450 = vpop.f32.mrf.mxu0
      %v4451 = vadd.f32 0.0, %v4450
      %4452 = vmatmul.f32.gmra.mxu0 %v3465
      %v4453 = vpop.f32.mrf.mxu0
      %v4454 = vadd.f32 0.0, %v4453
      %4455 = vmatmul.f32.gmra.mxu0 %v3467
      %v4456 = vpop.f32.mrf.mxu0
      %v4457 = vadd.f32 0.0, %v4456
      %4458 = vmatmul.f32.gmra.mxu0 %v3469
      %v4459 = vpop.f32.mrf.mxu0
      %v4460 = vadd.f32 0.0, %v4459
      %4461 = vmatmul.f32.gmra.mxu0 %v3471
      %v4462 = vpop.f32.mrf.mxu0
      %v4463 = vadd.f32 0.0, %v4462
      %4464 = vmatmul.f32.gmra.mxu0 %v3473
      %v4465 = vpop.f32.mrf.mxu0
      %v4466 = vadd.f32 0.0, %v4465
      %4467 = vmatmul.f32.gmra.mxu0 %v3475
      %v4468 = vpop.f32.mrf.mxu0
      %v4469 = vadd.f32 0.0, %v4468
      %4470 = vmatmul.f32.gmra.mxu0 %v3477
      %v4471 = vpop.f32.mrf.mxu0
      %v4472 = vadd.f32 0.0, %v4471
      %4473 = vmatmul.f32.gmra.mxu0 %v3934
      %v4474 = vpop.f32.mrf.mxu0
      %v4475 = vadd.f32 0.0, %v4474
      %4476 = vmatmul.f32.gmra.mxu0 %v3936
      %v4477 = vpop.f32.mrf.mxu0
      %v4478 = vadd.f32 0.0, %v4477
      %4479 = vmatmul.f32.gmra.mxu0 %v3417
      %v4480 = vpop.f32.mrf.mxu0
      %v4481 = vadd.f32 0.0, %v4480
      %4482 = vmatmul.f32.gmra.mxu0 %v3417
      %v4483 = vpop.f32.mrf.mxu0
      %v4484 = vadd.f32 0.0, %v4483
      %4485 = vdwg.mxu0
      %v4486 = vadd.f32 %v4341, %v4391
      %v4487 = vadd.f32 %v4342, %v4394
      %v4488 = vadd.f32 %v4343, %v4397
      %v4489 = vadd.f32 %v4344, %v4400
      %v4490 = vadd.f32 %v4345, %v4403
      %v4491 = vadd.f32 %v4346, %v4406
      %v4492 = vadd.f32 %v4347, %v4409
      %v4493 = vadd.f32 %v4348, %v4412
      %v4494 = vadd.f32 %v4349, %v4415
      %v4495 = vadd.f32 %v4350, %v4418
      %v4496 = vadd.f32 %v4351, %v4421
      %v4497 = vadd.f32 %v4352, %v4424
      %v4498 = vadd.f32 %v4353, %v4427
      %v4499 = vadd.f32 %v4354, %v4430
      %v4500 = vadd.f32 %v4355, %v4433
      %v4501 = vadd.f32 %v4356, %v4436
      %v4502 = vadd.f32 %v4357, %v4439
      %v4503 = vadd.f32 %v4358, %v4442
      %v4504 = vadd.f32 %v4359, %v4445
      %v4505 = vadd.f32 %v4360, %v4448
      %v4506 = vadd.f32 %v4361, %v4451
      %v4507 = vadd.f32 %v4362, %v4454
      %v4508 = vadd.f32 %v4363, %v4457
      %v4509 = vadd.f32 %v4364, %v4460
      %v4510 = vadd.f32 %v4365, %v4463
      %v4511 = vadd.f32 %v4366, %v4466
      %v4512 = vadd.f32 %v4367, %v4469
      %v4513 = vadd.f32 %v4368, %v4472
      %v4514 = vadd.f32 %v4369, %v4475
      %v4515 = vadd.f32 %v4370, %v4478
      %v4516 = vadd.f32 %v4371, %v4481
      %v4517 = vadd.f32 %v4372, %v4484
      %v4519 = vperm.slane %v2741, 0
      %v4521 = vadd.f32 %v4486, %v4519
      %v4522 = vadd.f32 %v4487, %v4519
      %v4523 = vadd.f32 %v4488, %v4519
      %v4524 = vadd.f32 %v4489, %v4519
      %v4525 = vadd.f32 %v4490, %v4519
      %v4526 = vadd.f32 %v4491, %v4519
      %v4527 = vadd.f32 %v4492, %v4519
      %v4528 = vadd.f32 %v4493, %v4519
      %v4529 = vadd.f32 %v4494, %v4519
      %v4530 = vadd.f32 %v4495, %v4519
      %v4531 = vadd.f32 %v4496, %v4519
      %v4532 = vadd.f32 %v4497, %v4519
      %v4533 = vadd.f32 %v4498, %v4519
      %v4534 = vadd.f32 %v4499, %v4519
      %v4535 = vadd.f32 %v4500, %v4519
      %v4536 = vadd.f32 %v4501, %v4519
      %v4537 = vadd.f32 %v4502, %v4519
      %v4538 = vadd.f32 %v4503, %v4519
      %v4539 = vadd.f32 %v4504, %v4519
      %v4540 = vadd.f32 %v4505, %v4519
      %v4541 = vadd.f32 %v4506, %v4519
      %v4542 = vadd.f32 %v4507, %v4519
      %v4543 = vadd.f32 %v4508, %v4519
      %v4544 = vadd.f32 %v4509, %v4519
      %v4545 = vadd.f32 %v4510, %v4519
      %v4546 = vadd.f32 %v4511, %v4519
      %v4547 = vadd.f32 %v4512, %v4519
      %v4548 = vadd.f32 %v4513, %v4519
      %v4549 = vadd.f32 %v4514, %v4519
      %v4550 = vadd.f32 %v4515, %v4519
      %v4551 = vadd.f32 %v4516, %v4519
      %v4552 = vadd.f32 %v4517, %v4519
      %v4553 = vxor.u32 %v4521, 2147483648
      %v4554 = vxor.u32 %v4522, 2147483648
      %v4555 = vxor.u32 %v4523, 2147483648
      %v4556 = vxor.u32 %v4524, 2147483648
      %v4557 = vxor.u32 %v4525, 2147483648
      %v4558 = vxor.u32 %v4526, 2147483648
      %v4559 = vxor.u32 %v4527, 2147483648
      %v4560 = vxor.u32 %v4528, 2147483648
      %v4561 = vxor.u32 %v4529, 2147483648
      %v4562 = vxor.u32 %v4530, 2147483648
      %v4563 = vxor.u32 %v4531, 2147483648
      %v4564 = vxor.u32 %v4532, 2147483648
      %v4565 = vxor.u32 %v4533, 2147483648
      %v4566 = vxor.u32 %v4534, 2147483648
      %v4567 = vxor.u32 %v4535, 2147483648
      %v4568 = vxor.u32 %v4536, 2147483648
      %v4569 = vxor.u32 %v4537, 2147483648
      %v4570 = vxor.u32 %v4538, 2147483648
      %v4571 = vxor.u32 %v4539, 2147483648
      %v4572 = vxor.u32 %v4540, 2147483648
      %v4573 = vxor.u32 %v4541, 2147483648
      %v4574 = vxor.u32 %v4542, 2147483648
      %v4575 = vxor.u32 %v4543, 2147483648
      %v4576 = vxor.u32 %v4544, 2147483648
      %v4577 = vxor.u32 %v4545, 2147483648
      %v4578 = vxor.u32 %v4546, 2147483648
      %v4579 = vxor.u32 %v4547, 2147483648
      %v4580 = vxor.u32 %v4548, 2147483648
      %v4581 = vxor.u32 %v4549, 2147483648
      %v4582 = vxor.u32 %v4550, 2147483648
      %v4583 = vxor.u32 %v4551, 2147483648
      %v4584 = vxor.u32 %v4552, 2147483648
      %v4585 = vmul.f32 %v4553, 1.442695
      %v4586 = vpow.pop %v4585
      %v4587 = vmul.f32 %v4554, 1.442695
      %v4588 = vpow.pop %v4587
      %v4589 = vmul.f32 %v4555, 1.442695
      %v4590 = vpow.pop %v4589
      %v4591 = vmul.f32 %v4556, 1.442695
      %v4592 = vpow.pop %v4591
      %v4593 = vmul.f32 %v4557, 1.442695
      %v4594 = vpow.pop %v4593
      %v4595 = vmul.f32 %v4558, 1.442695
      %v4596 = vpow.pop %v4595
      %v4597 = vmul.f32 %v4559, 1.442695
      %v4598 = vpow.pop %v4597
      %v4599 = vmul.f32 %v4560, 1.442695
      %v4600 = vpow.pop %v4599
      %v4601 = vmul.f32 %v4561, 1.442695
      %v4602 = vpow.pop %v4601
      %v4603 = vmul.f32 %v4562, 1.442695
      %v4604 = vpow.pop %v4603
      %v4605 = vmul.f32 %v4563, 1.442695
      %v4606 = vpow.pop %v4605
      %v4607 = vmul.f32 %v4564, 1.442695
      %v4608 = vpow.pop %v4607
      %v4609 = vmul.f32 %v4565, 1.442695
      %v4610 = vpow.pop %v4609
      %v4611 = vmul.f32 %v4566, 1.442695
      %v4612 = vpow.pop %v4611
      %v4613 = vmul.f32 %v4567, 1.442695
      %v4614 = vpow.pop %v4613
      %v4615 = vmul.f32 %v4568, 1.442695
      %v4616 = vpow.pop %v4615
      %v4617 = vmul.f32 %v4569, 1.442695
      %v4618 = vpow.pop %v4617
      %v4619 = vmul.f32 %v4570, 1.442695
      %v4620 = vpow.pop %v4619
      %v4621 = vmul.f32 %v4571, 1.442695
      %v4622 = vpow.pop %v4621
      %v4623 = vmul.f32 %v4572, 1.442695
      %v4624 = vpow.pop %v4623
      %v4625 = vmul.f32 %v4573, 1.442695
      %v4626 = vpow.pop %v4625
      %v4627 = vmul.f32 %v4574, 1.442695
      %v4628 = vpow.pop %v4627
      %v4629 = vmul.f32 %v4575, 1.442695
      %v4630 = vpow.pop %v4629
      %v4631 = vmul.f32 %v4576, 1.442695
      %v4632 = vpow.pop %v4631
      %v4633 = vmul.f32 %v4577, 1.442695
      %v4634 = vpow.pop %v4633
      %v4635 = vmul.f32 %v4578, 1.442695
      %v4636 = vpow.pop %v4635
      %v4637 = vmul.f32 %v4579, 1.442695
      %v4638 = vpow.pop %v4637
      %v4639 = vmul.f32 %v4580, 1.442695
      %v4640 = vpow.pop %v4639
      %v4641 = vmul.f32 %v4581, 1.442695
      %v4642 = vpow.pop %v4641
      %v4643 = vmul.f32 %v4582, 1.442695
      %v4644 = vpow.pop %v4643
      %v4645 = vmul.f32 %v4583, 1.442695
      %v4646 = vpow.pop %v4645
      %v4647 = vmul.f32 %v4584, 1.442695
      %v4648 = vpow.pop %v4647
      %v4649 = vadd.f32 %v4586, 1.0
      %v4650 = vadd.f32 %v4588, 1.0
      %v4651 = vadd.f32 %v4590, 1.0
      %v4652 = vadd.f32 %v4592, 1.0
      %v4653 = vadd.f32 %v4594, 1.0
      %v4654 = vadd.f32 %v4596, 1.0
      %v4655 = vadd.f32 %v4598, 1.0
      %v4656 = vadd.f32 %v4600, 1.0
      %v4657 = vadd.f32 %v4602, 1.0
      %v4658 = vadd.f32 %v4604, 1.0
      %v4659 = vadd.f32 %v4606, 1.0
      %v4660 = vadd.f32 %v4608, 1.0
      %v4661 = vadd.f32 %v4610, 1.0
      %v4662 = vadd.f32 %v4612, 1.0
      %v4663 = vadd.f32 %v4614, 1.0
      %v4664 = vadd.f32 %v4616, 1.0
      %v4665 = vadd.f32 %v4618, 1.0
      %v4666 = vadd.f32 %v4620, 1.0
      %v4667 = vadd.f32 %v4622, 1.0
      %v4668 = vadd.f32 %v4624, 1.0
      %v4669 = vadd.f32 %v4626, 1.0
      %v4670 = vadd.f32 %v4628, 1.0
      %v4671 = vadd.f32 %v4630, 1.0
      %v4672 = vadd.f32 %v4632, 1.0
      %v4673 = vadd.f32 %v4634, 1.0
      %v4674 = vadd.f32 %v4636, 1.0
      %v4675 = vadd.f32 %v4638, 1.0
      %v4676 = vadd.f32 %v4640, 1.0
      %v4677 = vadd.f32 %v4642, 1.0
      %v4678 = vadd.f32 %v4644, 1.0
      %v4679 = vadd.f32 %v4646, 1.0
      %v4680 = vadd.f32 %v4648, 1.0
      %v4681 = vrcp.pop %v4649
      %v4682 = vmul.f32 %v4649, %v4681
      %v4683 = vsub.f32 1.0, %v4682
      %v4684 = vmul.f32 %v4681, %v4683
      %v4685 = vadd.f32 %v4681, %v4684
      %vm4686 = vweird.f32 %v4649
      %vm4687 = vweird.f32 %v4681
      %vm4688 = vmor %vm4686, %vm4687
      %v4689 = vsel %vm4688, %v4681, %v4685
      %v4690 = vand.u32 2147483647, %v4649
      %vm4691 = vcmp.eq.f32.partialorder %v4690, 8.507059e+37
      %v4692 = vand.u32 %v4649, 2147483648
      %v4693 = vor.u32 1.1754944e-38, %v4692
      %v4694 = vsel %vm4691, %v4693, %v4689
      %v4695 = vmul.f32 1.0, %v4694
      %v4696 = vrcp.pop %v4650
      %v4697 = vmul.f32 %v4650, %v4696
      %v4698 = vsub.f32 1.0, %v4697
      %v4699 = vmul.f32 %v4696, %v4698
      %v4700 = vadd.f32 %v4696, %v4699
      %vm4701 = vweird.f32 %v4650
      %vm4702 = vweird.f32 %v4696
      %vm4703 = vmor %vm4701, %vm4702
      %v4704 = vsel %vm4703, %v4696, %v4700
      %v4705 = vand.u32 2147483647, %v4650
      %vm4706 = vcmp.eq.f32.partialorder %v4705, 8.507059e+37
      %v4707 = vand.u32 %v4650, 2147483648
      %v4708 = vor.u32 1.1754944e-38, %v4707
      %v4709 = vsel %vm4706, %v4708, %v4704
      %v4710 = vmul.f32 1.0, %v4709
      %v4711 = vrcp.pop %v4651
      %v4712 = vmul.f32 %v4651, %v4711
      %v4713 = vsub.f32 1.0, %v4712
      %v4714 = vmul.f32 %v4711, %v4713
      %v4715 = vadd.f32 %v4711, %v4714
      %vm4716 = vweird.f32 %v4651
      %vm4717 = vweird.f32 %v4711
      %vm4718 = vmor %vm4716, %vm4717
      %v4719 = vsel %vm4718, %v4711, %v4715
      %v4720 = vand.u32 2147483647, %v4651
      %vm4721 = vcmp.eq.f32.partialorder %v4720, 8.507059e+37
      %v4722 = vand.u32 %v4651, 2147483648
      %v4723 = vor.u32 1.1754944e-38, %v4722
      %v4724 = vsel %vm4721, %v4723, %v4719
      %v4725 = vmul.f32 1.0, %v4724
      %v4726 = vrcp.pop %v4652
      %v4727 = vmul.f32 %v4652, %v4726
      %v4728 = vsub.f32 1.0, %v4727
      %v4729 = vmul.f32 %v4726, %v4728
      %v4730 = vadd.f32 %v4726, %v4729
      %vm4731 = vweird.f32 %v4652
      %vm4732 = vweird.f32 %v4726
      %vm4733 = vmor %vm4731, %vm4732
      %v4734 = vsel %vm4733, %v4726, %v4730
      %v4735 = vand.u32 2147483647, %v4652
      %vm4736 = vcmp.eq.f32.partialorder %v4735, 8.507059e+37
      %v4737 = vand.u32 %v4652, 2147483648
      %v4738 = vor.u32 1.1754944e-38, %v4737
      %v4739 = vsel %vm4736, %v4738, %v4734
      %v4740 = vmul.f32 1.0, %v4739
      %v4741 = vrcp.pop %v4653
      %v4742 = vmul.f32 %v4653, %v4741
      %v4743 = vsub.f32 1.0, %v4742
      %v4744 = vmul.f32 %v4741, %v4743
      %v4745 = vadd.f32 %v4741, %v4744
      %vm4746 = vweird.f32 %v4653
      %vm4747 = vweird.f32 %v4741
      %vm4748 = vmor %vm4746, %vm4747
      %v4749 = vsel %vm4748, %v4741, %v4745
      %v4750 = vand.u32 2147483647, %v4653
      %vm4751 = vcmp.eq.f32.partialorder %v4750, 8.507059e+37
      %v4752 = vand.u32 %v4653, 2147483648
      %v4753 = vor.u32 1.1754944e-38, %v4752
      %v4754 = vsel %vm4751, %v4753, %v4749
      %v4755 = vmul.f32 1.0, %v4754
      %v4756 = vrcp.pop %v4654
      %v4757 = vmul.f32 %v4654, %v4756
      %v4758 = vsub.f32 1.0, %v4757
      %v4759 = vmul.f32 %v4756, %v4758
      %v4760 = vadd.f32 %v4756, %v4759
      %vm4761 = vweird.f32 %v4654
      %vm4762 = vweird.f32 %v4756
      %vm4763 = vmor %vm4761, %vm4762
      %v4764 = vsel %vm4763, %v4756, %v4760
      %v4765 = vand.u32 2147483647, %v4654
      %vm4766 = vcmp.eq.f32.partialorder %v4765, 8.507059e+37
      %v4767 = vand.u32 %v4654, 2147483648
      %v4768 = vor.u32 1.1754944e-38, %v4767
      %v4769 = vsel %vm4766, %v4768, %v4764
      %v4770 = vmul.f32 1.0, %v4769
      %v4771 = vrcp.pop %v4655
      %v4772 = vmul.f32 %v4655, %v4771
      %v4773 = vsub.f32 1.0, %v4772
      %v4774 = vmul.f32 %v4771, %v4773
      %v4775 = vadd.f32 %v4771, %v4774
      %vm4776 = vweird.f32 %v4655
      %vm4777 = vweird.f32 %v4771
      %vm4778 = vmor %vm4776, %vm4777
      %v4779 = vsel %vm4778, %v4771, %v4775
      %v4780 = vand.u32 2147483647, %v4655
      %vm4781 = vcmp.eq.f32.partialorder %v4780, 8.507059e+37
      %v4782 = vand.u32 %v4655, 2147483648
      %v4783 = vor.u32 1.1754944e-38, %v4782
      %v4784 = vsel %vm4781, %v4783, %v4779
      %v4785 = vmul.f32 1.0, %v4784
      %v4786 = vrcp.pop %v4656
      %v4787 = vmul.f32 %v4656, %v4786
      %v4788 = vsub.f32 1.0, %v4787
      %v4789 = vmul.f32 %v4786, %v4788
      %v4790 = vadd.f32 %v4786, %v4789
      %vm4791 = vweird.f32 %v4656
      %vm4792 = vweird.f32 %v4786
      %vm4793 = vmor %vm4791, %vm4792
      %v4794 = vsel %vm4793, %v4786, %v4790
      %v4795 = vand.u32 2147483647, %v4656
      %vm4796 = vcmp.eq.f32.partialorder %v4795, 8.507059e+37
      %v4797 = vand.u32 %v4656, 2147483648
      %v4798 = vor.u32 1.1754944e-38, %v4797
      %v4799 = vsel %vm4796, %v4798, %v4794
      %v4800 = vmul.f32 1.0, %v4799
      %v4801 = vrcp.pop %v4657
      %v4802 = vmul.f32 %v4657, %v4801
      %v4803 = vsub.f32 1.0, %v4802
      %v4804 = vmul.f32 %v4801, %v4803
      %v4805 = vadd.f32 %v4801, %v4804
      %vm4806 = vweird.f32 %v4657
      %vm4807 = vweird.f32 %v4801
      %vm4808 = vmor %vm4806, %vm4807
      %v4809 = vsel %vm4808, %v4801, %v4805
      %v4810 = vand.u32 2147483647, %v4657
      %vm4811 = vcmp.eq.f32.partialorder %v4810, 8.507059e+37
      %v4812 = vand.u32 %v4657, 2147483648
      %v4813 = vor.u32 1.1754944e-38, %v4812
      %v4814 = vsel %vm4811, %v4813, %v4809
      %v4815 = vmul.f32 1.0, %v4814
      %v4816 = vrcp.pop %v4658
      %v4817 = vmul.f32 %v4658, %v4816
      %v4818 = vsub.f32 1.0, %v4817
      %v4819 = vmul.f32 %v4816, %v4818
      %v4820 = vadd.f32 %v4816, %v4819
      %vm4821 = vweird.f32 %v4658
      %vm4822 = vweird.f32 %v4816
      %vm4823 = vmor %vm4821, %vm4822
      %v4824 = vsel %vm4823, %v4816, %v4820
      %v4825 = vand.u32 2147483647, %v4658
      %vm4826 = vcmp.eq.f32.partialorder %v4825, 8.507059e+37
      %v4827 = vand.u32 %v4658, 2147483648
      %v4828 = vor.u32 1.1754944e-38, %v4827
      %v4829 = vsel %vm4826, %v4828, %v4824
      %v4830 = vmul.f32 1.0, %v4829
      %v4831 = vrcp.pop %v4659
      %v4832 = vmul.f32 %v4659, %v4831
      %v4833 = vsub.f32 1.0, %v4832
      %v4834 = vmul.f32 %v4831, %v4833
      %v4835 = vadd.f32 %v4831, %v4834
      %vm4836 = vweird.f32 %v4659
      %vm4837 = vweird.f32 %v4831
      %vm4838 = vmor %vm4836, %vm4837
      %v4839 = vsel %vm4838, %v4831, %v4835
      %v4840 = vand.u32 2147483647, %v4659
      %vm4841 = vcmp.eq.f32.partialorder %v4840, 8.507059e+37
      %v4842 = vand.u32 %v4659, 2147483648
      %v4843 = vor.u32 1.1754944e-38, %v4842
      %v4844 = vsel %vm4841, %v4843, %v4839
      %v4845 = vmul.f32 1.0, %v4844
      %v4846 = vrcp.pop %v4660
      %v4847 = vmul.f32 %v4660, %v4846
      %v4848 = vsub.f32 1.0, %v4847
      %v4849 = vmul.f32 %v4846, %v4848
      %v4850 = vadd.f32 %v4846, %v4849
      %vm4851 = vweird.f32 %v4660
      %vm4852 = vweird.f32 %v4846
      %vm4853 = vmor %vm4851, %vm4852
      %v4854 = vsel %vm4853, %v4846, %v4850
      %v4855 = vand.u32 2147483647, %v4660
      %vm4856 = vcmp.eq.f32.partialorder %v4855, 8.507059e+37
      %v4857 = vand.u32 %v4660, 2147483648
      %v4858 = vor.u32 1.1754944e-38, %v4857
      %v4859 = vsel %vm4856, %v4858, %v4854
      %v4860 = vmul.f32 1.0, %v4859
      %v4861 = vrcp.pop %v4661
      %v4862 = vmul.f32 %v4661, %v4861
      %v4863 = vsub.f32 1.0, %v4862
      %v4864 = vmul.f32 %v4861, %v4863
      %v4865 = vadd.f32 %v4861, %v4864
      %vm4866 = vweird.f32 %v4661
      %vm4867 = vweird.f32 %v4861
      %vm4868 = vmor %vm4866, %vm4867
      %v4869 = vsel %vm4868, %v4861, %v4865
      %v4870 = vand.u32 2147483647, %v4661
      %vm4871 = vcmp.eq.f32.partialorder %v4870, 8.507059e+37
      %v4872 = vand.u32 %v4661, 2147483648
      %v4873 = vor.u32 1.1754944e-38, %v4872
      %v4874 = vsel %vm4871, %v4873, %v4869
      %v4875 = vmul.f32 1.0, %v4874
      %v4876 = vrcp.pop %v4662
      %v4877 = vmul.f32 %v4662, %v4876
      %v4878 = vsub.f32 1.0, %v4877
      %v4879 = vmul.f32 %v4876, %v4878
      %v4880 = vadd.f32 %v4876, %v4879
      %vm4881 = vweird.f32 %v4662
      %vm4882 = vweird.f32 %v4876
      %vm4883 = vmor %vm4881, %vm4882
      %v4884 = vsel %vm4883, %v4876, %v4880
      %v4885 = vand.u32 2147483647, %v4662
      %vm4886 = vcmp.eq.f32.partialorder %v4885, 8.507059e+37
      %v4887 = vand.u32 %v4662, 2147483648
      %v4888 = vor.u32 1.1754944e-38, %v4887
      %v4889 = vsel %vm4886, %v4888, %v4884
      %v4890 = vmul.f32 1.0, %v4889
      %v4891 = vrcp.pop %v4663
      %v4892 = vmul.f32 %v4663, %v4891
      %v4893 = vsub.f32 1.0, %v4892
      %v4894 = vmul.f32 %v4891, %v4893
      %v4895 = vadd.f32 %v4891, %v4894
      %vm4896 = vweird.f32 %v4663
      %vm4897 = vweird.f32 %v4891
      %vm4898 = vmor %vm4896, %vm4897
      %v4899 = vsel %vm4898, %v4891, %v4895
      %v4900 = vand.u32 2147483647, %v4663
      %vm4901 = vcmp.eq.f32.partialorder %v4900, 8.507059e+37
      %v4902 = vand.u32 %v4663, 2147483648
      %v4903 = vor.u32 1.1754944e-38, %v4902
      %v4904 = vsel %vm4901, %v4903, %v4899
      %v4905 = vmul.f32 1.0, %v4904
      %v4906 = vrcp.pop %v4664
      %v4907 = vmul.f32 %v4664, %v4906
      %v4908 = vsub.f32 1.0, %v4907
      %v4909 = vmul.f32 %v4906, %v4908
      %v4910 = vadd.f32 %v4906, %v4909
      %vm4911 = vweird.f32 %v4664
      %vm4912 = vweird.f32 %v4906
      %vm4913 = vmor %vm4911, %vm4912
      %v4914 = vsel %vm4913, %v4906, %v4910
      %v4915 = vand.u32 2147483647, %v4664
      %vm4916 = vcmp.eq.f32.partialorder %v4915, 8.507059e+37
      %v4917 = vand.u32 %v4664, 2147483648
      %v4918 = vor.u32 1.1754944e-38, %v4917
      %v4919 = vsel %vm4916, %v4918, %v4914
      %v4920 = vmul.f32 1.0, %v4919
      %v4921 = vrcp.pop %v4665
      %v4922 = vmul.f32 %v4665, %v4921
      %v4923 = vsub.f32 1.0, %v4922
      %v4924 = vmul.f32 %v4921, %v4923
      %v4925 = vadd.f32 %v4921, %v4924
      %vm4926 = vweird.f32 %v4665
      %vm4927 = vweird.f32 %v4921
      %vm4928 = vmor %vm4926, %vm4927
      %v4929 = vsel %vm4928, %v4921, %v4925
      %v4930 = vand.u32 2147483647, %v4665
      %vm4931 = vcmp.eq.f32.partialorder %v4930, 8.507059e+37
      %v4932 = vand.u32 %v4665, 2147483648
      %v4933 = vor.u32 1.1754944e-38, %v4932
      %v4934 = vsel %vm4931, %v4933, %v4929
      %v4935 = vmul.f32 1.0, %v4934
      %v4936 = vrcp.pop %v4666
      %v4937 = vmul.f32 %v4666, %v4936
      %v4938 = vsub.f32 1.0, %v4937
      %v4939 = vmul.f32 %v4936, %v4938
      %v4940 = vadd.f32 %v4936, %v4939
      %vm4941 = vweird.f32 %v4666
      %vm4942 = vweird.f32 %v4936
      %vm4943 = vmor %vm4941, %vm4942
      %v4944 = vsel %vm4943, %v4936, %v4940
      %v4945 = vand.u32 2147483647, %v4666
      %vm4946 = vcmp.eq.f32.partialorder %v4945, 8.507059e+37
      %v4947 = vand.u32 %v4666, 2147483648
      %v4948 = vor.u32 1.1754944e-38, %v4947
      %v4949 = vsel %vm4946, %v4948, %v4944
      %v4950 = vmul.f32 1.0, %v4949
      %v4951 = vrcp.pop %v4667
      %v4952 = vmul.f32 %v4667, %v4951
      %v4953 = vsub.f32 1.0, %v4952
      %v4954 = vmul.f32 %v4951, %v4953
      %v4955 = vadd.f32 %v4951, %v4954
      %vm4956 = vweird.f32 %v4667
      %vm4957 = vweird.f32 %v4951
      %vm4958 = vmor %vm4956, %vm4957
      %v4959 = vsel %vm4958, %v4951, %v4955
      %v4960 = vand.u32 2147483647, %v4667
      %vm4961 = vcmp.eq.f32.partialorder %v4960, 8.507059e+37
      %v4962 = vand.u32 %v4667, 2147483648
      %v4963 = vor.u32 1.1754944e-38, %v4962
      %v4964 = vsel %vm4961, %v4963, %v4959
      %v4965 = vmul.f32 1.0, %v4964
      %v4966 = vrcp.pop %v4668
      %v4967 = vmul.f32 %v4668, %v4966
      %v4968 = vsub.f32 1.0, %v4967
      %v4969 = vmul.f32 %v4966, %v4968
      %v4970 = vadd.f32 %v4966, %v4969
      %vm4971 = vweird.f32 %v4668
      %vm4972 = vweird.f32 %v4966
      %vm4973 = vmor %vm4971, %vm4972
      %v4974 = vsel %vm4973, %v4966, %v4970
      %v4975 = vand.u32 2147483647, %v4668
      %vm4976 = vcmp.eq.f32.partialorder %v4975, 8.507059e+37
      %v4977 = vand.u32 %v4668, 2147483648
      %v4978 = vor.u32 1.1754944e-38, %v4977
      %v4979 = vsel %vm4976, %v4978, %v4974
      %v4980 = vmul.f32 1.0, %v4979
      %v4981 = vrcp.pop %v4669
      %v4982 = vmul.f32 %v4669, %v4981
      %v4983 = vsub.f32 1.0, %v4982
      %v4984 = vmul.f32 %v4981, %v4983
      %v4985 = vadd.f32 %v4981, %v4984
      %vm4986 = vweird.f32 %v4669
      %vm4987 = vweird.f32 %v4981
      %vm4988 = vmor %vm4986, %vm4987
      %v4989 = vsel %vm4988, %v4981, %v4985
      %v4990 = vand.u32 2147483647, %v4669
      %vm4991 = vcmp.eq.f32.partialorder %v4990, 8.507059e+37
      %v4992 = vand.u32 %v4669, 2147483648
      %v4993 = vor.u32 1.1754944e-38, %v4992
      %v4994 = vsel %vm4991, %v4993, %v4989
      %v4995 = vmul.f32 1.0, %v4994
      %v4996 = vrcp.pop %v4670
      %v4997 = vmul.f32 %v4670, %v4996
      %v4998 = vsub.f32 1.0, %v4997
      %v4999 = vmul.f32 %v4996, %v4998
      %v5000 = vadd.f32 %v4996, %v4999
      %vm5001 = vweird.f32 %v4670
      %vm5002 = vweird.f32 %v4996
      %vm5003 = vmor %vm5001, %vm5002
      %v5004 = vsel %vm5003, %v4996, %v5000
      %v5005 = vand.u32 2147483647, %v4670
      %vm5006 = vcmp.eq.f32.partialorder %v5005, 8.507059e+37
      %v5007 = vand.u32 %v4670, 2147483648
      %v5008 = vor.u32 1.1754944e-38, %v5007
      %v5009 = vsel %vm5006, %v5008, %v5004
      %v5010 = vmul.f32 1.0, %v5009
      %v5011 = vrcp.pop %v4671
      %v5012 = vmul.f32 %v4671, %v5011
      %v5013 = vsub.f32 1.0, %v5012
      %v5014 = vmul.f32 %v5011, %v5013
      %v5015 = vadd.f32 %v5011, %v5014
      %vm5016 = vweird.f32 %v4671
      %vm5017 = vweird.f32 %v5011
      %vm5018 = vmor %vm5016, %vm5017
      %v5019 = vsel %vm5018, %v5011, %v5015
      %v5020 = vand.u32 2147483647, %v4671
      %vm5021 = vcmp.eq.f32.partialorder %v5020, 8.507059e+37
      %v5022 = vand.u32 %v4671, 2147483648
      %v5023 = vor.u32 1.1754944e-38, %v5022
      %v5024 = vsel %vm5021, %v5023, %v5019
      %v5025 = vmul.f32 1.0, %v5024
      %v5026 = vrcp.pop %v4672
      %v5027 = vmul.f32 %v4672, %v5026
      %v5028 = vsub.f32 1.0, %v5027
      %v5029 = vmul.f32 %v5026, %v5028
      %v5030 = vadd.f32 %v5026, %v5029
      %vm5031 = vweird.f32 %v4672
      %vm5032 = vweird.f32 %v5026
      %vm5033 = vmor %vm5031, %vm5032
      %v5034 = vsel %vm5033, %v5026, %v5030
      %v5035 = vand.u32 2147483647, %v4672
      %vm5036 = vcmp.eq.f32.partialorder %v5035, 8.507059e+37
      %v5037 = vand.u32 %v4672, 2147483648
      %v5038 = vor.u32 1.1754944e-38, %v5037
      %v5039 = vsel %vm5036, %v5038, %v5034
      %v5040 = vmul.f32 1.0, %v5039
      %v5041 = vrcp.pop %v4673
      %v5042 = vmul.f32 %v4673, %v5041
      %v5043 = vsub.f32 1.0, %v5042
      %v5044 = vmul.f32 %v5041, %v5043
      %v5045 = vadd.f32 %v5041, %v5044
      %vm5046 = vweird.f32 %v4673
      %vm5047 = vweird.f32 %v5041
      %vm5048 = vmor %vm5046, %vm5047
      %v5049 = vsel %vm5048, %v5041, %v5045
      %v5050 = vand.u32 2147483647, %v4673
      %vm5051 = vcmp.eq.f32.partialorder %v5050, 8.507059e+37
      %v5052 = vand.u32 %v4673, 2147483648
      %v5053 = vor.u32 1.1754944e-38, %v5052
      %v5054 = vsel %vm5051, %v5053, %v5049
      %v5055 = vmul.f32 1.0, %v5054
      %v5056 = vrcp.pop %v4674
      %v5057 = vmul.f32 %v4674, %v5056
      %v5058 = vsub.f32 1.0, %v5057
      %v5059 = vmul.f32 %v5056, %v5058
      %v5060 = vadd.f32 %v5056, %v5059
      %vm5061 = vweird.f32 %v4674
      %vm5062 = vweird.f32 %v5056
      %vm5063 = vmor %vm5061, %vm5062
      %v5064 = vsel %vm5063, %v5056, %v5060
      %v5065 = vand.u32 2147483647, %v4674
      %vm5066 = vcmp.eq.f32.partialorder %v5065, 8.507059e+37
      %v5067 = vand.u32 %v4674, 2147483648
      %v5068 = vor.u32 1.1754944e-38, %v5067
      %v5069 = vsel %vm5066, %v5068, %v5064
      %v5070 = vmul.f32 1.0, %v5069
      %v5071 = vrcp.pop %v4675
      %v5072 = vmul.f32 %v4675, %v5071
      %v5073 = vsub.f32 1.0, %v5072
      %v5074 = vmul.f32 %v5071, %v5073
      %v5075 = vadd.f32 %v5071, %v5074
      %vm5076 = vweird.f32 %v4675
      %vm5077 = vweird.f32 %v5071
      %vm5078 = vmor %vm5076, %vm5077
      %v5079 = vsel %vm5078, %v5071, %v5075
      %v5080 = vand.u32 2147483647, %v4675
      %vm5081 = vcmp.eq.f32.partialorder %v5080, 8.507059e+37
      %v5082 = vand.u32 %v4675, 2147483648
      %v5083 = vor.u32 1.1754944e-38, %v5082
      %v5084 = vsel %vm5081, %v5083, %v5079
      %v5085 = vmul.f32 1.0, %v5084
      %v5086 = vrcp.pop %v4676
      %v5087 = vmul.f32 %v4676, %v5086
      %v5088 = vsub.f32 1.0, %v5087
      %v5089 = vmul.f32 %v5086, %v5088
      %v5090 = vadd.f32 %v5086, %v5089
      %vm5091 = vweird.f32 %v4676
      %vm5092 = vweird.f32 %v5086
      %vm5093 = vmor %vm5091, %vm5092
      %v5094 = vsel %vm5093, %v5086, %v5090
      %v5095 = vand.u32 2147483647, %v4676
      %vm5096 = vcmp.eq.f32.partialorder %v5095, 8.507059e+37
      %v5097 = vand.u32 %v4676, 2147483648
      %v5098 = vor.u32 1.1754944e-38, %v5097
      %v5099 = vsel %vm5096, %v5098, %v5094
      %v5100 = vmul.f32 1.0, %v5099
      %v5101 = vrcp.pop %v4677
      %v5102 = vmul.f32 %v4677, %v5101
      %v5103 = vsub.f32 1.0, %v5102
      %v5104 = vmul.f32 %v5101, %v5103
      %v5105 = vadd.f32 %v5101, %v5104
      %vm5106 = vweird.f32 %v4677
      %vm5107 = vweird.f32 %v5101
      %vm5108 = vmor %vm5106, %vm5107
      %v5109 = vsel %vm5108, %v5101, %v5105
      %v5110 = vand.u32 2147483647, %v4677
      %vm5111 = vcmp.eq.f32.partialorder %v5110, 8.507059e+37
      %v5112 = vand.u32 %v4677, 2147483648
      %v5113 = vor.u32 1.1754944e-38, %v5112
      %v5114 = vsel %vm5111, %v5113, %v5109
      %v5115 = vmul.f32 1.0, %v5114
      %v5116 = vrcp.pop %v4678
      %v5117 = vmul.f32 %v4678, %v5116
      %v5118 = vsub.f32 1.0, %v5117
      %v5119 = vmul.f32 %v5116, %v5118
      %v5120 = vadd.f32 %v5116, %v5119
      %vm5121 = vweird.f32 %v4678
      %vm5122 = vweird.f32 %v5116
      %vm5123 = vmor %vm5121, %vm5122
      %v5124 = vsel %vm5123, %v5116, %v5120
      %v5125 = vand.u32 2147483647, %v4678
      %vm5126 = vcmp.eq.f32.partialorder %v5125, 8.507059e+37
      %v5127 = vand.u32 %v4678, 2147483648
      %v5128 = vor.u32 1.1754944e-38, %v5127
      %v5129 = vsel %vm5126, %v5128, %v5124
      %v5130 = vmul.f32 1.0, %v5129
      %v5131 = vrcp.pop %v4679
      %v5132 = vmul.f32 %v4679, %v5131
      %v5133 = vsub.f32 1.0, %v5132
      %v5134 = vmul.f32 %v5131, %v5133
      %v5135 = vadd.f32 %v5131, %v5134
      %vm5136 = vweird.f32 %v4679
      %vm5137 = vweird.f32 %v5131
      %vm5138 = vmor %vm5136, %vm5137
      %v5139 = vsel %vm5138, %v5131, %v5135
      %v5140 = vand.u32 2147483647, %v4679
      %vm5141 = vcmp.eq.f32.partialorder %v5140, 8.507059e+37
      %v5142 = vand.u32 %v4679, 2147483648
      %v5143 = vor.u32 1.1754944e-38, %v5142
      %v5144 = vsel %vm5141, %v5143, %v5139
      %v5145 = vmul.f32 1.0, %v5144
      %v5146 = vrcp.pop %v4680
      %v5147 = vmul.f32 %v4680, %v5146
      %v5148 = vsub.f32 1.0, %v5147
      %v5149 = vmul.f32 %v5146, %v5148
      %v5150 = vadd.f32 %v5146, %v5149
      %vm5151 = vweird.f32 %v4680
      %vm5152 = vweird.f32 %v5146
      %vm5153 = vmor %vm5151, %vm5152
      %v5154 = vsel %vm5153, %v5146, %v5150
      %v5155 = vand.u32 2147483647, %v4680
      %vm5156 = vcmp.eq.f32.partialorder %v5155, 8.507059e+37
      %v5157 = vand.u32 %v4680, 2147483648
      %v5158 = vor.u32 1.1754944e-38, %v5157
      %v5159 = vsel %vm5156, %v5158, %v5154
      %v5160 = vmul.f32 1.0, %v5159
      %vm5161 = vcmask 31744
      %5162 = vst.msk [vmem:[%s312] sm:$0xff] %vm5161, %v4695
      %5163 = vst.msk [vmem:[%s312 + $0x8] sm:$0xff] %vm5161, %v4710
      %5164 = vst.msk [vmem:[%s312 + $0x10] sm:$0xff] %vm5161, %v4725
      %5165 = vst.msk [vmem:[%s312 + $0x18] sm:$0xff] %vm5161, %v4740
      %5166 = vst.msk [vmem:[%s312 + $0x20] sm:$0xff] %vm5161, %v4755
      %5167 = vst.msk [vmem:[%s312 + $0x28] sm:$0xff] %vm5161, %v4770
      %5168 = vst.msk [vmem:[%s312 + $0x30] sm:$0xff] %vm5161, %v4785
      %5169 = vst.msk [vmem:[%s312 + $0x38] sm:$0xff] %vm5161, %v4800
      %5170 = vst.msk [vmem:[%s312 + $0x40] sm:$0xff] %vm5161, %v4815
      %5171 = vst.msk [vmem:[%s312 + $0x48] sm:$0xff] %vm5161, %v4830
      %5172 = vst.msk [vmem:[%s312 + $0x50] sm:$0xff] %vm5161, %v4845
      %5173 = vst.msk [vmem:[%s312 + $0x58] sm:$0xff] %vm5161, %v4860
      %5174 = vst.msk [vmem:[%s312 + $0x60] sm:$0xff] %vm5161, %v4875
      %5175 = vst.msk [vmem:[%s312 + $0x68] sm:$0xff] %vm5161, %v4890
      %5176 = vst.msk [vmem:[%s312 + $0x70] sm:$0xff] %vm5161, %v4905
      %5177 = vst.msk [vmem:[%s312 + $0x78] sm:$0xff] %vm5161, %v4920
      %5178 = vst.msk [vmem:[%s312 + $0x80] sm:$0xff] %vm5161, %v4935
      %5179 = vst.msk [vmem:[%s312 + $0x88] sm:$0xff] %vm5161, %v4950
      %5180 = vst.msk [vmem:[%s312 + $0x90] sm:$0xff] %vm5161, %v4965
      %5181 = vst.msk [vmem:[%s312 + $0x98] sm:$0xff] %vm5161, %v4980
      %5182 = vst.msk [vmem:[%s312 + $0xa0] sm:$0xff] %vm5161, %v4995
      %5183 = vst.msk [vmem:[%s312 + $0xa8] sm:$0xff] %vm5161, %v5010
      %5184 = vst.msk [vmem:[%s312 + $0xb0] sm:$0xff] %vm5161, %v5025
      %5185 = vst.msk [vmem:[%s312 + $0xb8] sm:$0xff] %vm5161, %v5040
      %5186 = vst.msk [vmem:[%s312 + $0xc0] sm:$0xff] %vm5161, %v5055
      %5187 = vst.msk [vmem:[%s312 + $0xc8] sm:$0xff] %vm5161, %v5070
      %5188 = vst.msk [vmem:[%s312 + $0xd0] sm:$0xff] %vm5161, %v5085
      %5189 = vst.msk [vmem:[%s312 + $0xd8] sm:$0xff] %vm5161, %v5100
      %5190 = vst.msk [vmem:[%s312 + $0xe0] sm:$0xff] %vm5161, %v5115
      %5191 = vst.msk [vmem:[%s312 + $0xe8] sm:$0xff] %vm5161, %v5130
      %5192 = vst.msk [vmem:[%s312 + $0xf0] sm:$0xff] %vm5161, %v5145
      %5193 = vst.msk [vmem:[%s312 + $0xf8] sm:$0xff] %vm5161, %v5160
      %p5194 = scmp.lt.s32.totalorder %s20, 1
      %s5195 = scalar_select %p5194, %s20, 1
      %s5196 = smul.addr %s5195, 32
      %s5197 = smul.addr %s5196, 8
      %s5198 = scalar_lea.vmem %s9, %s5197
      // Predicated region
      $region57: #{decoder_forward.1} parent=55 // pred_check
        %p5199 = pneg %p227
      $region58: #{decoder_forward.1} parent=55 // pred_check_branch
        %5201 = sbr.rel (%p5199) target = $region60
      $region59: #{decoder_forward.1} parent=55 // pred_region
        _
      $region60: #{decoder_forward.1} parent=55 // pred_fallthru
        _
    $region56: #{decoder_forward.1} parent=5 // pred_fallthru
      _
    %p5202 = scmp.le.s32.totalorder 2, %s15
    // Predicated region
    $region61: #{decoder_forward.1} parent=5 // pred_check
      %p5203 = pneg %p5202
    $region62: #{decoder_forward.1} parent=5 // pred_check_branch
      %5205 = sbr.rel (%p5203) target = $region64
    $region63: #{decoder_forward.1} parent=5 // pred_region
      %s5206 = ssub.s32 %s15, 2
      // Predicated region
      $region65: #{decoder_forward.1} parent=63 // pred_check
        %p5207 = pneg %p233
      $region66: #{decoder_forward.1} parent=63 // pred_check_branch
        %5209 = sbr.rel (%p5207) target = $region68
      $region67: #{decoder_forward.1} parent=63 // pred_region
        %p5210 = scmp.lt.s32.totalorder %s21, 1
        %s5211 = scalar_select %p5210, %s21, 1
        %s5212 = smul.addr %s5211, 32
        %s5213 = smul.addr %s5212, 8
        %s5214 = scalar_lea.vmem %s9, %s5213
      $region68: #{decoder_forward.1} parent=63 // pred_fallthru
        _
    $region64: #{decoder_forward.1} parent=5 // pred_fallthru
      _
  $region6: #{decoder_forward.1} parent=0 // loop_footer
    %s19 = sadd.s32 1, %s15
  $region7: #{decoder_forward.1} parent=0 // loop_footer_branch
    %14 = sbr.rel target = $region3
  $region8: #{decoder_forward.1} parent=0 // loop_exit
    _

</llo_original>
